<compile_context>
chip_gen: v5e
topology: v5e:2x2
jax: 0.10.0
libtpu: 0.0.40
codegen_flags: <defaults>
</compile_context>

<pallas_src>
import functools

import jax
import jax.numpy as jnp
from jax import lax
from jax.experimental import pallas as pl
from jax.experimental.pallas import tpu as pltpu


def _round_up(x, m):
    return (x + m - 1) // m * m


# ----------------------------------------------------------------------------
# Fused kernel: LSTM stack + Linear head, one time-chunk per grid step.
# ----------------------------------------------------------------------------
def _char_lstm_kernel(x_ref, wih_ref, whh_ref, b_ref, fcw_ref, fcb_ref,
                      h0_ref, c0_ref,
                      out_ref, hn_ref, cn_ref,
                      h_sc, c_sc, y_sc, gx_sc,
                      *, t_valid):
    """Shapes (per grid step):
      x_ref   : (Tt, Bb, Hp)  bf16   time-chunk of embedded input
      wih/whh : (L, Hp, 4Hp)  bf16   VMEM-resident stacked weights (no dbl-buf)
      b_ref   : (L, 1, 4Hp)   f32    b_ih + b_hh
      fcw/fcb : (Hp, Op) bf16 / (1, Op) f32
      h0/c0   : (L, Bb, Hp)   f32    initial state for this batch block
      out_ref : (Tt, Bb, Op)         logits chunk
      hn/cn   : (L, Bb, Hp)   f32    final state (written at last time chunk)
      h_sc/c_sc : (L, Bb, Hp) f32    carried recurrent state (VMEM scratch)
      y_sc    : (Tt, Bb, Hp)  bf16   current layer's activations for this chunk
      gx_sc   : (Tt, Bb, 4Hp) f32    hoisted x @ W_ih (+ bias) for this chunk
      t_valid : static int or None   if set, timesteps >= t_valid are masked
    """
    t_idx = pl.program_id(1)
    tt, bb, hp = x_ref.shape
    num_layers = wih_ref.shape[0]

    @pl.when(t_idx == 0)
    def _():
        h_sc[...] = h0_ref[...]
        c_sc[...] = c0_ref[...]

    # Layer-0 input for this chunk (bf16 straight from the pipeline buffer).
    y_sc[...] = x_ref[...]

    # Unroll tuned to the vreg budget: each unrolled step keeps a (Bb, 4Hp) f32
    # z plus four gate slabs live.
    if tt <= 8:
        unroll = True
    elif hp <= 256:
        unroll = 8
    elif hp <= 512:
        unroll = 4
    else:
        unroll = 2

    for l in range(num_layers):          # static unroll; weights stay resident
        whh = whh_ref[l]                 # hoisted out of the timestep loop
        bias = b_ref[l]                  # (1, 4Hp)

        # Hoisted input projection: one large MXU matmul for the whole chunk.
        gx = jnp.dot(y_sc[...].reshape(tt * bb, hp), wih_ref[l],
                     preferred_element_type=jnp.float32)
        gx_sc[...] = (gx + bias).reshape(tt, bb, 4 * hp)

        def step(t, carry, whh=whh):
            h, c = carry                 # f32 (Bb, Hp)
            z = gx_sc[t] + jnp.dot(h.astype(jnp.bfloat16), whh,
                                   preferred_element_type=jnp.float32)
            i = jax.nn.sigmoid(z[:, 0 * hp:1 * hp])   # gate slices are whole
            f = jax.nn.sigmoid(z[:, 1 * hp:2 * hp])   # 128-lane slabs (Hp%128==0)
            g = jnp.tanh(z[:, 2 * hp:3 * hp])
            o = jax.nn.sigmoid(z[:, 3 * hp:4 * hp])
            c_new = f * c + i * g
            h_new = o * jnp.tanh(c_new)
            if t_valid is not None:      # masked tail for padded timesteps
                valid = (t_idx * tt + t) < t_valid
                h_new = jnp.where(valid, h_new, h)
                c_new = jnp.where(valid, c_new, c)
            y_sc[t] = h_new.astype(y_sc.dtype)         # feeds next layer / fc
            return (h_new, c_new)

        h, c = lax.fori_loop(0, tt, step, (h_sc[l], c_sc[l]), unroll=unroll)
        h_sc[l] = h
        c_sc[l] = c

    # Fused Linear epilogue on this chunk's last-layer activations.
    logits = jnp.dot(y_sc[...].reshape(tt * bb, hp), fcw_ref[...],
                     preferred_element_type=jnp.float32)
    logits = logits + fcb_ref[...]
    out_ref[...] = logits.reshape(tt, bb, out_ref.shape[-1]).astype(out_ref.dtype)

    @pl.when(t_idx == pl.num_programs(1) - 1)
    def _():
        hn_ref[...] = h_sc[...]
        cn_ref[...] = c_sc[...]


# ----------------------------------------------------------------------------
# Parameters: PyTorch layout -> padded, bf16, kernel-friendly layout.
# ----------------------------------------------------------------------------
def init_params(key, input_size, hidden_size, output_size, num_layers):
    """Parameters in the PyTorch layout (nn.Embedding / nn.LSTM / nn.Linear)."""
    ks = jax.random.split(key, 3 + 4 * num_layers)
    s = 0.1
    params = {
        "embedding": s * jax.random.normal(ks[0], (input_size, hidden_size), jnp.float32),
        "fc_w": s * jax.random.normal(ks[1], (output_size, hidden_size), jnp.float32),
        "fc_b": s * jax.random.normal(ks[2], (output_size,), jnp.float32),
        "layers": [],
    }
    for l in range(num_layers):
        k0, k1, k2, k3 = ks[3 + 4 * l: 7 + 4 * l]
        params["layers"].append({
            "w_ih": s * jax.random.normal(k0, (4 * hidden_size, hidden_size), jnp.float32),
            "w_hh": s * jax.random.normal(k1, (4 * hidden_size, hidden_size), jnp.float32),
            "b_ih": s * jax.random.normal(k2, (4 * hidden_size,), jnp.float32),
            "b_hh": s * jax.random.normal(k3, (4 * hidden_size,), jnp.float32),
        })
    return params


def prepare_params(params, hidden_size, output_size, lane_multiple=128):
    """Pad each gate block to Hp, stack layers, cast matmul operands to bf16.

    lane_multiple=128 keeps weight VMEM minimal; pass 256 on v6e/v7x for small
    H (<256) to fill the 2x256x256 MXU tiles.
    """
    H, O = hidden_size, output_size
    Hp = _round_up(H, lane_multiple)   # lane-aligned gate slabs
    Op = _round_up(O, 128)             # lane-dense fc output (unmasked stores)

    def gate_matrix(w):          # torch (4H, H) -> kernel (Hp, 4*Hp)
        w4 = jnp.transpose(w.reshape(4, H, H), (2, 0, 1))        # (in, gate, out)
        w4 = jnp.pad(w4, ((0, Hp - H), (0, 0), (0, Hp - H)))
        return w4.reshape(Hp, 4 * Hp)

    def gate_bias(b_ih, b_hh):   # (4H,) -> (1, 4*Hp)
        b = jnp.pad((b_ih + b_hh).reshape(4, H), ((0, 0), (0, Hp - H)))
        return b.reshape(1, 4 * Hp)

    return {
        "embedding": jnp.pad(params["embedding"],
                             ((0, 0), (0, Hp - H))).astype(jnp.bfloat16),
        "wih": jnp.stack([gate_matrix(l["w_ih"]) for l in params["layers"]]).astype(jnp.bfloat16),
        "whh": jnp.stack([gate_matrix(l["w_hh"]) for l in params["layers"]]).astype(jnp.bfloat16),
        "b": jnp.stack([gate_bias(l["b_ih"], l["b_hh"]) for l in params["layers"]]),
        "fc_w": jnp.pad(params["fc_w"].T, ((0, Hp - H), (0, Op - O))).astype(jnp.bfloat16),
        "fc_b": jnp.pad(params["fc_b"], (0, Op - O))[None, :],
    }


# ----------------------------------------------------------------------------
# Forward wrapper (keeps the torch batch_first convention).
# ----------------------------------------------------------------------------
@functools.partial(jax.jit,
                   static_argnames=("hidden_size", "output_size", "t_chunk",
                                    "batch_block", "out_dtype"))
def char_lstm_forward(kparams, token_ids, hidden, *, hidden_size, output_size,
                      t_chunk=128, batch_block=None, out_dtype=jnp.float32):
    """token_ids (B, T) int32; hidden = (h0, c0) each (L, B, H).
    Returns (logits (B, T, O), (h_n, c_n)) matching the torch module."""
    h0_all, c0_all = hidden
    B, T = token_ids.shape
    L, Hp, _ = kparams["wih"].shape
    Op = kparams["fc_w"].shape[1]
    H, O = hidden_size, output_size
    out_bytes = jnp.dtype(out_dtype).itemsize

    # Batch blocking: sublane-aligned; split in two for v7x megacore once each
    # block is still wide enough (>= 64 rows) for the recurrent matmul's M.
    Bp = _round_up(B, 8)
    if batch_block is None:
        Bb = Bp // 2 if (Bp >= 128 and Bp % 16 == 0) else Bp
    else:
        Bb = batch_block
    assert Bp % Bb == 0 and Bb % 8 == 0
    NB = Bp // Bb

    # Time chunking: pad T up to NT*Tt (masked tail) instead of collapsing Tt
    # to a small divisor of T.
    NT = pl.cdiv(T, t_chunk)
    Tt = pl.cdiv(T, NT)

    # VMEM footprint (bytes) for a given time chunk; weights single-buffered.
    def vmem_est(tt):
        weights = (2 * L * Hp * 4 * Hp * 2          # wih + whh bf16
                   + L * 4 * Hp * 4                 # bias f32
                   + Hp * Op * 2 + Op * 4)          # fc
        state = 4 * 2 * L * Bb * Hp * 4             # h0/c0 in + hn/cn out (dbl-buf)
        x_in = 2 * tt * Bb * Hp * 2                 # x chunk (dbl-buf, bf16)
        out = 2 * tt * Bb * Op * out_bytes          # logits chunk (dbl-buf)
        scratch = (2 * L * Bb * Hp * 4              # h_sc + c_sc f32
                   + tt * Bb * Hp * 2               # y_sc bf16
                   + tt * Bb * 4 * Hp * 4)          # gx_sc f32
        return weights + state + x_in + out + scratch

    VMEM_BUDGET = 48 * 1024 * 1024   # fits v7x's 64 MiB physical VMEM
    while vmem_est(Tt) > VMEM_BUDGET and Tt > 8:
        Tt = pl.cdiv(Tt, 2)
    NT = pl.cdiv(T, Tt)
    Tp = NT * Tt

    # Embedding gather stays in plain JAX (bf16 table -> no f32 round trip);
    # everything downstream is fused into one pallas_call.
    x = jnp.take(kparams["embedding"], token_ids, axis=0)       # (B, T, Hp) bf16
    x = jnp.transpose(x, (1, 0, 2))                              # (T, B, Hp)
    if Tp != T or Bp != B:
        x = jnp.pad(x, ((0, Tp - T), (0, Bp - B), (0, 0)))

    pad_state = lambda s: jnp.pad(s.astype(jnp.float32),
                                  ((0, 0), (0, Bp - B), (0, Hp - H)))
    h0 = pad_state(h0_all)
    c0 = pad_state(c0_all)

    # Whole-array VMEM residency (single copy, no pipeline double-buffering)
    # for the constant-index operands.
    resident = pl.BlockSpec(memory_space=pltpu.MemorySpace.VMEM)

    grid_spec = pltpu.PrefetchScalarGridSpec(
        num_scalar_prefetch=0,
        grid=(NB, NT),                                           # (parallel, arbitrary)
        in_specs=[
            pl.BlockSpec((Tt, Bb, Hp), lambda b, t: (t, b, 0)),        # x chunk
            resident,                                                  # wih
            resident,                                                  # whh
            resident,                                                  # bias
            resident,                                                  # fc_w
            resident,                                                  # fc_b
            pl.BlockSpec((L, Bb, Hp), lambda b, t: (0, b, 0)),         # h0
            pl.BlockSpec((L, Bb, Hp), lambda b, t: (0, b, 0)),         # c0
        ],
        out_specs=(
            pl.BlockSpec((Tt, Bb, Op), lambda b, t: (t, b, 0)),        # logits chunk
            pl.BlockSpec((L, Bb, Hp), lambda b, t: (0, b, 0)),         # h_n
            pl.BlockSpec((L, Bb, Hp), lambda b, t: (0, b, 0)),         # c_n
        ),
        scratch_shapes=[
            pltpu.VMEM((L, Bb, Hp), jnp.float32),        # carried h
            pltpu.VMEM((L, Bb, Hp), jnp.float32),        # carried c
            pltpu.VMEM((Tt, Bb, Hp), jnp.bfloat16),      # per-chunk activations
            pltpu.VMEM((Tt, Bb, 4 * Hp), jnp.float32),   # hoisted x @ W_ih (+ bias)
        ],
    )

    # Advisory cost hint so XLA schedules the gather/transpose around the call.
    flops = 16 * L * Tp * Bp * Hp * Hp + 2 * Tp * Bp * Hp * Op
    transcendentals = 5 * L * Tp * Bp * Hp
    bytes_accessed = (Tp * Bp * Hp * 2
                      + 2 * L * Hp * 4 * Hp * 2 + L * 4 * Hp * 4
                      + Hp * Op * 2 + Op * 4
                      + 4 * L * Bp * Hp * 4
                      + Tp * Bp * Op * out_bytes)

    logits, hn, cn = pl.pallas_call(
        functools.partial(_char_lstm_kernel,
                          t_valid=None if Tp == T else T),
        out_shape=(jax.ShapeDtypeStruct((Tp, Bp, Op), out_dtype),
                   jax.ShapeDtypeStruct((L, Bp, Hp), jnp.float32),
                   jax.ShapeDtypeStruct((L, Bp, Hp), jnp.float32)),
        grid_spec=grid_spec,
        compiler_params=pltpu.CompilerParams(
            dimension_semantics=("parallel", "arbitrary"),
            vmem_limit_bytes=56 * 1024 * 1024),
        cost_estimate=pl.CostEstimate(flops=int(flops),
                                      transcendentals=int(transcendentals),
                                      bytes_accessed=int(bytes_accessed)),
    )(x, kparams["wih"], kparams["whh"], kparams["b"],
      kparams["fc_w"], kparams["fc_b"], h0, c0)

    out = jnp.transpose(logits[:T, :B, :O], (1, 0, 2))   # back to batch_first
    return out, (hn[:, :B, :H], cn[:, :B, :H])


# ----------------------------------------------------------------------------
# Pure-JAX reference (exact torch CharLSTM equations; bf16 matmul operands with
# f32 accumulation, mirroring the kernel's dtype strategy).
# ----------------------------------------------------------------------------
def _reference_forward(params, token_ids, hidden):
    def mm(a, b):
        return jnp.dot(a.astype(jnp.bfloat16), b.astype(jnp.bfloat16),
                       preferred_element_type=jnp.float32)

    h0_all, c0_all = hidden
    H = params["embedding"].shape[1]
    x = jnp.take(params["embedding"], token_ids, axis=0)        # (B, T, H)
    hns, cns = [], []
    for l, layer in enumerate(params["layers"]):
        wih_t, whh_t = layer["w_ih"].T, layer["w_hh"].T
        b = (layer["b_ih"] + layer["b_hh"])[None, :]

        def step(carry, x_t, wih_t=wih_t, whh_t=whh_t, b=b):
            h, c = carry
            z = mm(x_t, wih_t) + mm(h, whh_t) + b
            i = jax.nn.sigmoid(z[:, 0 * H:1 * H])
            f = jax.nn.sigmoid(z[:, 1 * H:2 * H])
            g = jnp.tanh(z[:, 2 * H:3 * H])
            o = jax.nn.sigmoid(z[:, 3 * H:4 * H])
            c = f * c + i * g
            h = o * jnp.tanh(c)
            return (h, c), h

        (hn, cn), ys = lax.scan(step, (h0_all[l], c0_all[l]),
                                jnp.transpose(x, (1, 0, 2)))
        x = jnp.transpose(ys, (1, 0, 2))
        hns.append(hn)
        cns.append(cn)
    B, T, _ = x.shape
    out = mm(x.reshape(B * T, H), params["fc_w"].T).reshape(B, T, -1) + params["fc_b"]
    return out, (jnp.stack(hns), jnp.stack(cns))


# ----------------------------------------------------------------------------
if __name__ == "__main__":
    vocab_size = 16        # input_size == output_size (char-level LM)
    hidden_size = 32
    output_size = 16
    num_layers = 2
    batch = 2

    key = jax.random.PRNGKey(0)
    k_param, k_ids = jax.random.split(key)
    params = init_params(k_param, vocab_size, hidden_size, output_size, num_layers)
    kparams = prepare_params(params, hidden_size, output_size)

    # init_hidden(batch) -> zeros (num_layers, B, H) x2
    h0 = jnp.zeros((num_layers, batch, hidden_size), jnp.float32)
    c0 = jnp.zeros((num_layers, batch, hidden_size), jnp.float32)

    ok = True
    # seq=8 with t_chunk=4 -> 2 full time chunks (carried-state grid path);
    # seq=7 with t_chunk=4 -> padded + masked final chunk.
    for seq in (8, 7):
        token_ids = jax.random.randint(k_ids, (batch, seq), 0, vocab_size, jnp.int32)
        out, (hn, cn) = char_lstm_forward(
            kparams, token_ids, (h0, c0),
            hidden_size=hidden_size, output_size=output_size, t_chunk=4)
        out = jax.block_until_ready(out)
        hn = jax.block_until_ready(hn)
        cn = jax.block_until_ready(cn)

        assert out.shape == (batch, seq, output_size)
        assert hn.shape == (num_layers, batch, hidden_size)
        assert cn.shape == (num_layers, batch, hidden_size)

        ref_out, (ref_hn, ref_cn) = _reference_forward(params, token_ids, (h0, c0))
        # Tolerance accounts for bf16 operand rounding in the matmuls.
        ok &= bool(jnp.allclose(out, ref_out, atol=2e-2, rtol=2e-2))
        ok &= bool(jnp.allclose(hn, ref_hn, atol=2e-2, rtol=2e-2))
        ok &= bool(jnp.allclose(cn, ref_cn, atol=2e-2, rtol=2e-2))

    assert ok
    print("KERNEL_OK")
</pallas_src>

<mosaic_0001>
module attributes {stable_mosaic.version = 11 : i64} {
  func.func @_char_lstm_kernel(%arg0: i32, %arg1: i32, %arg2: memref<4x8x128xbf16, #tpu.memory_space<vmem>>, %arg3: memref<2x128x512xbf16, #tpu.memory_space<vmem>>, %arg4: memref<2x128x512xbf16, #tpu.memory_space<vmem>>, %arg5: memref<2x1x512xf32, #tpu.memory_space<vmem>>, %arg6: memref<128x128xbf16, #tpu.memory_space<vmem>>, %arg7: memref<1x128xf32, #tpu.memory_space<vmem>>, %arg8: memref<2x8x128xf32, #tpu.memory_space<vmem>>, %arg9: memref<2x8x128xf32, #tpu.memory_space<vmem>>, %arg10: memref<4x8x128xf32, #tpu.memory_space<vmem>>, %arg11: memref<2x8x128xf32, #tpu.memory_space<vmem>>, %arg12: memref<2x8x128xf32, #tpu.memory_space<vmem>>, %arg13: memref<2x8x128xf32, #tpu.memory_space<vmem>>, %arg14: memref<2x8x128xf32, #tpu.memory_space<vmem>>, %arg15: memref<4x8x128xbf16, #tpu.memory_space<vmem>>, %arg16: memref<4x8x512xf32, #tpu.memory_space<vmem>>) attributes {dimension_semantics = [#tpu.dimension_semantics<parallel>, #tpu.dimension_semantics<arbitrary>], iteration_bounds = array<i64: 1, 2>, scalar_prefetch = 0 : i64, scratch_operands = 4 : i64, tpu.core_type = #tpu.core_type<tc>, window_params = [{transform_indices = @transform_0, window_bounds = array<i64: 4, 8, 128>}, {pipeline_mode = #tpu.pipeline_mode<synchronous>, transform_indices = @transform_1, window_bounds = array<i64: 2, 128, 512>}, {pipeline_mode = #tpu.pipeline_mode<synchronous>, transform_indices = @transform_2, window_bounds = array<i64: 2, 128, 512>}, {pipeline_mode = #tpu.pipeline_mode<synchronous>, transform_indices = @transform_3, window_bounds = array<i64: 2, 1, 512>}, {pipeline_mode = #tpu.pipeline_mode<synchronous>, transform_indices = @transform_4, window_bounds = array<i64: 128, 128>}, {pipeline_mode = #tpu.pipeline_mode<synchronous>, transform_indices = @transform_5, window_bounds = array<i64: 1, 128>}, {transform_indices = @transform_6, window_bounds = array<i64: 2, 8, 128>}, {transform_indices = @transform_7, window_bounds = array<i64: 2, 8, 128>}, {transform_indices = @transform_8, window_bounds = array<i64: 4, 8, 128>}, {transform_indices = @transform_9, window_bounds = array<i64: 2, 8, 128>}, {transform_indices = @transform_10, window_bounds = array<i64: 2, 8, 128>}]} {
    %c0_i32 = arith.constant 0 : i32
    %0 = arith.cmpi eq, %arg1, %c0_i32 : i32
    %1 = arith.extui %0 : i1 to i32
    %c0_i32_0 = arith.constant 0 : i32
    %2 = arith.cmpi ne, %1, %c0_i32_0 : i32
    scf.if %2 {
      %c0_143 = arith.constant 0 : index
      %c0_144 = arith.constant 0 : index
      %c0_145 = arith.constant 0 : index
      %351 = vector.load %arg8[%c0_143, %c0_144, %c0_145] : memref<2x8x128xf32, #tpu.memory_space<vmem>>, vector<2x8x128xf32>
      %c0_146 = arith.constant 0 : index
      %c0_147 = arith.constant 0 : index
      %c0_148 = arith.constant 0 : index
      %352 = vector.load %arg13[%c0_146, %c0_147, %c0_148] : memref<2x8x128xf32, #tpu.memory_space<vmem>>, vector<2x8x128xf32>
      tpu.vector_store %arg13[%c0_146, %c0_147, %c0_148], %351 {strides = array<i32>} : memref<2x8x128xf32, #tpu.memory_space<vmem>>, vector<2x8x128xf32>,
      %c0_149 = arith.constant 0 : index
      %c0_150 = arith.constant 0 : index
      %c0_151 = arith.constant 0 : index
      %353 = vector.load %arg9[%c0_149, %c0_150, %c0_151] : memref<2x8x128xf32, #tpu.memory_space<vmem>>, vector<2x8x128xf32>
      %c0_152 = arith.constant 0 : index
      %c0_153 = arith.constant 0 : index
      %c0_154 = arith.constant 0 : index
      %354 = vector.load %arg14[%c0_152, %c0_153, %c0_154] : memref<2x8x128xf32, #tpu.memory_space<vmem>>, vector<2x8x128xf32>
      tpu.vector_store %arg14[%c0_152, %c0_153, %c0_154], %353 {strides = array<i32>} : memref<2x8x128xf32, #tpu.memory_space<vmem>>, vector<2x8x128xf32>,
    } else {
    }
    %c0 = arith.constant 0 : index
    %c0_1 = arith.constant 0 : index
    %c0_2 = arith.constant 0 : index
    %3 = vector.load %arg2[%c0, %c0_1, %c0_2] : memref<4x8x128xbf16, #tpu.memory_space<vmem>>, vector<4x8x128xbf16>
    %c0_3 = arith.constant 0 : index
    %c0_4 = arith.constant 0 : index
    %c0_5 = arith.constant 0 : index
    %4 = vector.load %arg15[%c0_3, %c0_4, %c0_5] : memref<4x8x128xbf16, #tpu.memory_space<vmem>>, vector<4x8x128xbf16>
    tpu.vector_store %arg15[%c0_3, %c0_4, %c0_5], %3 {strides = array<i32>} : memref<4x8x128xbf16, #tpu.memory_space<vmem>>, vector<4x8x128xbf16>,
    %c0_6 = arith.constant 0 : index
    %c0_7 = arith.constant 0 : index
    %c0_8 = arith.constant 0 : index
    %5 = vector.load %arg4[%c0_6, %c0_7, %c0_8] : memref<2x128x512xbf16, #tpu.memory_space<vmem>>, vector<1x128x512xbf16>
    %6 = vector.shape_cast %5 : vector<1x128x512xbf16> to vector<128x512xbf16>
    %c0_9 = arith.constant 0 : index
    %c0_10 = arith.constant 0 : index
    %c0_11 = arith.constant 0 : index
    %7 = vector.load %arg5[%c0_9, %c0_10, %c0_11] : memref<2x1x512xf32, #tpu.memory_space<vmem>>, vector<1x1x512xf32>
    %8 = vector.shape_cast %7 : vector<1x1x512xf32> to vector<1x512xf32>
    %c0_12 = arith.constant 0 : index
    %c0_13 = arith.constant 0 : index
    %c0_14 = arith.constant 0 : index
    %9 = vector.load %arg15[%c0_12, %c0_13, %c0_14] : memref<4x8x128xbf16, #tpu.memory_space<vmem>>, vector<4x8x128xbf16>
    %10 = vector.shape_cast %9 : vector<4x8x128xbf16> to vector<32x128xbf16>
    %c0_15 = arith.constant 0 : index
    %c0_16 = arith.constant 0 : index
    %c0_17 = arith.constant 0 : index
    %11 = vector.load %arg3[%c0_15, %c0_16, %c0_17] : memref<2x128x512xbf16, #tpu.memory_space<vmem>>, vector<1x128x512xbf16>
    %12 = vector.shape_cast %11 : vector<1x128x512xbf16> to vector<128x512xbf16>
    %cst = arith.constant dense<0.000000e+00> : vector<32x512xf32>
    %13 = tpu.matmul %10, %12, %cst {dimension_numbers = #tpu.dot_dimension_numbers<[1], [0], [0], [1], [0, 0, 1, 1], [], []>} : vector<32x128xbf16>, vector<128x512xbf16>, vector<32x512xf32> -> vector<32x512xf32>
    %14 = vector.broadcast %8 : vector<1x512xf32> to vector<32x512xf32>
    %15 = arith.addf %13, %14 : vector<32x512xf32>
    %16 = vector.shape_cast %15 : vector<32x512xf32> to vector<4x8x512xf32>
    %c0_18 = arith.constant 0 : index
    %c0_19 = arith.constant 0 : index
    %c0_20 = arith.constant 0 : index
    %17 = vector.load %arg16[%c0_18, %c0_19, %c0_20] : memref<4x8x512xf32, #tpu.memory_space<vmem>>, vector<4x8x512xf32>
    tpu.vector_store %arg16[%c0_18, %c0_19, %c0_20], %16 {strides = array<i32>} : memref<4x8x512xf32, #tpu.memory_space<vmem>>, vector<4x8x512xf32>,
    %c0_21 = arith.constant 0 : index
    %c0_22 = arith.constant 0 : index
    %c0_23 = arith.constant 0 : index
    %18 = vector.load %arg13[%c0_21, %c0_22, %c0_23] : memref<2x8x128xf32, #tpu.memory_space<vmem>>, vector<1x8x128xf32>
    %19 = vector.shape_cast %18 : vector<1x8x128xf32> to vector<8x128xf32>
    %c0_24 = arith.constant 0 : index
    %c0_25 = arith.constant 0 : index
    %c0_26 = arith.constant 0 : index
    %20 = vector.load %arg14[%c0_24, %c0_25, %c0_26] : memref<2x8x128xf32, #tpu.memory_space<vmem>>, vector<1x8x128xf32>
    %21 = vector.shape_cast %20 : vector<1x8x128xf32> to vector<8x128xf32>
    %c0_i32_27 = arith.constant 0 : i32
    %22 = arith.index_cast %c0_i32_27 : i32 to index
    %c0_28 = arith.constant 0 : index
    %c0_29 = arith.constant 0 : index
    %23 = vector.load %arg16[%22, %c0_28, %c0_29] : memref<4x8x512xf32, #tpu.memory_space<vmem>>, vector<1x8x512xf32>
    %24 = vector.shape_cast %23 : vector<1x8x512xf32> to vector<8x512xf32>
    %25 = arith.truncf %19 : vector<8x128xf32> to vector<8x128xbf16>
    %cst_30 = arith.constant dense<0.000000e+00> : vector<8x512xf32>
    %26 = tpu.matmul %25, %6, %cst_30 {dimension_numbers = #tpu.dot_dimension_numbers<[1], [0], [0], [1], [0, 0, 1, 1], [], []>} : vector<8x128xbf16>, vector<128x512xbf16>, vector<8x512xf32> -> vector<8x512xf32>
    %27 = arith.addf %24, %26 : vector<8x512xf32>
    %28 = vector.extract_strided_slice %27 {offsets = [0, 0], sizes = [8, 128], strides = [1, 1]} : vector<8x512xf32> to vector<8x128xf32>
    %29 = arith.negf %28 : vector<8x128xf32>
    %30 = math.exp %29 : vector<8x128xf32>
    %cst_31 = arith.constant 1.000000e+00 : f32
    %31 = vector.broadcast %cst_31 : f32 to vector<8x128xf32>
    %32 = arith.addf %31, %30 : vector<8x128xf32>
    %33 = arith.divf %31, %32 : vector<8x128xf32>
    %34 = vector.extract_strided_slice %27 {offsets = [0, 128], sizes = [8, 128], strides = [1, 1]} : vector<8x512xf32> to vector<8x128xf32>
    %35 = arith.negf %34 : vector<8x128xf32>
    %36 = math.exp %35 : vector<8x128xf32>
    %cst_32 = arith.constant 1.000000e+00 : f32
    %37 = vector.broadcast %cst_32 : f32 to vector<8x128xf32>
    %38 = arith.addf %37, %36 : vector<8x128xf32>
    %39 = arith.divf %37, %38 : vector<8x128xf32>
    %40 = vector.extract_strided_slice %27 {offsets = [0, 256], sizes = [8, 128], strides = [1, 1]} : vector<8x512xf32> to vector<8x128xf32>
    %41 = math.tanh %40 : vector<8x128xf32>
    %42 = vector.extract_strided_slice %27 {offsets = [0, 384], sizes = [8, 128], strides = [1, 1]} : vector<8x512xf32> to vector<8x128xf32>
    %43 = arith.negf %42 : vector<8x128xf32>
    %44 = math.exp %43 : vector<8x128xf32>
    %cst_33 = arith.constant 1.000000e+00 : f32
    %45 = vector.broadcast %cst_33 : f32 to vector<8x128xf32>
    %46 = arith.addf %45, %44 : vector<8x128xf32>
    %47 = arith.divf %45, %46 : vector<8x128xf32>
    %48 = arith.mulf %39, %21 : vector<8x128xf32>
    %49 = arith.mulf %33, %41 : vector<8x128xf32>
    %50 = arith.addf %48, %49 : vector<8x128xf32>
    %51 = math.tanh %50 : vector<8x128xf32>
    %52 = arith.mulf %47, %51 : vector<8x128xf32>
    %53 = arith.truncf %52 : vector<8x128xf32> to vector<8x128xbf16>
    %54 = arith.index_cast %c0_i32_27 : i32 to index
    %c0_34 = arith.constant 0 : index
    %c0_35 = arith.constant 0 : index
    %55 = vector.load %arg15[%54, %c0_34, %c0_35] : memref<4x8x128xbf16, #tpu.memory_space<vmem>>, vector<1x8x128xbf16>
    %56 = vector.shape_cast %55 : vector<1x8x128xbf16> to vector<8x128xbf16>
    %57 = vector.shape_cast %53 : vector<8x128xbf16> to vector<1x8x128xbf16>
    tpu.vector_store %arg15[%54, %c0_34, %c0_35], %57 {strides = array<i32>} : memref<4x8x128xbf16, #tpu.memory_space<vmem>>, vector<1x8x128xbf16>,
    %c1_i32 = arith.constant 1 : i32
    %58 = arith.index_cast %c1_i32 : i32 to index
    %c0_36 = arith.constant 0 : index
    %c0_37 = arith.constant 0 : index
    %59 = vector.load %arg16[%58, %c0_36, %c0_37] : memref<4x8x512xf32, #tpu.memory_space<vmem>>, vector<1x8x512xf32>
    %60 = vector.shape_cast %59 : vector<1x8x512xf32> to vector<8x512xf32>
    %61 = arith.truncf %52 : vector<8x128xf32> to vector<8x128xbf16>
    %cst_38 = arith.constant dense<0.000000e+00> : vector<8x512xf32>
    %62 = tpu.matmul %61, %6, %cst_38 {dimension_numbers = #tpu.dot_dimension_numbers<[1], [0], [0], [1], [0, 0, 1, 1], [], []>} : vector<8x128xbf16>, vector<128x512xbf16>, vector<8x512xf32> -> vector<8x512xf32>
    %63 = arith.addf %60, %62 : vector<8x512xf32>
    %64 = vector.extract_strided_slice %63 {offsets = [0, 0], sizes = [8, 128], strides = [1, 1]} : vector<8x512xf32> to vector<8x128xf32>
    %65 = arith.negf %64 : vector<8x128xf32>
    %66 = math.exp %65 : vector<8x128xf32>
    %cst_39 = arith.constant 1.000000e+00 : f32
    %67 = vector.broadcast %cst_39 : f32 to vector<8x128xf32>
    %68 = arith.addf %67, %66 : vector<8x128xf32>
    %69 = arith.divf %67, %68 : vector<8x128xf32>
    %70 = vector.extract_strided_slice %63 {offsets = [0, 128], sizes = [8, 128], strides = [1, 1]} : vector<8x512xf32> to vector<8x128xf32>
    %71 = arith.negf %70 : vector<8x128xf32>
    %72 = math.exp %71 : vector<8x128xf32>
    %cst_40 = arith.constant 1.000000e+00 : f32
    %73 = vector.broadcast %cst_40 : f32 to vector<8x128xf32>
    %74 = arith.addf %73, %72 : vector<8x128xf32>
    %75 = arith.divf %73, %74 : vector<8x128xf32>
    %76 = vector.extract_strided_slice %63 {offsets = [0, 256], sizes = [8, 128], strides = [1, 1]} : vector<8x512xf32> to vector<8x128xf32>
    %77 = math.tanh %76 : vector<8x128xf32>
    %78 = vector.extract_strided_slice %63 {offsets = [0, 384], sizes = [8, 128], strides = [1, 1]} : vector<8x512xf32> to vector<8x128xf32>
    %79 = arith.negf %78 : vector<8x128xf32>
    %80 = math.exp %79 : vector<8x128xf32>
    %cst_41 = arith.constant 1.000000e+00 : f32
    %81 = vector.broadcast %cst_41 : f32 to vector<8x128xf32>
    %82 = arith.addf %81, %80 : vector<8x128xf32>
    %83 = arith.divf %81, %82 : vector<8x128xf32>
    %84 = arith.mulf %75, %50 : vector<8x128xf32>
    %85 = arith.mulf %69, %77 : vector<8x128xf32>
    %86 = arith.addf %84, %85 : vector<8x128xf32>
    %87 = math.tanh %86 : vector<8x128xf32>
    %88 = arith.mulf %83, %87 : vector<8x128xf32>
    %89 = arith.truncf %88 : vector<8x128xf32> to vector<8x128xbf16>
    %90 = arith.index_cast %c1_i32 : i32 to index
    %c0_42 = arith.constant 0 : index
    %c0_43 = arith.constant 0 : index
    %91 = vector.load %arg15[%90, %c0_42, %c0_43] : memref<4x8x128xbf16, #tpu.memory_space<vmem>>, vector<1x8x128xbf16>
    %92 = vector.shape_cast %91 : vector<1x8x128xbf16> to vector<8x128xbf16>
    %93 = vector.shape_cast %89 : vector<8x128xbf16> to vector<1x8x128xbf16>
    tpu.vector_store %arg15[%90, %c0_42, %c0_43], %93 {strides = array<i32>} : memref<4x8x128xbf16, #tpu.memory_space<vmem>>, vector<1x8x128xbf16>,
    %c2_i32 = arith.constant 2 : i32
    %94 = arith.index_cast %c2_i32 : i32 to index
    %c0_44 = arith.constant 0 : index
    %c0_45 = arith.constant 0 : index
    %95 = vector.load %arg16[%94, %c0_44, %c0_45] : memref<4x8x512xf32, #tpu.memory_space<vmem>>, vector<1x8x512xf32>
    %96 = vector.shape_cast %95 : vector<1x8x512xf32> to vector<8x512xf32>
    %97 = arith.truncf %88 : vector<8x128xf32> to vector<8x128xbf16>
    %cst_46 = arith.constant dense<0.000000e+00> : vector<8x512xf32>
    %98 = tpu.matmul %97, %6, %cst_46 {dimension_numbers = #tpu.dot_dimension_numbers<[1], [0], [0], [1], [0, 0, 1, 1], [], []>} : vector<8x128xbf16>, vector<128x512xbf16>, vector<8x512xf32> -> vector<8x512xf32>
    %99 = arith.addf %96, %98 : vector<8x512xf32>
    %100 = vector.extract_strided_slice %99 {offsets = [0, 0], sizes = [8, 128], strides = [1, 1]} : vector<8x512xf32> to vector<8x128xf32>
    %101 = arith.negf %100 : vector<8x128xf32>
    %102 = math.exp %101 : vector<8x128xf32>
    %cst_47 = arith.constant 1.000000e+00 : f32
    %103 = vector.broadcast %cst_47 : f32 to vector<8x128xf32>
    %104 = arith.addf %103, %102 : vector<8x128xf32>
    %105 = arith.divf %103, %104 : vector<8x128xf32>
    %106 = vector.extract_strided_slice %99 {offsets = [0, 128], sizes = [8, 128], strides = [1, 1]} : vector<8x512xf32> to vector<8x128xf32>
    %107 = arith.negf %106 : vector<8x128xf32>
    %108 = math.exp %107 : vector<8x128xf32>
    %cst_48 = arith.constant 1.000000e+00 : f32
    %109 = vector.broadcast %cst_48 : f32 to vector<8x128xf32>
    %110 = arith.addf %109, %108 : vector<8x128xf32>
    %111 = arith.divf %109, %110 : vector<8x128xf32>
    %112 = vector.extract_strided_slice %99 {offsets = [0, 256], sizes = [8, 128], strides = [1, 1]} : vector<8x512xf32> to vector<8x128xf32>
    %113 = math.tanh %112 : vector<8x128xf32>
    %114 = vector.extract_strided_slice %99 {offsets = [0, 384], sizes = [8, 128], strides = [1, 1]} : vector<8x512xf32> to vector<8x128xf32>
    %115 = arith.negf %114 : vector<8x128xf32>
    %116 = math.exp %115 : vector<8x128xf32>
    %cst_49 = arith.constant 1.000000e+00 : f32
    %117 = vector.broadcast %cst_49 : f32 to vector<8x128xf32>
    %118 = arith.addf %117, %116 : vector<8x128xf32>
    %119 = arith.divf %117, %118 : vector<8x128xf32>
    %120 = arith.mulf %111, %86 : vector<8x128xf32>
    %121 = arith.mulf %105, %113 : vector<8x128xf32>
    %122 = arith.addf %120, %121 : vector<8x128xf32>
    %123 = math.tanh %122 : vector<8x128xf32>
    %124 = arith.mulf %119, %123 : vector<8x128xf32>
    %125 = arith.truncf %124 : vector<8x128xf32> to vector<8x128xbf16>
    %126 = arith.index_cast %c2_i32 : i32 to index
    %c0_50 = arith.constant 0 : index
    %c0_51 = arith.constant 0 : index
    %127 = vector.load %arg15[%126, %c0_50, %c0_51] : memref<4x8x128xbf16, #tpu.memory_space<vmem>>, vector<1x8x128xbf16>
    %128 = vector.shape_cast %127 : vector<1x8x128xbf16> to vector<8x128xbf16>
    %129 = vector.shape_cast %125 : vector<8x128xbf16> to vector<1x8x128xbf16>
    tpu.vector_store %arg15[%126, %c0_50, %c0_51], %129 {strides = array<i32>} : memref<4x8x128xbf16, #tpu.memory_space<vmem>>, vector<1x8x128xbf16>,
    %c3_i32 = arith.constant 3 : i32
    %130 = arith.index_cast %c3_i32 : i32 to index
    %c0_52 = arith.constant 0 : index
    %c0_53 = arith.constant 0 : index
    %131 = vector.load %arg16[%130, %c0_52, %c0_53] : memref<4x8x512xf32, #tpu.memory_space<vmem>>, vector<1x8x512xf32>
    %132 = vector.shape_cast %131 : vector<1x8x512xf32> to vector<8x512xf32>
    %133 = arith.truncf %124 : vector<8x128xf32> to vector<8x128xbf16>
    %cst_54 = arith.constant dense<0.000000e+00> : vector<8x512xf32>
    %134 = tpu.matmul %133, %6, %cst_54 {dimension_numbers = #tpu.dot_dimension_numbers<[1], [0], [0], [1], [0, 0, 1, 1], [], []>} : vector<8x128xbf16>, vector<128x512xbf16>, vector<8x512xf32> -> vector<8x512xf32>
    %135 = arith.addf %132, %134 : vector<8x512xf32>
    %136 = vector.extract_strided_slice %135 {offsets = [0, 0], sizes = [8, 128], strides = [1, 1]} : vector<8x512xf32> to vector<8x128xf32>
    %137 = arith.negf %136 : vector<8x128xf32>
    %138 = math.exp %137 : vector<8x128xf32>
    %cst_55 = arith.constant 1.000000e+00 : f32
    %139 = vector.broadcast %cst_55 : f32 to vector<8x128xf32>
    %140 = arith.addf %139, %138 : vector<8x128xf32>
    %141 = arith.divf %139, %140 : vector<8x128xf32>
    %142 = vector.extract_strided_slice %135 {offsets = [0, 128], sizes = [8, 128], strides = [1, 1]} : vector<8x512xf32> to vector<8x128xf32>
    %143 = arith.negf %142 : vector<8x128xf32>
    %144 = math.exp %143 : vector<8x128xf32>
    %cst_56 = arith.constant 1.000000e+00 : f32
    %145 = vector.broadcast %cst_56 : f32 to vector<8x128xf32>
    %146 = arith.addf %145, %144 : vector<8x128xf32>
    %147 = arith.divf %145, %146 : vector<8x128xf32>
    %148 = vector.extract_strided_slice %135 {offsets = [0, 256], sizes = [8, 128], strides = [1, 1]} : vector<8x512xf32> to vector<8x128xf32>
    %149 = math.tanh %148 : vector<8x128xf32>
    %150 = vector.extract_strided_slice %135 {offsets = [0, 384], sizes = [8, 128], strides = [1, 1]} : vector<8x512xf32> to vector<8x128xf32>
    %151 = arith.negf %150 : vector<8x128xf32>
    %152 = math.exp %151 : vector<8x128xf32>
    %cst_57 = arith.constant 1.000000e+00 : f32
    %153 = vector.broadcast %cst_57 : f32 to vector<8x128xf32>
    %154 = arith.addf %153, %152 : vector<8x128xf32>
    %155 = arith.divf %153, %154 : vector<8x128xf32>
    %156 = arith.mulf %147, %122 : vector<8x128xf32>
    %157 = arith.mulf %141, %149 : vector<8x128xf32>
    %158 = arith.addf %156, %157 : vector<8x128xf32>
    %159 = math.tanh %158 : vector<8x128xf32>
    %160 = arith.mulf %155, %159 : vector<8x128xf32>
    %161 = arith.truncf %160 : vector<8x128xf32> to vector<8x128xbf16>
    %162 = arith.index_cast %c3_i32 : i32 to index
    %c0_58 = arith.constant 0 : index
    %c0_59 = arith.constant 0 : index
    %163 = vector.load %arg15[%162, %c0_58, %c0_59] : memref<4x8x128xbf16, #tpu.memory_space<vmem>>, vector<1x8x128xbf16>
    %164 = vector.shape_cast %163 : vector<1x8x128xbf16> to vector<8x128xbf16>
    %165 = vector.shape_cast %161 : vector<8x128xbf16> to vector<1x8x128xbf16>
    tpu.vector_store %arg15[%162, %c0_58, %c0_59], %165 {strides = array<i32>} : memref<4x8x128xbf16, #tpu.memory_space<vmem>>, vector<1x8x128xbf16>,
    %c4_i32 = arith.constant 4 : i32
    %c0_60 = arith.constant 0 : index
    %c0_61 = arith.constant 0 : index
    %c0_62 = arith.constant 0 : index
    %166 = vector.load %arg13[%c0_60, %c0_61, %c0_62] : memref<2x8x128xf32, #tpu.memory_space<vmem>>, vector<1x8x128xf32>
    %167 = vector.shape_cast %166 : vector<1x8x128xf32> to vector<8x128xf32>
    %168 = vector.shape_cast %160 : vector<8x128xf32> to vector<1x8x128xf32>
    tpu.vector_store %arg13[%c0_60, %c0_61, %c0_62], %168 {strides = array<i32>} : memref<2x8x128xf32, #tpu.memory_space<vmem>>, vector<1x8x128xf32>,
    %c0_63 = arith.constant 0 : index
    %c0_64 = arith.constant 0 : index
    %c0_65 = arith.constant 0 : index
    %169 = vector.load %arg14[%c0_63, %c0_64, %c0_65] : memref<2x8x128xf32, #tpu.memory_space<vmem>>, vector<1x8x128xf32>
    %170 = vector.shape_cast %169 : vector<1x8x128xf32> to vector<8x128xf32>
    %171 = vector.shape_cast %158 : vector<8x128xf32> to vector<1x8x128xf32>
    tpu.vector_store %arg14[%c0_63, %c0_64, %c0_65], %171 {strides = array<i32>} : memref<2x8x128xf32, #tpu.memory_space<vmem>>, vector<1x8x128xf32>,
    %c1 = arith.constant 1 : index
    %c0_66 = arith.constant 0 : index
    %c0_67 = arith.constant 0 : index
    %172 = vector.load %arg4[%c1, %c0_66, %c0_67] : memref<2x128x512xbf16, #tpu.memory_space<vmem>>, vector<1x128x512xbf16>
    %173 = vector.shape_cast %172 : vector<1x128x512xbf16> to vector<128x512xbf16>
    %c1_68 = arith.constant 1 : index
    %c0_69 = arith.constant 0 : index
    %c0_70 = arith.constant 0 : index
    %174 = vector.load %arg5[%c1_68, %c0_69, %c0_70] : memref<2x1x512xf32, #tpu.memory_space<vmem>>, vector<1x1x512xf32>
    %175 = vector.shape_cast %174 : vector<1x1x512xf32> to vector<1x512xf32>
    %c0_71 = arith.constant 0 : index
    %c0_72 = arith.constant 0 : index
    %c0_73 = arith.constant 0 : index
    %176 = vector.load %arg15[%c0_71, %c0_72, %c0_73] : memref<4x8x128xbf16, #tpu.memory_space<vmem>>, vector<4x8x128xbf16>
    %177 = vector.shape_cast %176 : vector<4x8x128xbf16> to vector<32x128xbf16>
    %c1_74 = arith.constant 1 : index
    %c0_75 = arith.constant 0 : index
    %c0_76 = arith.constant 0 : index
    %178 = vector.load %arg3[%c1_74, %c0_75, %c0_76] : memref<2x128x512xbf16, #tpu.memory_space<vmem>>, vector<1x128x512xbf16>
    %179 = vector.shape_cast %178 : vector<1x128x512xbf16> to vector<128x512xbf16>
    %cst_77 = arith.constant dense<0.000000e+00> : vector<32x512xf32>
    %180 = tpu.matmul %177, %179, %cst_77 {dimension_numbers = #tpu.dot_dimension_numbers<[1], [0], [0], [1], [0, 0, 1, 1], [], []>} : vector<32x128xbf16>, vector<128x512xbf16>, vector<32x512xf32> -> vector<32x512xf32>
    %181 = vector.broadcast %175 : vector<1x512xf32> to vector<32x512xf32>
    %182 = arith.addf %180, %181 : vector<32x512xf32>
    %183 = vector.shape_cast %182 : vector<32x512xf32> to vector<4x8x512xf32>
    %c0_78 = arith.constant 0 : index
    %c0_79 = arith.constant 0 : index
    %c0_80 = arith.constant 0 : index
    %184 = vector.load %arg16[%c0_78, %c0_79, %c0_80] : memref<4x8x512xf32, #tpu.memory_space<vmem>>, vector<4x8x512xf32>
    tpu.vector_store %arg16[%c0_78, %c0_79, %c0_80], %183 {strides = array<i32>} : memref<4x8x512xf32, #tpu.memory_space<vmem>>, vector<4x8x512xf32>,
    %c1_81 = arith.constant 1 : index
    %c0_82 = arith.constant 0 : index
    %c0_83 = arith.constant 0 : index
    %185 = vector.load %arg13[%c1_81, %c0_82, %c0_83] : memref<2x8x128xf32, #tpu.memory_space<vmem>>, vector<1x8x128xf32>
    %186 = vector.shape_cast %185 : vector<1x8x128xf32> to vector<8x128xf32>
    %c1_84 = arith.constant 1 : index
    %c0_85 = arith.constant 0 : index
    %c0_86 = arith.constant 0 : index
    %187 = vector.load %arg14[%c1_84, %c0_85, %c0_86] : memref<2x8x128xf32, #tpu.memory_space<vmem>>, vector<1x8x128xf32>
    %188 = vector.shape_cast %187 : vector<1x8x128xf32> to vector<8x128xf32>
    %c0_i32_87 = arith.constant 0 : i32
    %189 = arith.index_cast %c0_i32_87 : i32 to index
    %c0_88 = arith.constant 0 : index
    %c0_89 = arith.constant 0 : index
    %190 = vector.load %arg16[%189, %c0_88, %c0_89] : memref<4x8x512xf32, #tpu.memory_space<vmem>>, vector<1x8x512xf32>
    %191 = vector.shape_cast %190 : vector<1x8x512xf32> to vector<8x512xf32>
    %192 = arith.truncf %186 : vector<8x128xf32> to vector<8x128xbf16>
    %cst_90 = arith.constant dense<0.000000e+00> : vector<8x512xf32>
    %193 = tpu.matmul %192, %173, %cst_90 {dimension_numbers = #tpu.dot_dimension_numbers<[1], [0], [0], [1], [0, 0, 1, 1], [], []>} : vector<8x128xbf16>, vector<128x512xbf16>, vector<8x512xf32> -> vector<8x512xf32>
    %194 = arith.addf %191, %193 : vector<8x512xf32>
    %195 = vector.extract_strided_slice %194 {offsets = [0, 0], sizes = [8, 128], strides = [1, 1]} : vector<8x512xf32> to vector<8x128xf32>
    %196 = arith.negf %195 : vector<8x128xf32>
    %197 = math.exp %196 : vector<8x128xf32>
    %cst_91 = arith.constant 1.000000e+00 : f32
    %198 = vector.broadcast %cst_91 : f32 to vector<8x128xf32>
    %199 = arith.addf %198, %197 : vector<8x128xf32>
    %200 = arith.divf %198, %199 : vector<8x128xf32>
    %201 = vector.extract_strided_slice %194 {offsets = [0, 128], sizes = [8, 128], strides = [1, 1]} : vector<8x512xf32> to vector<8x128xf32>
    %202 = arith.negf %201 : vector<8x128xf32>
    %203 = math.exp %202 : vector<8x128xf32>
    %cst_92 = arith.constant 1.000000e+00 : f32
    %204 = vector.broadcast %cst_92 : f32 to vector<8x128xf32>
    %205 = arith.addf %204, %203 : vector<8x128xf32>
    %206 = arith.divf %204, %205 : vector<8x128xf32>
    %207 = vector.extract_strided_slice %194 {offsets = [0, 256], sizes = [8, 128], strides = [1, 1]} : vector<8x512xf32> to vector<8x128xf32>
    %208 = math.tanh %207 : vector<8x128xf32>
    %209 = vector.extract_strided_slice %194 {offsets = [0, 384], sizes = [8, 128], strides = [1, 1]} : vector<8x512xf32> to vector<8x128xf32>
    %210 = arith.negf %209 : vector<8x128xf32>
    %211 = math.exp %210 : vector<8x128xf32>
    %cst_93 = arith.constant 1.000000e+00 : f32
    %212 = vector.broadcast %cst_93 : f32 to vector<8x128xf32>
    %213 = arith.addf %212, %211 : vector<8x128xf32>
    %214 = arith.divf %212, %213 : vector<8x128xf32>
    %215 = arith.mulf %206, %188 : vector<8x128xf32>
    %216 = arith.mulf %200, %208 : vector<8x128xf32>
    %217 = arith.addf %215, %216 : vector<8x128xf32>
    %218 = math.tanh %217 : vector<8x128xf32>
    %219 = arith.mulf %214, %218 : vector<8x128xf32>
    %220 = arith.truncf %219 : vector<8x128xf32> to vector<8x128xbf16>
    %221 = arith.index_cast %c0_i32_87 : i32 to index
    %c0_94 = arith.constant 0 : index
    %c0_95 = arith.constant 0 : index
    %222 = vector.load %arg15[%221, %c0_94, %c0_95] : memref<4x8x128xbf16, #tpu.memory_space<vmem>>, vector<1x8x128xbf16>
    %223 = vector.shape_cast %222 : vector<1x8x128xbf16> to vector<8x128xbf16>
    %224 = vector.shape_cast %220 : vector<8x128xbf16> to vector<1x8x128xbf16>
    tpu.vector_store %arg15[%221, %c0_94, %c0_95], %224 {strides = array<i32>} : memref<4x8x128xbf16, #tpu.memory_space<vmem>>, vector<1x8x128xbf16>,
    %c1_i32_96 = arith.constant 1 : i32
    %225 = arith.index_cast %c1_i32_96 : i32 to index
    %c0_97 = arith.constant 0 : index
    %c0_98 = arith.constant 0 : index
    %226 = vector.load %arg16[%225, %c0_97, %c0_98] : memref<4x8x512xf32, #tpu.memory_space<vmem>>, vector<1x8x512xf32>
    %227 = vector.shape_cast %226 : vector<1x8x512xf32> to vector<8x512xf32>
    %228 = arith.truncf %219 : vector<8x128xf32> to vector<8x128xbf16>
    %cst_99 = arith.constant dense<0.000000e+00> : vector<8x512xf32>
    %229 = tpu.matmul %228, %173, %cst_99 {dimension_numbers = #tpu.dot_dimension_numbers<[1], [0], [0], [1], [0, 0, 1, 1], [], []>} : vector<8x128xbf16>, vector<128x512xbf16>, vector<8x512xf32> -> vector<8x512xf32>
    %230 = arith.addf %227, %229 : vector<8x512xf32>
    %231 = vector.extract_strided_slice %230 {offsets = [0, 0], sizes = [8, 128], strides = [1, 1]} : vector<8x512xf32> to vector<8x128xf32>
    %232 = arith.negf %231 : vector<8x128xf32>
    %233 = math.exp %232 : vector<8x128xf32>
    %cst_100 = arith.constant 1.000000e+00 : f32
    %234 = vector.broadcast %cst_100 : f32 to vector<8x128xf32>
    %235 = arith.addf %234, %233 : vector<8x128xf32>
    %236 = arith.divf %234, %235 : vector<8x128xf32>
    %237 = vector.extract_strided_slice %230 {offsets = [0, 128], sizes = [8, 128], strides = [1, 1]} : vector<8x512xf32> to vector<8x128xf32>
    %238 = arith.negf %237 : vector<8x128xf32>
    %239 = math.exp %238 : vector<8x128xf32>
    %cst_101 = arith.constant 1.000000e+00 : f32
    %240 = vector.broadcast %cst_101 : f32 to vector<8x128xf32>
    %241 = arith.addf %240, %239 : vector<8x128xf32>
    %242 = arith.divf %240, %241 : vector<8x128xf32>
    %243 = vector.extract_strided_slice %230 {offsets = [0, 256], sizes = [8, 128], strides = [1, 1]} : vector<8x512xf32> to vector<8x128xf32>
    %244 = math.tanh %243 : vector<8x128xf32>
    %245 = vector.extract_strided_slice %230 {offsets = [0, 384], sizes = [8, 128], strides = [1, 1]} : vector<8x512xf32> to vector<8x128xf32>
    %246 = arith.negf %245 : vector<8x128xf32>
    %247 = math.exp %246 : vector<8x128xf32>
    %cst_102 = arith.constant 1.000000e+00 : f32
    %248 = vector.broadcast %cst_102 : f32 to vector<8x128xf32>
    %249 = arith.addf %248, %247 : vector<8x128xf32>
    %250 = arith.divf %248, %249 : vector<8x128xf32>
    %251 = arith.mulf %242, %217 : vector<8x128xf32>
    %252 = arith.mulf %236, %244 : vector<8x128xf32>
    %253 = arith.addf %251, %252 : vector<8x128xf32>
    %254 = math.tanh %253 : vector<8x128xf32>
    %255 = arith.mulf %250, %254 : vector<8x128xf32>
    %256 = arith.truncf %255 : vector<8x128xf32> to vector<8x128xbf16>
    %257 = arith.index_cast %c1_i32_96 : i32 to index
    %c0_103 = arith.constant 0 : index
    %c0_104 = arith.constant 0 : index
    %258 = vector.load %arg15[%257, %c0_103, %c0_104] : memref<4x8x128xbf16, #tpu.memory_space<vmem>>, vector<1x8x128xbf16>
    %259 = vector.shape_cast %258 : vector<1x8x128xbf16> to vector<8x128xbf16>
    %260 = vector.shape_cast %256 : vector<8x128xbf16> to vector<1x8x128xbf16>
    tpu.vector_store %arg15[%257, %c0_103, %c0_104], %260 {strides = array<i32>} : memref<4x8x128xbf16, #tpu.memory_space<vmem>>, vector<1x8x128xbf16>,
    %c2_i32_105 = arith.constant 2 : i32
    %261 = arith.index_cast %c2_i32_105 : i32 to index
    %c0_106 = arith.constant 0 : index
    %c0_107 = arith.constant 0 : index
    %262 = vector.load %arg16[%261, %c0_106, %c0_107] : memref<4x8x512xf32, #tpu.memory_space<vmem>>, vector<1x8x512xf32>
    %263 = vector.shape_cast %262 : vector<1x8x512xf32> to vector<8x512xf32>
    %264 = arith.truncf %255 : vector<8x128xf32> to vector<8x128xbf16>
    %cst_108 = arith.constant dense<0.000000e+00> : vector<8x512xf32>
    %265 = tpu.matmul %264, %173, %cst_108 {dimension_numbers = #tpu.dot_dimension_numbers<[1], [0], [0], [1], [0, 0, 1, 1], [], []>} : vector<8x128xbf16>, vector<128x512xbf16>, vector<8x512xf32> -> vector<8x512xf32>
    %266 = arith.addf %263, %265 : vector<8x512xf32>
    %267 = vector.extract_strided_slice %266 {offsets = [0, 0], sizes = [8, 128], strides = [1, 1]} : vector<8x512xf32> to vector<8x128xf32>
    %268 = arith.negf %267 : vector<8x128xf32>
    %269 = math.exp %268 : vector<8x128xf32>
    %cst_109 = arith.constant 1.000000e+00 : f32
    %270 = vector.broadcast %cst_109 : f32 to vector<8x128xf32>
    %271 = arith.addf %270, %269 : vector<8x128xf32>
    %272 = arith.divf %270, %271 : vector<8x128xf32>
    %273 = vector.extract_strided_slice %266 {offsets = [0, 128], sizes = [8, 128], strides = [1, 1]} : vector<8x512xf32> to vector<8x128xf32>
    %274 = arith.negf %273 : vector<8x128xf32>
    %275 = math.exp %274 : vector<8x128xf32>
    %cst_110 = arith.constant 1.000000e+00 : f32
    %276 = vector.broadcast %cst_110 : f32 to vector<8x128xf32>
    %277 = arith.addf %276, %275 : vector<8x128xf32>
    %278 = arith.divf %276, %277 : vector<8x128xf32>
    %279 = vector.extract_strided_slice %266 {offsets = [0, 256], sizes = [8, 128], strides = [1, 1]} : vector<8x512xf32> to vector<8x128xf32>
    %280 = math.tanh %279 : vector<8x128xf32>
    %281 = vector.extract_strided_slice %266 {offsets = [0, 384], sizes = [8, 128], strides = [1, 1]} : vector<8x512xf32> to vector<8x128xf32>
    %282 = arith.negf %281 : vector<8x128xf32>
    %283 = math.exp %282 : vector<8x128xf32>
    %cst_111 = arith.constant 1.000000e+00 : f32
    %284 = vector.broadcast %cst_111 : f32 to vector<8x128xf32>
    %285 = arith.addf %284, %283 : vector<8x128xf32>
    %286 = arith.divf %284, %285 : vector<8x128xf32>
    %287 = arith.mulf %278, %253 : vector<8x128xf32>
    %288 = arith.mulf %272, %280 : vector<8x128xf32>
    %289 = arith.addf %287, %288 : vector<8x128xf32>
    %290 = math.tanh %289 : vector<8x128xf32>
    %291 = arith.mulf %286, %290 : vector<8x128xf32>
    %292 = arith.truncf %291 : vector<8x128xf32> to vector<8x128xbf16>
    %293 = arith.index_cast %c2_i32_105 : i32 to index
    %c0_112 = arith.constant 0 : index
    %c0_113 = arith.constant 0 : index
    %294 = vector.load %arg15[%293, %c0_112, %c0_113] : memref<4x8x128xbf16, #tpu.memory_space<vmem>>, vector<1x8x128xbf16>
    %295 = vector.shape_cast %294 : vector<1x8x128xbf16> to vector<8x128xbf16>
    %296 = vector.shape_cast %292 : vector<8x128xbf16> to vector<1x8x128xbf16>
    tpu.vector_store %arg15[%293, %c0_112, %c0_113], %296 {strides = array<i32>} : memref<4x8x128xbf16, #tpu.memory_space<vmem>>, vector<1x8x128xbf16>,
    %c3_i32_114 = arith.constant 3 : i32
    %297 = arith.index_cast %c3_i32_114 : i32 to index
    %c0_115 = arith.constant 0 : index
    %c0_116 = arith.constant 0 : index
    %298 = vector.load %arg16[%297, %c0_115, %c0_116] : memref<4x8x512xf32, #tpu.memory_space<vmem>>, vector<1x8x512xf32>
    %299 = vector.shape_cast %298 : vector<1x8x512xf32> to vector<8x512xf32>
    %300 = arith.truncf %291 : vector<8x128xf32> to vector<8x128xbf16>
    %cst_117 = arith.constant dense<0.000000e+00> : vector<8x512xf32>
    %301 = tpu.matmul %300, %173, %cst_117 {dimension_numbers = #tpu.dot_dimension_numbers<[1], [0], [0], [1], [0, 0, 1, 1], [], []>} : vector<8x128xbf16>, vector<128x512xbf16>, vector<8x512xf32> -> vector<8x512xf32>
    %302 = arith.addf %299, %301 : vector<8x512xf32>
    %303 = vector.extract_strided_slice %302 {offsets = [0, 0], sizes = [8, 128], strides = [1, 1]} : vector<8x512xf32> to vector<8x128xf32>
    %304 = arith.negf %303 : vector<8x128xf32>
    %305 = math.exp %304 : vector<8x128xf32>
    %cst_118 = arith.constant 1.000000e+00 : f32
    %306 = vector.broadcast %cst_118 : f32 to vector<8x128xf32>
    %307 = arith.addf %306, %305 : vector<8x128xf32>
    %308 = arith.divf %306, %307 : vector<8x128xf32>
    %309 = vector.extract_strided_slice %302 {offsets = [0, 128], sizes = [8, 128], strides = [1, 1]} : vector<8x512xf32> to vector<8x128xf32>
    %310 = arith.negf %309 : vector<8x128xf32>
    %311 = math.exp %310 : vector<8x128xf32>
    %cst_119 = arith.constant 1.000000e+00 : f32
    %312 = vector.broadcast %cst_119 : f32 to vector<8x128xf32>
    %313 = arith.addf %312, %311 : vector<8x128xf32>
    %314 = arith.divf %312, %313 : vector<8x128xf32>
    %315 = vector.extract_strided_slice %302 {offsets = [0, 256], sizes = [8, 128], strides = [1, 1]} : vector<8x512xf32> to vector<8x128xf32>
    %316 = math.tanh %315 : vector<8x128xf32>
    %317 = vector.extract_strided_slice %302 {offsets = [0, 384], sizes = [8, 128], strides = [1, 1]} : vector<8x512xf32> to vector<8x128xf32>
    %318 = arith.negf %317 : vector<8x128xf32>
    %319 = math.exp %318 : vector<8x128xf32>
    %cst_120 = arith.constant 1.000000e+00 : f32
    %320 = vector.broadcast %cst_120 : f32 to vector<8x128xf32>
    %321 = arith.addf %320, %319 : vector<8x128xf32>
    %322 = arith.divf %320, %321 : vector<8x128xf32>
    %323 = arith.mulf %314, %289 : vector<8x128xf32>
    %324 = arith.mulf %308, %316 : vector<8x128xf32>
    %325 = arith.addf %323, %324 : vector<8x128xf32>
    %326 = math.tanh %325 : vector<8x128xf32>
    %327 = arith.mulf %322, %326 : vector<8x128xf32>
    %328 = arith.truncf %327 : vector<8x128xf32> to vector<8x128xbf16>
    %329 = arith.index_cast %c3_i32_114 : i32 to index
    %c0_121 = arith.constant 0 : index
    %c0_122 = arith.constant 0 : index
    %330 = vector.load %arg15[%329, %c0_121, %c0_122] : memref<4x8x128xbf16, #tpu.memory_space<vmem>>, vector<1x8x128xbf16>
    %331 = vector.shape_cast %330 : vector<1x8x128xbf16> to vector<8x128xbf16>
    %332 = vector.shape_cast %328 : vector<8x128xbf16> to vector<1x8x128xbf16>
    tpu.vector_store %arg15[%329, %c0_121, %c0_122], %332 {strides = array<i32>} : memref<4x8x128xbf16, #tpu.memory_space<vmem>>, vector<1x8x128xbf16>,
    %c4_i32_123 = arith.constant 4 : i32
    %c1_124 = arith.constant 1 : index
    %c0_125 = arith.constant 0 : index
    %c0_126 = arith.constant 0 : index
    %333 = vector.load %arg13[%c1_124, %c0_125, %c0_126] : memref<2x8x128xf32, #tpu.memory_space<vmem>>, vector<1x8x128xf32>
    %334 = vector.shape_cast %333 : vector<1x8x128xf32> to vector<8x128xf32>
    %335 = vector.shape_cast %327 : vector<8x128xf32> to vector<1x8x128xf32>
    tpu.vector_store %arg13[%c1_124, %c0_125, %c0_126], %335 {strides = array<i32>} : memref<2x8x128xf32, #tpu.memory_space<vmem>>, vector<1x8x128xf32>,
    %c1_127 = arith.constant 1 : index
    %c0_128 = arith.constant 0 : index
    %c0_129 = arith.constant 0 : index
    %336 = vector.load %arg14[%c1_127, %c0_128, %c0_129] : memref<2x8x128xf32, #tpu.memory_space<vmem>>, vector<1x8x128xf32>
    %337 = vector.shape_cast %336 : vector<1x8x128xf32> to vector<8x128xf32>
    %338 = vector.shape_cast %325 : vector<8x128xf32> to vector<1x8x128xf32>
    tpu.vector_store %arg14[%c1_127, %c0_128, %c0_129], %338 {strides = array<i32>} : memref<2x8x128xf32, #tpu.memory_space<vmem>>, vector<1x8x128xf32>,
    %c0_130 = arith.constant 0 : index
    %c0_131 = arith.constant 0 : index
    %c0_132 = arith.constant 0 : index
    %339 = vector.load %arg15[%c0_130, %c0_131, %c0_132] : memref<4x8x128xbf16, #tpu.memory_space<vmem>>, vector<4x8x128xbf16>
    %340 = vector.shape_cast %339 : vector<4x8x128xbf16> to vector<32x128xbf16>
    %c0_133 = arith.constant 0 : index
    %c0_134 = arith.constant 0 : index
    %341 = vector.load %arg6[%c0_133, %c0_134] : memref<128x128xbf16, #tpu.memory_space<vmem>>, vector<128x128xbf16>
    %cst_135 = arith.constant dense<0.000000e+00> : vector<32x128xf32>
    %342 = tpu.matmul %340, %341, %cst_135 {dimension_numbers = #tpu.dot_dimension_numbers<[1], [0], [0], [1], [0, 0, 1, 1], [], []>} : vector<32x128xbf16>, vector<128x128xbf16>, vector<32x128xf32> -> vector<32x128xf32>
    %c0_136 = arith.constant 0 : index
    %c0_137 = arith.constant 0 : index
    %343 = vector.load %arg7[%c0_136, %c0_137] : memref<1x128xf32, #tpu.memory_space<vmem>>, vector<1x128xf32>
    %344 = vector.broadcast %343 : vector<1x128xf32> to vector<32x128xf32>
    %345 = arith.addf %342, %344 : vector<32x128xf32>
    %346 = vector.shape_cast %345 : vector<32x128xf32> to vector<4x8x128xf32>
    %c0_138 = arith.constant 0 : index
    %c0_139 = arith.constant 0 : index
    %c0_140 = arith.constant 0 : index
    %347 = vector.load %arg10[%c0_138, %c0_139, %c0_140] : memref<4x8x128xf32, #tpu.memory_space<vmem>>, vector<4x8x128xf32>
    tpu.vector_store %arg10[%c0_138, %c0_139, %c0_140], %346 {strides = array<i32>} : memref<4x8x128xf32, #tpu.memory_space<vmem>>, vector<4x8x128xf32>,
    %c1_i32_141 = arith.constant 1 : i32
    %348 = arith.cmpi eq, %arg1, %c1_i32_141 : i32
    %349 = arith.extui %348 : i1 to i32
    %c0_i32_142 = arith.constant 0 : i32
    %350 = arith.cmpi ne, %349, %c0_i32_142 : i32
    scf.if %350 {
      %c0_143 = arith.constant 0 : index
      %c0_144 = arith.constant 0 : index
      %c0_145 = arith.constant 0 : index
      %351 = vector.load %arg13[%c0_143, %c0_144, %c0_145] : memref<2x8x128xf32, #tpu.memory_space<vmem>>, vector<2x8x128xf32>
      %c0_146 = arith.constant 0 : index
      %c0_147 = arith.constant 0 : index
      %c0_148 = arith.constant 0 : index
      %352 = vector.load %arg11[%c0_146, %c0_147, %c0_148] : memref<2x8x128xf32, #tpu.memory_space<vmem>>, vector<2x8x128xf32>
      tpu.vector_store %arg11[%c0_146, %c0_147, %c0_148], %351 {strides = array<i32>} : memref<2x8x128xf32, #tpu.memory_space<vmem>>, vector<2x8x128xf32>,
      %c0_149 = arith.constant 0 : index
      %c0_150 = arith.constant 0 : index
      %c0_151 = arith.constant 0 : index
      %353 = vector.load %arg14[%c0_149, %c0_150, %c0_151] : memref<2x8x128xf32, #tpu.memory_space<vmem>>, vector<2x8x128xf32>
      %c0_152 = arith.constant 0 : index
      %c0_153 = arith.constant 0 : index
      %c0_154 = arith.constant 0 : index
      %354 = vector.load %arg12[%c0_152, %c0_153, %c0_154] : memref<2x8x128xf32, #tpu.memory_space<vmem>>, vector<2x8x128xf32>
      tpu.vector_store %arg12[%c0_152, %c0_153, %c0_154], %353 {strides = array<i32>} : memref<2x8x128xf32, #tpu.memory_space<vmem>>, vector<2x8x128xf32>,
    } else {
    }
    return
  }
  func.func @transform_0(%arg0: i32, %arg1: i32) -> (i32, i32, i32) {
    %c0_i32 = arith.constant 0 : i32
    %c0_i32_0 = arith.constant 0 : i32
    return %arg1, %arg0, %c0_i32 : i32, i32, i32
  }
  func.func @transform_1(%arg0: i32, %arg1: i32) -> (i32, i32, i32) {
    %c0_i32 = arith.constant 0 : i32
    %c0_i32_0 = arith.constant 0 : i32
    %c0_i32_1 = arith.constant 0 : i32
    %c0_i32_2 = arith.constant 0 : i32
    return %c0_i32, %c0_i32_0, %c0_i32_1 : i32, i32, i32
  }
  func.func @transform_2(%arg0: i32, %arg1: i32) -> (i32, i32, i32) {
    %c0_i32 = arith.constant 0 : i32
    %c0_i32_0 = arith.constant 0 : i32
    %c0_i32_1 = arith.constant 0 : i32
    %c0_i32_2 = arith.constant 0 : i32
    return %c0_i32, %c0_i32_0, %c0_i32_1 : i32, i32, i32
  }
  func.func @transform_3(%arg0: i32, %arg1: i32) -> (i32, i32, i32) {
    %c0_i32 = arith.constant 0 : i32
    %c0_i32_0 = arith.constant 0 : i32
    %c0_i32_1 = arith.constant 0 : i32
    %c0_i32_2 = arith.constant 0 : i32
    return %c0_i32, %c0_i32_0, %c0_i32_1 : i32, i32, i32
  }
  func.func @transform_4(%arg0: i32, %arg1: i32) -> (i32, i32) {
    %c0_i32 = arith.constant 0 : i32
    %c0_i32_0 = arith.constant 0 : i32
    %c0_i32_1 = arith.constant 0 : i32
    return %c0_i32, %c0_i32_0 : i32, i32
  }
  func.func @transform_5(%arg0: i32, %arg1: i32) -> (i32, i32) {
    %c0_i32 = arith.constant 0 : i32
    %c0_i32_0 = arith.constant 0 : i32
    %c0_i32_1 = arith.constant 0 : i32
    return %c0_i32, %c0_i32_0 : i32, i32
  }
  func.func @transform_6(%arg0: i32, %arg1: i32) -> (i32, i32, i32) {
    %c0_i32 = arith.constant 0 : i32
    %c0_i32_0 = arith.constant 0 : i32
    %c0_i32_1 = arith.constant 0 : i32
    return %c0_i32, %arg0, %c0_i32_0 : i32, i32, i32
  }
  func.func @transform_7(%arg0: i32, %arg1: i32) -> (i32, i32, i32) {
    %c0_i32 = arith.constant 0 : i32
    %c0_i32_0 = arith.constant 0 : i32
    %c0_i32_1 = arith.constant 0 : i32
    return %c0_i32, %arg0, %c0_i32_0 : i32, i32, i32
  }
  func.func @transform_8(%arg0: i32, %arg1: i32) -> (i32, i32, i32) {
    %c0_i32 = arith.constant 0 : i32
    %c0_i32_0 = arith.constant 0 : i32
    return %arg1, %arg0, %c0_i32 : i32, i32, i32
  }
  func.func @transform_9(%arg0: i32, %arg1: i32) -> (i32, i32, i32) {
    %c0_i32 = arith.constant 0 : i32
    %c0_i32_0 = arith.constant 0 : i32
    %c0_i32_1 = arith.constant 0 : i32
    return %c0_i32, %arg0, %c0_i32_0 : i32, i32, i32
  }
  func.func @transform_10(%arg0: i32, %arg1: i32) -> (i32, i32, i32) {
    %c0_i32 = arith.constant 0 : i32
    %c0_i32_0 = arith.constant 0 : i32
    %c0_i32_1 = arith.constant 0 : i32
    return %c0_i32, %arg0, %c0_i32_0 : i32, i32, i32
  }
}

</mosaic_0001>

<llo_original>
// kernel: char_lstm_forward.1
$region0: #{char_lstm_forward.1}
  #allocation0 [shape = 'u32[]', space=smem, size = 0x4, offset = 0x4, fixed_abs, tag = 'smem constant byte address 0x4 - core index']
  #allocation1 [shape = 'u32[72,128]{1,0:T(1,128)}', space=vmem, size = 0x9000, scoped, tag = 'internal scratch']
  #allocation2 [shape = 'f32[2,8,128]{2,1,0:T(8,128)}', space=vmem, size = 0x2000, scoped, tag = 'scratch operand']
  #allocation3 [shape = 'f32[2,8,128]{2,1,0:T(8,128)}', space=vmem, size = 0x2000, scoped, tag = 'scratch operand']
  #allocation4 [shape = 'bf16[4,8,128]{2,1,0:T(8,128)(2,1)}', space=vmem, size = 0x2000, scoped, tag = 'scratch operand']
  #allocation5 [shape = 'f32[4,8,512]{2,1,0:T(8,128)}', space=vmem, size = 0x10000, scoped, tag = 'scratch operand']
  %s0 = inlined_call_operand.vmem [shape: bf16[8,8,128], index: 0, kind: input, shape index: {}]
  %s1 = inlined_call_operand.hbm [shape: bf16[2,128,512], index: 1, kind: input, shape index: {}]
  %s2 = inlined_call_operand.hbm [shape: bf16[2,128,512], index: 2, kind: input, shape index: {}]
  %s3 = inlined_call_operand.vmem [shape: f32[2,1,512], index: 3, kind: input, shape index: {}]
  %s4 = inlined_call_operand.vmem [shape: bf16[128,128], index: 4, kind: input, shape index: {}]
  %s5 = inlined_call_operand.vmem [shape: f32[1,128], index: 5, kind: input, shape index: {}]
  %s6 = inlined_call_operand.vmem [shape: f32[2,8,128], index: 6, kind: input, shape index: {}]
  %s7 = inlined_call_operand.vmem [shape: f32[2,8,128], index: 7, kind: input, shape index: {}]
  %s8 = inlined_call_operand.vmem [shape: f32[8,8,128], index: 8, kind: output, shape index: {0}]
  %s9 = inlined_call_operand.vmem [shape: f32[2,8,128], index: 9, kind: output, shape index: {1}]
  %s10 = inlined_call_operand.vmem [shape: f32[2,8,128], index: 10, kind: output, shape index: {2}]
  %11 = xla_tuple %s8, %s9, %s10
  %s12 = sld [smem:[#allocation0]]
  $region97: #{char_lstm_forward.1} parent=0
    _
  %s14 = ssub.s32 1, %s12
  %s15 = scalar_select 0, %s14, %s12
  $region1: #{char_lstm_forward.1} parent=0
    #allocation6 [shape = 'u8[262144]{0}', space=vmem, size = 0x40000, scoped, tag = 'input window, operand 1, single buffered']
    #allocation7 [shape = 's32[2]{0}', space=sflag, size = 0x8, scoped, tag = 'scoped memory for char_lstm_forward.1']
    #allocation8 [shape = 'u8[262144]{0}', space=vmem, size = 0x40000, scoped, tag = 'input window, operand 2, single buffered']
    #allocation9 [shape = 's32[1]{0}', space=sflag, size = 0x4, scoped, tag = 'scoped memory for char_lstm_forward.1']
    %16 = vsyncpa [#allocation7], 0
    %17 = vsyncpa [#allocation9], 0
    loop: start=0, step=1, limit=4
    $region2: #{char_lstm_forward.1} parent=1 // loop_pre_header
      _
    $region3: #{char_lstm_forward.1} parent=1 // loop_header
      %s19 = sphi 0, %s23
      %p20 = scmp.ge.s32.totalorder %s19, 4
      %s26 = sphi 0, %s38
      %s27 = sphi 0, %s34
      %s28 = sphi 0, %s26
      %s29 = sphi 0, %s27
      %s30 = sphi 0, %s28
      %s31 = sphi 0, %s29
      %s43 = sphi 0, %s45
      %s46 = sphi 0, %s43
      %s47 = sphi 0, %s46
      %s63 = sphi 0, %s47
      %s67 = sphi 0, %s67
      %s69 = sphi 0, %s67
      %s70 = sphi 0, %s69
      %s84 = sphi 0, %s70
      %s88 = sphi 0, %s88
      %s90 = sphi 0, %s88
      %s91 = sphi 0, %s90
      %s105 = sphi 0, %s91
      %s109 = sphi 0, %s109
      %s111 = sphi 0, %s109
      %s112 = sphi 0, %s111
      %s126 = sphi 0, %s112
      %s130 = sphi 0, %s130
      %s132 = sphi 0, %s130
      %s133 = sphi 0, %s132
      %s147 = sphi 0, %s133
      %s151 = sphi 0, %s151
      %s153 = sphi 0, %s151
      %s154 = sphi 0, %s153
      %s168 = sphi 0, %s154
      %s174 = sphi 0, %s176
      %s177 = sphi 0, %s174
      %s178 = sphi 0, %s177
      %s194 = sphi 0, %s178
      %s200 = sphi 0, %s202
      %s203 = sphi 0, %s200
      %s204 = sphi 0, %s203
      %s220 = sphi 0, %s204
      %s228 = sphi 0, %s230
      %s231 = sphi 0, %s228
      %s232 = sphi 0, %s231
      %s248 = sphi 0, %s232
      %s254 = sphi 0, %s256
      %s257 = sphi 0, %s254
      %s258 = sphi 0, %s257
      %s274 = sphi 0, %s258
      %s280 = sphi 0, %s282
      %s283 = sphi 0, %s280
      %s284 = sphi 0, %s283
      %s300 = sphi 0, %s284
    $region4: #{char_lstm_forward.1} parent=1 // loop_header_branch
      %22 = sbr.rel (%p20) target = $region8
    $region5: #{char_lstm_forward.1} parent=1 // loop_body
      %s24 = ssub.s32 %s19, 1
      %s25 = ssub.s32 %s19, 2
      %s32 = sadd.s32 1, %s27
      %p33 = scmp.ge.s32.totalorder %s32, 2
      %s34 = scalar_select %p33, 0, %s32
      %s35 = sadd.s32 1, %s26
      %s36 = scalar_select %p33, %s35, %s26
      %p37 = scmp.ge.s32.totalorder %s36, 1
      %s38 = scalar_select %p37, 0, %s36
      %s39 = ssub.s32 %s27, %s34
      %s40 = ssub.s32 %s26, %s38
      %s41 = sor.u32 %s39, %s40
      %p42 = scmp.eq.s32.totalorder %s41, 0
      %s44 = sadd.s32 %s43, 1
      %s45 = scalar_select %p42, %s43, %s44
      %p48 = pneg %p42
      %p49 = scmp.eq.s32.totalorder %s19, 1
      %p50 = por %p48, %p49
      %p51 = scmp.ne.s32.totalorder %s43, %s46
      %p52 = scmp.eq.s32.totalorder %s19, 0
      %p53 = por %p51, %p52
      %p54 = scmp.ne.s32.totalorder %s43, %s46
      %p55 = scmp.eq.s32.totalorder %s24, 1
      %p56 = por %p54, %p55
      %p57 = scmp.ne.s32.totalorder %s46, %s47
      %p58 = scmp.eq.s32.totalorder %s24, 0
      %p59 = por %p57, %p58
      %p60 = scmp.ne.s32.totalorder %s46, %s47
      %p61 = scmp.eq.s32.totalorder %s25, 1
      %p62 = por %p60, %p61
      %p64 = scmp.ne.s32.totalorder %s47, %s63
      %p65 = scmp.eq.s32.totalorder %s25, 0
      %p66 = por %p64, %p65
      %s68 = sadd.s32 %s67, 1
      %p71 = scmp.eq.s32.totalorder %s19, 1
      %p72 = scmp.ne.s32.totalorder %s67, %s69
      %p73 = scmp.eq.s32.totalorder %s19, 0
      %p74 = por %p72, %p73
      %p75 = scmp.ne.s32.totalorder %s67, %s69
      %p76 = scmp.eq.s32.totalorder %s24, 1
      %p77 = por %p75, %p76
      %p78 = scmp.ne.s32.totalorder %s69, %s70
      %p79 = scmp.eq.s32.totalorder %s24, 0
      %p80 = por %p78, %p79
      %p81 = scmp.ne.s32.totalorder %s69, %s70
      %p82 = scmp.eq.s32.totalorder %s25, 1
      %p83 = por %p81, %p82
      %p85 = scmp.ne.s32.totalorder %s70, %s84
      %p86 = scmp.eq.s32.totalorder %s25, 0
      %p87 = por %p85, %p86
      %s89 = sadd.s32 %s88, 1
      %p92 = scmp.eq.s32.totalorder %s19, 1
      %p93 = scmp.ne.s32.totalorder %s88, %s90
      %p94 = scmp.eq.s32.totalorder %s19, 0
      %p95 = por %p93, %p94
      %p96 = scmp.ne.s32.totalorder %s88, %s90
      %p97 = scmp.eq.s32.totalorder %s24, 1
      %p98 = por %p96, %p97
      %p99 = scmp.ne.s32.totalorder %s90, %s91
      %p100 = scmp.eq.s32.totalorder %s24, 0
      %p101 = por %p99, %p100
      %p102 = scmp.ne.s32.totalorder %s90, %s91
      %p103 = scmp.eq.s32.totalorder %s25, 1
      %p104 = por %p102, %p103
      %p106 = scmp.ne.s32.totalorder %s91, %s105
      %p107 = scmp.eq.s32.totalorder %s25, 0
      %p108 = por %p106, %p107
      %s110 = sadd.s32 %s109, 1
      %p113 = scmp.eq.s32.totalorder %s19, 1
      %p114 = scmp.ne.s32.totalorder %s109, %s111
      %p115 = scmp.eq.s32.totalorder %s19, 0
      %p116 = por %p114, %p115
      %p117 = scmp.ne.s32.totalorder %s109, %s111
      %p118 = scmp.eq.s32.totalorder %s24, 1
      %p119 = por %p117, %p118
      %p120 = scmp.ne.s32.totalorder %s111, %s112
      %p121 = scmp.eq.s32.totalorder %s24, 0
      %p122 = por %p120, %p121
      %p123 = scmp.ne.s32.totalorder %s111, %s112
      %p124 = scmp.eq.s32.totalorder %s25, 1
      %p125 = por %p123, %p124
      %p127 = scmp.ne.s32.totalorder %s112, %s126
      %p128 = scmp.eq.s32.totalorder %s25, 0
      %p129 = por %p127, %p128
      %s131 = sadd.s32 %s130, 1
      %p134 = scmp.eq.s32.totalorder %s19, 1
      %p135 = scmp.ne.s32.totalorder %s130, %s132
      %p136 = scmp.eq.s32.totalorder %s19, 0
      %p137 = por %p135, %p136
      %p138 = scmp.ne.s32.totalorder %s130, %s132
      %p139 = scmp.eq.s32.totalorder %s24, 1
      %p140 = por %p138, %p139
      %p141 = scmp.ne.s32.totalorder %s132, %s133
      %p142 = scmp.eq.s32.totalorder %s24, 0
      %p143 = por %p141, %p142
      %p144 = scmp.ne.s32.totalorder %s132, %s133
      %p145 = scmp.eq.s32.totalorder %s25, 1
      %p146 = por %p144, %p145
      %p148 = scmp.ne.s32.totalorder %s133, %s147
      %p149 = scmp.eq.s32.totalorder %s25, 0
      %p150 = por %p148, %p149
      %s152 = sadd.s32 %s151, 1
      %p155 = scmp.eq.s32.totalorder %s19, 1
      %p156 = scmp.ne.s32.totalorder %s151, %s153
      %p157 = scmp.eq.s32.totalorder %s19, 0
      %p158 = por %p156, %p157
      %p159 = scmp.ne.s32.totalorder %s151, %s153
      %p160 = scmp.eq.s32.totalorder %s24, 1
      %p161 = por %p159, %p160
      %p162 = scmp.ne.s32.totalorder %s153, %s154
      %p163 = scmp.eq.s32.totalorder %s24, 0
      %p164 = por %p162, %p163
      %p165 = scmp.ne.s32.totalorder %s153, %s154
      %p166 = scmp.eq.s32.totalorder %s25, 1
      %p167 = por %p165, %p166
      %p169 = scmp.ne.s32.totalorder %s154, %s168
      %p170 = scmp.eq.s32.totalorder %s25, 0
      %p171 = por %p169, %p170
      %s172 = ssub.s32 %s26, %s38
      %p173 = scmp.eq.s32.totalorder %s172, 0
      %s175 = sadd.s32 %s174, 1
      %s176 = scalar_select %p173, %s174, %s175
      %p179 = pneg %p173
      %p180 = scmp.eq.s32.totalorder %s19, 1
      %p181 = por %p179, %p180
      %p182 = scmp.ne.s32.totalorder %s174, %s177
      %p183 = scmp.eq.s32.totalorder %s19, 0
      %p184 = por %p182, %p183
      %p185 = scmp.ne.s32.totalorder %s174, %s177
      %p186 = scmp.eq.s32.totalorder %s24, 1
      %p187 = por %p185, %p186
      %p188 = scmp.ne.s32.totalorder %s177, %s178
      %p189 = scmp.eq.s32.totalorder %s24, 0
      %p190 = por %p188, %p189
      %p191 = scmp.ne.s32.totalorder %s177, %s178
      %p192 = scmp.eq.s32.totalorder %s25, 1
      %p193 = por %p191, %p192
      %p195 = scmp.ne.s32.totalorder %s178, %s194
      %p196 = scmp.eq.s32.totalorder %s25, 0
      %p197 = por %p195, %p196
      %s198 = ssub.s32 %s26, %s38
      %p199 = scmp.eq.s32.totalorder %s198, 0
      %s201 = sadd.s32 %s200, 1
      %s202 = scalar_select %p199, %s200, %s201
      %p205 = pneg %p199
      %p206 = scmp.eq.s32.totalorder %s19, 1
      %p207 = por %p205, %p206
      %p208 = scmp.ne.s32.totalorder %s200, %s203
      %p209 = scmp.eq.s32.totalorder %s19, 0
      %p210 = por %p208, %p209
      %p211 = scmp.ne.s32.totalorder %s200, %s203
      %p212 = scmp.eq.s32.totalorder %s24, 1
      %p213 = por %p211, %p212
      %p214 = scmp.ne.s32.totalorder %s203, %s204
      %p215 = scmp.eq.s32.totalorder %s24, 0
      %p216 = por %p214, %p215
      %p217 = scmp.ne.s32.totalorder %s203, %s204
      %p218 = scmp.eq.s32.totalorder %s25, 1
      %p219 = por %p217, %p218
      %p221 = scmp.ne.s32.totalorder %s204, %s220
      %p222 = scmp.eq.s32.totalorder %s25, 0
      %p223 = por %p221, %p222
      %s224 = ssub.s32 %s27, %s34
      %s225 = ssub.s32 %s26, %s38
      %s226 = sor.u32 %s224, %s225
      %p227 = scmp.eq.s32.totalorder %s226, 0
      %s229 = sadd.s32 %s228, 1
      %s230 = scalar_select %p227, %s228, %s229
      %p233 = pneg %p227
      %p234 = scmp.eq.s32.totalorder %s19, 1
      %p235 = por %p233, %p234
      %p236 = scmp.ne.s32.totalorder %s228, %s231
      %p237 = scmp.eq.s32.totalorder %s19, 0
      %p238 = por %p236, %p237
      %p239 = scmp.ne.s32.totalorder %s228, %s231
      %p240 = scmp.eq.s32.totalorder %s24, 1
      %p241 = por %p239, %p240
      %p242 = scmp.ne.s32.totalorder %s231, %s232
      %p243 = scmp.eq.s32.totalorder %s24, 0
      %p244 = por %p242, %p243
      %p245 = scmp.ne.s32.totalorder %s231, %s232
      %p246 = scmp.eq.s32.totalorder %s25, 1
      %p247 = por %p245, %p246
      %p249 = scmp.ne.s32.totalorder %s232, %s248
      %p250 = scmp.eq.s32.totalorder %s25, 0
      %p251 = por %p249, %p250
      %s252 = ssub.s32 %s26, %s38
      %p253 = scmp.eq.s32.totalorder %s252, 0
      %s255 = sadd.s32 %s254, 1
      %s256 = scalar_select %p253, %s254, %s255
      %p259 = pneg %p253
      %p260 = scmp.eq.s32.totalorder %s19, 1
      %p261 = por %p259, %p260
      %p262 = scmp.ne.s32.totalorder %s254, %s257
      %p263 = scmp.eq.s32.totalorder %s19, 0
      %p264 = por %p262, %p263
      %p265 = scmp.ne.s32.totalorder %s254, %s257
      %p266 = scmp.eq.s32.totalorder %s24, 1
      %p267 = por %p265, %p266
      %p268 = scmp.ne.s32.totalorder %s257, %s258
      %p269 = scmp.eq.s32.totalorder %s24, 0
      %p270 = por %p268, %p269
      %p271 = scmp.ne.s32.totalorder %s257, %s258
      %p272 = scmp.eq.s32.totalorder %s25, 1
      %p273 = por %p271, %p272
      %p275 = scmp.ne.s32.totalorder %s258, %s274
      %p276 = scmp.eq.s32.totalorder %s25, 0
      %p277 = por %p275, %p276
      %s278 = ssub.s32 %s26, %s38
      %p279 = scmp.eq.s32.totalorder %s278, 0
      %s281 = sadd.s32 %s280, 1
      %s282 = scalar_select %p279, %s280, %s281
      %p285 = pneg %p279
      %p286 = scmp.eq.s32.totalorder %s19, 1
      %p287 = por %p285, %p286
      %p288 = scmp.ne.s32.totalorder %s280, %s283
      %p289 = scmp.eq.s32.totalorder %s19, 0
      %p290 = por %p288, %p289
      %p291 = scmp.ne.s32.totalorder %s280, %s283
      %p292 = scmp.eq.s32.totalorder %s24, 1
      %p293 = por %p291, %p292
      %p294 = scmp.ne.s32.totalorder %s283, %s284
      %p295 = scmp.eq.s32.totalorder %s24, 0
      %p296 = por %p294, %p295
      %p297 = scmp.ne.s32.totalorder %s283, %s284
      %p298 = scmp.eq.s32.totalorder %s25, 1
      %p299 = por %p297, %p298
      %p301 = scmp.ne.s32.totalorder %s284, %s300
      %p302 = scmp.eq.s32.totalorder %s25, 0
      %p303 = por %p301, %p302
      %p304 = scmp.le.s32.totalorder 1, %s19
      %p305 = scmp.lt.s32.totalorder %s19, 3
      %p306 = pnand %p304, %p305
      %p307 = pneg %p306
      // Predicated region
      $region9: #{char_lstm_forward.1} parent=5 // pred_check
        _
      $region10: #{char_lstm_forward.1} parent=5 // pred_check_branch
        %309 = sbr.rel (%p306) target = $region12
      $region11: #{char_lstm_forward.1} parent=5 // pred_region
        %s310 = ssub.s32 %s19, 1
        // Predicated region
        $region13: #{char_lstm_forward.1} parent=11 // pred_check
          %p311 = pneg %p80
        $region14: #{char_lstm_forward.1} parent=11 // pred_check_branch
          %313 = sbr.rel (%p311) target = $region16
        $region15: #{char_lstm_forward.1} parent=11 // pred_region
          %315 = vsyncadd [#allocation7], 0
          %s316 = sshll.u32 %s1, 4
          %s317 = int_to_ptr.hbm [resolvable:$true] %s316
          %s318 = sshll.u32 [#allocation6], 4
          %s319 = int_to_ptr.vmem [resolvable:$true] %s318
          %324 = dma.hbm_to_vmem [thread:$0]  %s317, 8192, %s319, [#allocation7], 256, 256, 16
        $region16: #{char_lstm_forward.1} parent=11 // pred_fallthru
          _
        // Predicated region
        $region17: #{char_lstm_forward.1} parent=11 // pred_check
          %p325 = pneg %p101
        $region18: #{char_lstm_forward.1} parent=11 // pred_check_branch
          %327 = sbr.rel (%p325) target = $region20
        $region19: #{char_lstm_forward.1} parent=11 // pred_region
          %329 = vsyncadd [#allocation9], 0
          %s330 = sshll.u32 %s2, 4
          %s331 = int_to_ptr.hbm [resolvable:$true] %s330
          %s332 = sshll.u32 [#allocation8], 4
          %s333 = int_to_ptr.vmem [resolvable:$true] %s332
          %338 = dma.hbm_to_vmem [thread:$0]  %s331, 8192, %s333, [#allocation9], 256, 256, 16
        $region20: #{char_lstm_forward.1} parent=11 // pred_fallthru
          _
        // Predicated region
        $region21: #{char_lstm_forward.1} parent=11 // pred_check
          %p339 = pneg %p122
        $region22: #{char_lstm_forward.1} parent=11 // pred_check_branch
          %341 = sbr.rel (%p339) target = $region24
        $region23: #{char_lstm_forward.1} parent=11 // pred_region
          _
        $region24: #{char_lstm_forward.1} parent=11 // pred_fallthru
          _
        // Predicated region
        $region25: #{char_lstm_forward.1} parent=11 // pred_check
          %p342 = pneg %p143
        $region26: #{char_lstm_forward.1} parent=11 // pred_check_branch
          %344 = sbr.rel (%p342) target = $region28
        $region27: #{char_lstm_forward.1} parent=11 // pred_region
          _
        $region28: #{char_lstm_forward.1} parent=11 // pred_fallthru
          _
        // Predicated region
        $region29: #{char_lstm_forward.1} parent=11 // pred_check
          %p345 = pneg %p164
        $region30: #{char_lstm_forward.1} parent=11 // pred_check_branch
          %347 = sbr.rel (%p345) target = $region32
        $region31: #{char_lstm_forward.1} parent=11 // pred_region
          _
        $region32: #{char_lstm_forward.1} parent=11 // pred_fallthru
          _
        // Predicated region
        $region33: #{char_lstm_forward.1} parent=11 // pred_check
          %p348 = pneg %p190
        $region34: #{char_lstm_forward.1} parent=11 // pred_check_branch
          %350 = sbr.rel (%p348) target = $region36
        $region35: #{char_lstm_forward.1} parent=11 // pred_region
          %p351 = scmp.lt.s32.totalorder %s28, 0
          %s352 = scalar_select %p351, %s28, 0
          %s353 = smul.addr %s352, 8
          %s354 = scalar_lea.vmem %s6, %s353
        $region36: #{char_lstm_forward.1} parent=11 // pred_fallthru
          _
        // Predicated region
        $region37: #{char_lstm_forward.1} parent=11 // pred_check
          %p355 = pneg %p216
        $region38: #{char_lstm_forward.1} parent=11 // pred_check_branch
          %357 = sbr.rel (%p355) target = $region40
        $region39: #{char_lstm_forward.1} parent=11 // pred_region
          %p358 = scmp.lt.s32.totalorder %s28, 0
          %s359 = scalar_select %p358, %s28, 0
          %s360 = smul.addr %s359, 8
          %s361 = scalar_lea.vmem %s7, %s360
        $region40: #{char_lstm_forward.1} parent=11 // pred_fallthru
          _
      $region12: #{char_lstm_forward.1} parent=5 // pred_fallthru
        _
      %p362 = scmp.lt.s32.totalorder %s19, 2
      // Predicated region
      $region41: #{char_lstm_forward.1} parent=5 // pred_check
        %p363 = pneg %p362
      $region42: #{char_lstm_forward.1} parent=5 // pred_check_branch
        %365 = sbr.rel (%p363) target = $region44
      $region43: #{char_lstm_forward.1} parent=5 // pred_region
        // Predicated region
        $region45: #{char_lstm_forward.1} parent=43 // pred_check
          %p366 = pneg %p53
        $region46: #{char_lstm_forward.1} parent=43 // pred_check_branch
          %368 = sbr.rel (%p366) target = $region48
        $region47: #{char_lstm_forward.1} parent=43 // pred_region
          %s369 = smul.u32 4, %s27
          %p370 = scmp.lt.s32.totalorder %s369, 7
          %s371 = scalar_select %p370, %s369, 7
          %p372 = scmp.lt.s32.totalorder %s26, 0
          %s373 = scalar_select %p372, %s26, 0
          %s374 = sadd.s32 %s373, %s371
          %s375 = smul.addr %s374, 4
          %s376 = scalar_lea.vmem %s0, %s375
          %s377 = smul.u32 4, %s27
        $region48: #{char_lstm_forward.1} parent=43 // pred_fallthru
          _
      $region44: #{char_lstm_forward.1} parent=5 // pred_fallthru
        _
      %p378 = scmp.le.s32.totalorder 1, %s19
      %p379 = scmp.lt.s32.totalorder %s19, 3
      %p380 = pnand %p378, %p379
      %p381 = pneg %p380
      // Predicated region
      $region49: #{char_lstm_forward.1} parent=5 // pred_check
        _
      $region50: #{char_lstm_forward.1} parent=5 // pred_check_branch
        %383 = sbr.rel (%p380) target = $region52
      $region51: #{char_lstm_forward.1} parent=5 // pred_region
        %s384 = ssub.s32 %s19, 1
        // Predicated region
        $region53: #{char_lstm_forward.1} parent=51 // pred_check
          %p385 = pneg %p80
        $region54: #{char_lstm_forward.1} parent=51 // pred_check_branch
          %387 = sbr.rel (%p385) target = $region56
        $region55: #{char_lstm_forward.1} parent=51 // pred_region
          %389 = dma.done [#allocation7], 8192
        $region56: #{char_lstm_forward.1} parent=51 // pred_fallthru
          _
        // Predicated region
        $region57: #{char_lstm_forward.1} parent=51 // pred_check
          %p390 = pneg %p101
        $region58: #{char_lstm_forward.1} parent=51 // pred_check_branch
          %392 = sbr.rel (%p390) target = $region60
        $region59: #{char_lstm_forward.1} parent=51 // pred_region
          %394 = dma.done [#allocation9], 8192
        $region60: #{char_lstm_forward.1} parent=51 // pred_fallthru
          _
        %s395 = smul.u32 4, %s29
        %p396 = scmp.lt.s32.totalorder %s395, 7
        %s397 = scalar_select %p396, %s395, 7
        %p398 = scmp.lt.s32.totalorder %s28, 0
        %s399 = scalar_select %p398, %s28, 0
        %s400 = sadd.s32 %s399, %s397
        %s401 = smul.addr %s400, 4
        %s402 = scalar_lea.vmem %s0, %s401
        %p403 = pneg %p59
        %p404 = pneg %p56
        %p405 = pneg %p80
        %p406 = pneg %p77
        %p407 = pneg %p101
        %p408 = pneg %p98
        %p409 = pneg %p122
        %p410 = pneg %p119
        %p411 = pneg %p143
        %p412 = pneg %p140
        %p413 = pneg %p164
        %p414 = pneg %p161
        %p415 = scmp.lt.s32.totalorder %s28, 0
        %s416 = scalar_select %p415, %s28, 0
        %s417 = smul.addr %s416, 8
        %s418 = scalar_lea.vmem %s6, %s417
        %p419 = pneg %p190
        %p420 = pneg %p187
        %p421 = scmp.lt.s32.totalorder %s28, 0
        %s422 = scalar_select %p421, %s28, 0
        %s423 = smul.addr %s422, 8
        %s424 = scalar_lea.vmem %s7, %s423
        %p425 = pneg %p216
        %p426 = pneg %p213
        %p427 = pneg %p244
        %p428 = pneg %p241
        %s429 = smul.u32 4, %s29
        %p430 = scmp.lt.s32.totalorder %s429, 7
        %s431 = scalar_select %p430, %s429, 7
        %p432 = scmp.lt.s32.totalorder %s28, 0
        %s433 = scalar_select %p432, %s28, 0
        %s434 = sadd.s32 %s433, %s431
        %s435 = smul.addr %s434, 8
        %s436 = scalar_lea.vmem %s8, %s435
        %p437 = pneg %p270
        %p438 = pneg %p267
        %p439 = scmp.lt.s32.totalorder %s28, 0
        %s440 = scalar_select %p439, %s28, 0
        %s441 = smul.addr %s440, 8
        %s442 = scalar_lea.vmem %s9, %s441
        %p443 = pneg %p296
        %p444 = pneg %p293
        %p445 = scmp.lt.s32.totalorder %s28, 0
        %s446 = scalar_select %p445, %s28, 0
        %s447 = smul.addr %s446, 8
        %s448 = scalar_lea.vmem %s10, %s447
        %s449 = smul.u32 4, %s29
        %p450 = scmp.lt.s32.totalorder %s449, 7
        %s451 = scalar_select %p450, %s449, 7
        %p452 = scmp.lt.s32.totalorder %s28, 0
        %s453 = scalar_select %p452, %s28, 0
        %s454 = sadd.s32 %s453, %s451
        %s455 = smul.addr %s454, 4
        %s456 = scalar_lea.vmem %s0, %s455
        %s457 = smul.u32 4, %s29
        %p458 = scmp.lt.s32.totalorder %s28, 0
        %s459 = scalar_select %p458, %s28, 0
        %s460 = smul.addr %s459, 8
        %s461 = scalar_lea.vmem %s6, %s460
        %p462 = scmp.lt.s32.totalorder %s28, 0
        %s463 = scalar_select %p462, %s28, 0
        %s464 = smul.addr %s463, 8
        %s465 = scalar_lea.vmem %s7, %s464
        %s466 = smul.u32 4, %s29
        %p467 = scmp.lt.s32.totalorder %s466, 7
        %s468 = scalar_select %p467, %s466, 7
        %p469 = scmp.lt.s32.totalorder %s28, 0
        %s470 = scalar_select %p469, %s28, 0
        %s471 = sadd.s32 %s470, %s468
        %s472 = smul.addr %s471, 8
        %s473 = scalar_lea.vmem %s8, %s472
        %s474 = smul.u32 4, %s29
        %p475 = scmp.lt.s32.totalorder %s28, 0
        %s476 = scalar_select %p475, %s28, 0
        %s477 = smul.addr %s476, 8
        %s478 = scalar_lea.vmem %s9, %s477
        %p479 = scmp.lt.s32.totalorder %s28, 0
        %s480 = scalar_select %p479, %s28, 0
        %s481 = smul.addr %s480, 8
        %s482 = scalar_lea.vmem %s10, %s481
        %p483 = scmp.eq.s32.totalorder %s29, 0
        // Predicated region
        $region61: #{char_lstm_forward.1} parent=51 // pred_check
          %p484 = pneg %p483
        $region62: #{char_lstm_forward.1} parent=51 // pred_check_branch
          %486 = sbr.rel (%p484) target = $region64
        $region63: #{char_lstm_forward.1} parent=51 // pred_region
          %v487 = vld [vmem:[%s461] sm:$0xff]
          %v488 = vld [vmem:[%s461 + $0x8] sm:$0xff]
          %489 = vst [vmem:[#allocation2] sm:$0xff] %v487
          %490 = vst [vmem:[#allocation2 + $0x8] sm:$0xff] %v488
          %v491 = vld [vmem:[%s465] sm:$0xff]
          %v492 = vld [vmem:[%s465 + $0x8] sm:$0xff]
          %493 = vst [vmem:[#allocation3] sm:$0xff] %v491
          %494 = vst [vmem:[#allocation3 + $0x8] sm:$0xff] %v492
        $region64: #{char_lstm_forward.1} parent=51 // pred_fallthru
          _
        %v495 = vld [vmem:[%s456] sm:$0xf]
        %v496 = vld [vmem:[%s456 + $0x4] sm:$0xf]
        %v497 = vld [vmem:[%s456 + $0x8] sm:$0xf]
        %v498 = vld [vmem:[%s456 + $0xc] sm:$0xf]
        %499 = vst [vmem:[#allocation4] sm:$0xf] %v495
        %500 = vst [vmem:[#allocation4 + $0x4] sm:$0xf] %v496
        %501 = vst [vmem:[#allocation4 + $0x8] sm:$0xf] %v497
        %502 = vst [vmem:[#allocation4 + $0xc] sm:$0xf] %v498
        %v503 = vld [vmem:[#allocation8] sm:$0xff]
        %v504 = vld [vmem:[#allocation8 + $0x8] sm:$0xff]
        %v505 = vld [vmem:[#allocation8 + $0x10] sm:$0xff]
        %v506 = vld [vmem:[#allocation8 + $0x18] sm:$0xff]
        %v507 = vld [vmem:[#allocation8 + $0x20] sm:$0xff]
        %v508 = vld [vmem:[#allocation8 + $0x28] sm:$0xff]
        %v509 = vld [vmem:[#allocation8 + $0x30] sm:$0xff]
        %v510 = vld [vmem:[#allocation8 + $0x38] sm:$0xff]
        %v511 = vld [vmem:[#allocation8 + $0x40] sm:$0xff]
        %v512 = vld [vmem:[#allocation8 + $0x48] sm:$0xff]
        %v513 = vld [vmem:[#allocation8 + $0x50] sm:$0xff]
        %v514 = vld [vmem:[#allocation8 + $0x58] sm:$0xff]
        %v515 = vld [vmem:[#allocation8 + $0x60] sm:$0xff]
        %v516 = vld [vmem:[#allocation8 + $0x68] sm:$0xff]
        %v517 = vld [vmem:[#allocation8 + $0x70] sm:$0xff]
        %v518 = vld [vmem:[#allocation8 + $0x78] sm:$0xff]
        %v519 = vld [vmem:[#allocation8 + $0x80] sm:$0xff]
        %v520 = vld [vmem:[#allocation8 + $0x88] sm:$0xff]
        %v521 = vld [vmem:[#allocation8 + $0x90] sm:$0xff]
        %v522 = vld [vmem:[#allocation8 + $0x98] sm:$0xff]
        %v523 = vld [vmem:[#allocation8 + $0xa0] sm:$0xff]
        %v524 = vld [vmem:[#allocation8 + $0xa8] sm:$0xff]
        %v525 = vld [vmem:[#allocation8 + $0xb0] sm:$0xff]
        %v526 = vld [vmem:[#allocation8 + $0xb8] sm:$0xff]
        %v527 = vld [vmem:[#allocation8 + $0xc0] sm:$0xff]
        %v528 = vld [vmem:[#allocation8 + $0xc8] sm:$0xff]
        %v529 = vld [vmem:[#allocation8 + $0xd0] sm:$0xff]
        %v530 = vld [vmem:[#allocation8 + $0xd8] sm:$0xff]
        %v531 = vld [vmem:[#allocation8 + $0xe0] sm:$0xff]
        %v532 = vld [vmem:[#allocation8 + $0xe8] sm:$0xff]
        %v533 = vld [vmem:[#allocation8 + $0xf0] sm:$0xff]
        %v534 = vld [vmem:[#allocation8 + $0xf8] sm:$0xff]
        %v535 = vld [vmem:[%s3] sm:$0xf]
        %v536 = vld [vmem:[#allocation4] sm:$0xf]
        %v537 = vld [vmem:[#allocation4 + $0x4] sm:$0xf]
        %v538 = vld [vmem:[#allocation4 + $0x8] sm:$0xf]
        %v539 = vld [vmem:[#allocation4 + $0xc] sm:$0xf]
        %v540 = vld [vmem:[#allocation6] sm:$0xff]
        %v541 = vld [vmem:[#allocation6 + $0x8] sm:$0xff]
        %v542 = vld [vmem:[#allocation6 + $0x10] sm:$0xff]
        %v543 = vld [vmem:[#allocation6 + $0x18] sm:$0xff]
        %v544 = vld [vmem:[#allocation6 + $0x20] sm:$0xff]
        %v545 = vld [vmem:[#allocation6 + $0x28] sm:$0xff]
        %v546 = vld [vmem:[#allocation6 + $0x30] sm:$0xff]
        %v547 = vld [vmem:[#allocation6 + $0x38] sm:$0xff]
        %v548 = vld [vmem:[#allocation6 + $0x40] sm:$0xff]
        %v549 = vld [vmem:[#allocation6 + $0x48] sm:$0xff]
        %v550 = vld [vmem:[#allocation6 + $0x50] sm:$0xff]
        %v551 = vld [vmem:[#allocation6 + $0x58] sm:$0xff]
        %v552 = vld [vmem:[#allocation6 + $0x60] sm:$0xff]
        %v553 = vld [vmem:[#allocation6 + $0x68] sm:$0xff]
        %v554 = vld [vmem:[#allocation6 + $0x70] sm:$0xff]
        %v555 = vld [vmem:[#allocation6 + $0x78] sm:$0xff]
        %v556 = vld [vmem:[#allocation6 + $0x80] sm:$0xff]
        %v557 = vld [vmem:[#allocation6 + $0x88] sm:$0xff]
        %v558 = vld [vmem:[#allocation6 + $0x90] sm:$0xff]
        %v559 = vld [vmem:[#allocation6 + $0x98] sm:$0xff]
        %v560 = vld [vmem:[#allocation6 + $0xa0] sm:$0xff]
        %v561 = vld [vmem:[#allocation6 + $0xa8] sm:$0xff]
        %v562 = vld [vmem:[#allocation6 + $0xb0] sm:$0xff]
        %v563 = vld [vmem:[#allocation6 + $0xb8] sm:$0xff]
        %v564 = vld [vmem:[#allocation6 + $0xc0] sm:$0xff]
        %v565 = vld [vmem:[#allocation6 + $0xc8] sm:$0xff]
        %v566 = vld [vmem:[#allocation6 + $0xd0] sm:$0xff]
        %v567 = vld [vmem:[#allocation6 + $0xd8] sm:$0xff]
        %v568 = vld [vmem:[#allocation6 + $0xe0] sm:$0xff]
        %v569 = vld [vmem:[#allocation6 + $0xe8] sm:$0xff]
        %v570 = vld [vmem:[#allocation6 + $0xf0] sm:$0xff]
        %v571 = vld [vmem:[#allocation6 + $0xf8] sm:$0xff]
        %v573 = vperm.slane %v535, 0
        %v574 = vperm.slane %v535, 1
        %v575 = vperm.slane %v535, 2
        %v576 = vperm.slane %v535, 3
        %v585 = vunpack.c.l.b16 %v536
        %v586 = vunpack.c.l.b16 %v537
        %v587 = vunpack.c.l.b16 %v538
        %v588 = vunpack.c.l.b16 %v539
        %v589 = vpack.c.b16 %v586, %v585
        %v590 = vpack.c.b16 %v588, %v587
        %v625 = vunpack.c.l.b16 %v540
        %v626 = vunpack.c.h.b16 %v540
        %v627 = vunpack.c.l.b16 %v541
        %v628 = vunpack.c.h.b16 %v541
        %v629 = vunpack.c.l.b16 %v542
        %v630 = vunpack.c.h.b16 %v542
        %v631 = vunpack.c.l.b16 %v543
        %v632 = vunpack.c.h.b16 %v543
        %v633 = vunpack.c.l.b16 %v544
        %v634 = vunpack.c.h.b16 %v544
        %v635 = vunpack.c.l.b16 %v545
        %v636 = vunpack.c.h.b16 %v545
        %v637 = vunpack.c.l.b16 %v546
        %v638 = vunpack.c.h.b16 %v546
        %v639 = vunpack.c.l.b16 %v547
        %v640 = vunpack.c.h.b16 %v547
        %v641 = vunpack.c.l.b16 %v548
        %v642 = vunpack.c.h.b16 %v548
        %v643 = vunpack.c.l.b16 %v549
        %v644 = vunpack.c.h.b16 %v549
        %v645 = vunpack.c.l.b16 %v550
        %v646 = vunpack.c.h.b16 %v550
        %v647 = vunpack.c.l.b16 %v551
        %v648 = vunpack.c.h.b16 %v551
        %v649 = vunpack.c.l.b16 %v552
        %v650 = vunpack.c.h.b16 %v552
        %v651 = vunpack.c.l.b16 %v553
        %v652 = vunpack.c.h.b16 %v553
        %v653 = vunpack.c.l.b16 %v554
        %v654 = vunpack.c.h.b16 %v554
        %v655 = vunpack.c.l.b16 %v555
        %v656 = vunpack.c.h.b16 %v555
        %v657 = vunpack.c.l.b16 %v556
        %v658 = vunpack.c.h.b16 %v556
        %v659 = vunpack.c.l.b16 %v557
        %v660 = vunpack.c.h.b16 %v557
        %v661 = vunpack.c.l.b16 %v558
        %v662 = vunpack.c.h.b16 %v558
        %v663 = vunpack.c.l.b16 %v559
        %v664 = vunpack.c.h.b16 %v559
        %v665 = vunpack.c.l.b16 %v560
        %v666 = vunpack.c.h.b16 %v560
        %v667 = vunpack.c.l.b16 %v561
        %v668 = vunpack.c.h.b16 %v561
        %v669 = vunpack.c.l.b16 %v562
        %v670 = vunpack.c.h.b16 %v562
        %v671 = vunpack.c.l.b16 %v563
        %v672 = vunpack.c.h.b16 %v563
        %v673 = vunpack.c.l.b16 %v564
        %v674 = vunpack.c.h.b16 %v564
        %v675 = vunpack.c.l.b16 %v565
        %v676 = vunpack.c.h.b16 %v565
        %v677 = vunpack.c.l.b16 %v566
        %v678 = vunpack.c.h.b16 %v566
        %v679 = vunpack.c.l.b16 %v567
        %v680 = vunpack.c.h.b16 %v567
        %v681 = vunpack.c.l.b16 %v568
        %v682 = vunpack.c.h.b16 %v568
        %v683 = vunpack.c.l.b16 %v569
        %v684 = vunpack.c.h.b16 %v569
        %v685 = vunpack.c.l.b16 %v570
        %v686 = vunpack.c.h.b16 %v570
        %v687 = vunpack.c.l.b16 %v571
        %v688 = vunpack.c.h.b16 %v571
        %v689 = vpack.c.b16 %v629, %v625
        %v690 = vpack.c.b16 %v630, %v626
        %v691 = vpack.c.b16 %v631, %v627
        %v692 = vpack.c.b16 %v632, %v628
        %v693 = vpack.c.b16 %v637, %v633
        %v694 = vpack.c.b16 %v638, %v634
        %v695 = vpack.c.b16 %v639, %v635
        %v696 = vpack.c.b16 %v640, %v636
        %v697 = vpack.c.b16 %v645, %v641
        %v698 = vpack.c.b16 %v646, %v642
        %v699 = vpack.c.b16 %v647, %v643
        %v700 = vpack.c.b16 %v648, %v644
        %v701 = vpack.c.b16 %v653, %v649
        %v702 = vpack.c.b16 %v654, %v650
        %v703 = vpack.c.b16 %v655, %v651
        %v704 = vpack.c.b16 %v656, %v652
        %v705 = vpack.c.b16 %v661, %v657
        %v706 = vpack.c.b16 %v662, %v658
        %v707 = vpack.c.b16 %v663, %v659
        %v708 = vpack.c.b16 %v664, %v660
        %v709 = vpack.c.b16 %v669, %v665
        %v710 = vpack.c.b16 %v670, %v666
        %v711 = vpack.c.b16 %v671, %v667
        %v712 = vpack.c.b16 %v672, %v668
        %v713 = vpack.c.b16 %v677, %v673
        %v714 = vpack.c.b16 %v678, %v674
        %v715 = vpack.c.b16 %v679, %v675
        %v716 = vpack.c.b16 %v680, %v676
        %v717 = vpack.c.b16 %v685, %v681
        %v718 = vpack.c.b16 %v686, %v682
        %v719 = vpack.c.b16 %v687, %v683
        %v720 = vpack.c.b16 %v688, %v684
        %753 = vmatpush.bf16.msra.mxu0 %v717
        %754 = vmatpush.bf16.msra.mxu0 %v713
        %755 = vmatpush.bf16.msra.mxu0 %v709
        %756 = vmatpush.bf16.msra.mxu0 %v705
        %757 = vmatpush.bf16.msra.mxu0 %v701
        %758 = vmatpush.bf16.msra.mxu0 %v697
        %759 = vmatpush.bf16.msra.mxu0 %v693
        %760 = vmatpush.bf16.msra.mxu0 %v689
        %761 = vmatmul.bf16.gmra.mxu0 %v589
        %v762 = vpop.f32.mrf.mxu0
        %v763 = vadd.f32 %v573, %v762
        %v764 = vpop.f32.mrf.mxu0
        %v765 = vadd.f32 %v573, %v764
        %766 = vmatmul.bf16.gmra.mxu0 %v590
        %v767 = vpop.f32.mrf.mxu0
        %v768 = vadd.f32 %v573, %v767
        %v769 = vpop.f32.mrf.mxu0
        %v770 = vadd.f32 %v573, %v769
        %771 = vdwg.mxu0
        %772 = vmatpush.bf16.msra.mxu0 %v718
        %773 = vmatpush.bf16.msra.mxu0 %v714
        %774 = vmatpush.bf16.msra.mxu0 %v710
        %775 = vmatpush.bf16.msra.mxu0 %v706
        %776 = vmatpush.bf16.msra.mxu0 %v702
        %777 = vmatpush.bf16.msra.mxu0 %v698
        %778 = vmatpush.bf16.msra.mxu0 %v694
        %779 = vmatpush.bf16.msra.mxu0 %v690
        %780 = vmatmul.bf16.gmra.mxu0 %v589
        %v781 = vpop.f32.mrf.mxu0
        %v782 = vadd.f32 %v574, %v781
        %v783 = vpop.f32.mrf.mxu0
        %v784 = vadd.f32 %v574, %v783
        %785 = vmatmul.bf16.gmra.mxu0 %v590
        %v786 = vpop.f32.mrf.mxu0
        %v787 = vadd.f32 %v574, %v786
        %v788 = vpop.f32.mrf.mxu0
        %v789 = vadd.f32 %v574, %v788
        %790 = vdwg.mxu0
        %791 = vmatpush.bf16.msra.mxu0 %v719
        %792 = vmatpush.bf16.msra.mxu0 %v715
        %793 = vmatpush.bf16.msra.mxu0 %v711
        %794 = vmatpush.bf16.msra.mxu0 %v707
        %795 = vmatpush.bf16.msra.mxu0 %v703
        %796 = vmatpush.bf16.msra.mxu0 %v699
        %797 = vmatpush.bf16.msra.mxu0 %v695
        %798 = vmatpush.bf16.msra.mxu0 %v691
        %799 = vmatmul.bf16.gmra.mxu0 %v589
        %v800 = vpop.f32.mrf.mxu0
        %v801 = vadd.f32 %v575, %v800
        %v802 = vpop.f32.mrf.mxu0
        %v803 = vadd.f32 %v575, %v802
        %804 = vmatmul.bf16.gmra.mxu0 %v590
        %v805 = vpop.f32.mrf.mxu0
        %v806 = vadd.f32 %v575, %v805
        %v807 = vpop.f32.mrf.mxu0
        %v808 = vadd.f32 %v575, %v807
        %809 = vdwg.mxu0
        %810 = vmatpush.bf16.msra.mxu0 %v720
        %811 = vmatpush.bf16.msra.mxu0 %v716
        %812 = vmatpush.bf16.msra.mxu0 %v712
        %813 = vmatpush.bf16.msra.mxu0 %v708
        %814 = vmatpush.bf16.msra.mxu0 %v704
        %815 = vmatpush.bf16.msra.mxu0 %v700
        %816 = vmatpush.bf16.msra.mxu0 %v696
        %817 = vmatpush.bf16.msra.mxu0 %v692
        %818 = vmatmul.bf16.gmra.mxu0 %v589
        %v819 = vpop.f32.mrf.mxu0
        %v820 = vadd.f32 %v576, %v819
        %v821 = vpop.f32.mrf.mxu0
        %v822 = vadd.f32 %v576, %v821
        %823 = vmatmul.bf16.gmra.mxu0 %v590
        %v824 = vpop.f32.mrf.mxu0
        %v825 = vadd.f32 %v576, %v824
        %v826 = vpop.f32.mrf.mxu0
        %v827 = vadd.f32 %v576, %v826
        %828 = vdwg.mxu0
        %829 = vst [vmem:[#allocation5] sm:$0xff] %v763
        %830 = vst [vmem:[#allocation5 + $0x8] sm:$0xff] %v782
        %831 = vst [vmem:[#allocation5 + $0x10] sm:$0xff] %v801
        %832 = vst [vmem:[#allocation5 + $0x18] sm:$0xff] %v820
        %833 = vst [vmem:[#allocation5 + $0x20] sm:$0xff] %v765
        %834 = vst [vmem:[#allocation5 + $0x28] sm:$0xff] %v784
        %835 = vst [vmem:[#allocation5 + $0x30] sm:$0xff] %v803
        %836 = vst [vmem:[#allocation5 + $0x38] sm:$0xff] %v822
        %837 = vst [vmem:[#allocation5 + $0x40] sm:$0xff] %v768
        %838 = vst [vmem:[#allocation5 + $0x48] sm:$0xff] %v787
        %839 = vst [vmem:[#allocation5 + $0x50] sm:$0xff] %v806
        %840 = vst [vmem:[#allocation5 + $0x58] sm:$0xff] %v825
        %841 = vst [vmem:[#allocation5 + $0x60] sm:$0xff] %v770
        %842 = vst [vmem:[#allocation5 + $0x68] sm:$0xff] %v789
        %843 = vst [vmem:[#allocation5 + $0x70] sm:$0xff] %v808
        %844 = vst [vmem:[#allocation5 + $0x78] sm:$0xff] %v827
        %v845 = vld [vmem:[#allocation2] sm:$0xff]
        %v846 = vld [vmem:[#allocation3] sm:$0xff]
        %v847 = vld [vmem:[#allocation5] sm:$0xff]
        %v848 = vld [vmem:[#allocation5 + $0x8] sm:$0xff]
        %v849 = vld [vmem:[#allocation5 + $0x10] sm:$0xff]
        %v850 = vld [vmem:[#allocation5 + $0x18] sm:$0xff]
        %v851 = vpack.c.bf16 %v845, %v845
        %v884 = vunpack.c.l.b16 %v503
        %v885 = vunpack.c.h.b16 %v503
        %v886 = vunpack.c.l.b16 %v504
        %v887 = vunpack.c.h.b16 %v504
        %v888 = vunpack.c.l.b16 %v505
        %v889 = vunpack.c.h.b16 %v505
        %v890 = vunpack.c.l.b16 %v506
        %v891 = vunpack.c.h.b16 %v506
        %v892 = vunpack.c.l.b16 %v507
        %v893 = vunpack.c.h.b16 %v507
        %v894 = vunpack.c.l.b16 %v508
        %v895 = vunpack.c.h.b16 %v508
        %v896 = vunpack.c.l.b16 %v509
        %v897 = vunpack.c.h.b16 %v509
        %v898 = vunpack.c.l.b16 %v510
        %v899 = vunpack.c.h.b16 %v510
        %v900 = vunpack.c.l.b16 %v511
        %v901 = vunpack.c.h.b16 %v511
        %v902 = vunpack.c.l.b16 %v512
        %v903 = vunpack.c.h.b16 %v512
        %v904 = vunpack.c.l.b16 %v513
        %v905 = vunpack.c.h.b16 %v513
        %v906 = vunpack.c.l.b16 %v514
        %v907 = vunpack.c.h.b16 %v514
        %v908 = vunpack.c.l.b16 %v515
        %v909 = vunpack.c.h.b16 %v515
        %v910 = vunpack.c.l.b16 %v516
        %v911 = vunpack.c.h.b16 %v516
        %v912 = vunpack.c.l.b16 %v517
        %v913 = vunpack.c.h.b16 %v517
        %v914 = vunpack.c.l.b16 %v518
        %v915 = vunpack.c.h.b16 %v518
        %v916 = vunpack.c.l.b16 %v519
        %v917 = vunpack.c.h.b16 %v519
        %v918 = vunpack.c.l.b16 %v520
        %v919 = vunpack.c.h.b16 %v520
        %v920 = vunpack.c.l.b16 %v521
        %v921 = vunpack.c.h.b16 %v521
        %v922 = vunpack.c.l.b16 %v522
        %v923 = vunpack.c.h.b16 %v522
        %v924 = vunpack.c.l.b16 %v523
        %v925 = vunpack.c.h.b16 %v523
        %v926 = vunpack.c.l.b16 %v524
        %v927 = vunpack.c.h.b16 %v524
        %v928 = vunpack.c.l.b16 %v525
        %v929 = vunpack.c.h.b16 %v525
        %v930 = vunpack.c.l.b16 %v526
        %v931 = vunpack.c.h.b16 %v526
        %v932 = vunpack.c.l.b16 %v527
        %v933 = vunpack.c.h.b16 %v527
        %v934 = vunpack.c.l.b16 %v528
        %v935 = vunpack.c.h.b16 %v528
        %v936 = vunpack.c.l.b16 %v529
        %v937 = vunpack.c.h.b16 %v529
        %v938 = vunpack.c.l.b16 %v530
        %v939 = vunpack.c.h.b16 %v530
        %v940 = vunpack.c.l.b16 %v531
        %v941 = vunpack.c.h.b16 %v531
        %v942 = vunpack.c.l.b16 %v532
        %v943 = vunpack.c.h.b16 %v532
        %v944 = vunpack.c.l.b16 %v533
        %v945 = vunpack.c.h.b16 %v533
        %v946 = vunpack.c.l.b16 %v534
        %v947 = vunpack.c.h.b16 %v534
        %v948 = vpack.c.b16 %v888, %v884
        %v949 = vpack.c.b16 %v889, %v885
        %v950 = vpack.c.b16 %v890, %v886
        %v951 = vpack.c.b16 %v891, %v887
        %v952 = vpack.c.b16 %v896, %v892
        %v953 = vpack.c.b16 %v897, %v893
        %v954 = vpack.c.b16 %v898, %v894
        %v955 = vpack.c.b16 %v899, %v895
        %v956 = vpack.c.b16 %v904, %v900
        %v957 = vpack.c.b16 %v905, %v901
        %v958 = vpack.c.b16 %v906, %v902
        %v959 = vpack.c.b16 %v907, %v903
        %v960 = vpack.c.b16 %v912, %v908
        %v961 = vpack.c.b16 %v913, %v909
        %v962 = vpack.c.b16 %v914, %v910
        %v963 = vpack.c.b16 %v915, %v911
        %v964 = vpack.c.b16 %v920, %v916
        %v965 = vpack.c.b16 %v921, %v917
        %v966 = vpack.c.b16 %v922, %v918
        %v967 = vpack.c.b16 %v923, %v919
        %v968 = vpack.c.b16 %v928, %v924
        %v969 = vpack.c.b16 %v929, %v925
        %v970 = vpack.c.b16 %v930, %v926
        %v971 = vpack.c.b16 %v931, %v927
        %v972 = vpack.c.b16 %v936, %v932
        %v973 = vpack.c.b16 %v937, %v933
        %v974 = vpack.c.b16 %v938, %v934
        %v975 = vpack.c.b16 %v939, %v935
        %v976 = vpack.c.b16 %v944, %v940
        %v977 = vpack.c.b16 %v945, %v941
        %v978 = vpack.c.b16 %v946, %v942
        %v979 = vpack.c.b16 %v947, %v943
        %1012 = vmatpush.bf16.msra.mxu0 %v976
        %1013 = vmatpush.bf16.msra.mxu0 %v972
        %1014 = vmatpush.bf16.msra.mxu0 %v968
        %1015 = vmatpush.bf16.msra.mxu0 %v964
        %1016 = vmatpush.bf16.msra.mxu0 %v960
        %1017 = vmatpush.bf16.msra.mxu0 %v956
        %1018 = vmatpush.bf16.msra.mxu0 %v952
        %1019 = vmatpush.bf16.msra.mxu0 %v948
        %1020 = vmatmul.bf16.gmra.mxu0 %v851
        %v1021 = vpop.f32.mrf.mxu0
        %v1022 = vadd.f32 0.0, %v1021
        %v1023 = vpop.f32.mrf.mxu0
        %1024 = vdwg.mxu0
        %1025 = vmatpush.bf16.msra.mxu0 %v977
        %1026 = vmatpush.bf16.msra.mxu0 %v973
        %1027 = vmatpush.bf16.msra.mxu0 %v969
        %1028 = vmatpush.bf16.msra.mxu0 %v965
        %1029 = vmatpush.bf16.msra.mxu0 %v961
        %1030 = vmatpush.bf16.msra.mxu0 %v957
        %1031 = vmatpush.bf16.msra.mxu0 %v953
        %1032 = vmatpush.bf16.msra.mxu0 %v949
        %1033 = vmatmul.bf16.gmra.mxu0 %v851
        %v1034 = vpop.f32.mrf.mxu0
        %v1035 = vadd.f32 0.0, %v1034
        %v1036 = vpop.f32.mrf.mxu0
        %1037 = vdwg.mxu0
        %1038 = vmatpush.bf16.msra.mxu0 %v978
        %1039 = vmatpush.bf16.msra.mxu0 %v974
        %1040 = vmatpush.bf16.msra.mxu0 %v970
        %1041 = vmatpush.bf16.msra.mxu0 %v966
        %1042 = vmatpush.bf16.msra.mxu0 %v962
        %1043 = vmatpush.bf16.msra.mxu0 %v958
        %1044 = vmatpush.bf16.msra.mxu0 %v954
        %1045 = vmatpush.bf16.msra.mxu0 %v950
        %1046 = vmatmul.bf16.gmra.mxu0 %v851
        %v1047 = vpop.f32.mrf.mxu0
        %v1048 = vadd.f32 0.0, %v1047
        %v1049 = vpop.f32.mrf.mxu0
        %1050 = vdwg.mxu0
        %1051 = vmatpush.bf16.msra.mxu0 %v979
        %1052 = vmatpush.bf16.msra.mxu0 %v975
        %1053 = vmatpush.bf16.msra.mxu0 %v971
        %1054 = vmatpush.bf16.msra.mxu0 %v967
        %1055 = vmatpush.bf16.msra.mxu0 %v963
        %1056 = vmatpush.bf16.msra.mxu0 %v959
        %1057 = vmatpush.bf16.msra.mxu0 %v955
        %1058 = vmatpush.bf16.msra.mxu0 %v951
        %1059 = vmatmul.bf16.gmra.mxu0 %v851
        %v1060 = vpop.f32.mrf.mxu0
        %v1061 = vadd.f32 0.0, %v1060
        %v1062 = vpop.f32.mrf.mxu0
        %1063 = vdwg.mxu0
        %v1064 = vadd.f32 %v847, %v1022
        %v1065 = vadd.f32 %v848, %v1035
        %v1066 = vadd.f32 %v849, %v1048
        %v1067 = vadd.f32 %v850, %v1061
        %v1068 = vxor.u32 %v1064, 2147483648
        %v1069 = vmul.f32 %v1068, 1.442695
        %v1070 = vpow.pop %v1069
        %v1071 = vadd.f32 %v1070, 1.0
        %v1072 = vrcp.pop %v1071
        %v1073 = vmul.f32 %v1071, %v1072
        %v1074 = vsub.f32 1.0, %v1073
        %v1075 = vmul.f32 %v1072, %v1074
        %v1076 = vadd.f32 %v1072, %v1075
        %vm1077 = vweird.f32 %v1071
        %vm1078 = vweird.f32 %v1072
        %vm1079 = vmor %vm1077, %vm1078
        %v1080 = vsel %vm1079, %v1072, %v1076
        %v1081 = vand.u32 2147483647, %v1071
        %vm1082 = vcmp.eq.f32.partialorder %v1081, 8.507059e+37
        %v1083 = vand.u32 %v1071, 2147483648
        %v1084 = vor.u32 1.1754944e-38, %v1083
        %v1085 = vsel %vm1082, %v1084, %v1080
        %v1086 = vmul.f32 1.0, %v1085
        %v1087 = vxor.u32 %v1065, 2147483648
        %v1088 = vmul.f32 %v1087, 1.442695
        %v1089 = vpow.pop %v1088
        %v1090 = vadd.f32 %v1089, 1.0
        %v1091 = vrcp.pop %v1090
        %v1092 = vmul.f32 %v1090, %v1091
        %v1093 = vsub.f32 1.0, %v1092
        %v1094 = vmul.f32 %v1091, %v1093
        %v1095 = vadd.f32 %v1091, %v1094
        %vm1096 = vweird.f32 %v1090
        %vm1097 = vweird.f32 %v1091
        %vm1098 = vmor %vm1096, %vm1097
        %v1099 = vsel %vm1098, %v1091, %v1095
        %v1100 = vand.u32 2147483647, %v1090
        %vm1101 = vcmp.eq.f32.partialorder %v1100, 8.507059e+37
        %v1102 = vand.u32 %v1090, 2147483648
        %v1103 = vor.u32 1.1754944e-38, %v1102
        %v1104 = vsel %vm1101, %v1103, %v1099
        %v1105 = vmul.f32 1.0, %v1104
        %v1106 = vtanh.pop %v1066
        %v1107 = vxor.u32 %v1067, 2147483648
        %v1108 = vmul.f32 %v1107, 1.442695
        %v1109 = vpow.pop %v1108
        %v1110 = vadd.f32 %v1109, 1.0
        %v1111 = vrcp.pop %v1110
        %v1112 = vmul.f32 %v1110, %v1111
        %v1113 = vsub.f32 1.0, %v1112
        %v1114 = vmul.f32 %v1111, %v1113
        %v1115 = vadd.f32 %v1111, %v1114
        %vm1116 = vweird.f32 %v1110
        %vm1117 = vweird.f32 %v1111
        %vm1118 = vmor %vm1116, %vm1117
        %v1119 = vsel %vm1118, %v1111, %v1115
        %v1120 = vand.u32 2147483647, %v1110
        %vm1121 = vcmp.eq.f32.partialorder %v1120, 8.507059e+37
        %v1122 = vand.u32 %v1110, 2147483648
        %v1123 = vor.u32 1.1754944e-38, %v1122
        %v1124 = vsel %vm1121, %v1123, %v1119
        %v1125 = vmul.f32 1.0, %v1124
        %v1126 = vmul.f32 %v1105, %v846
        %v1127 = vmul.f32 %v1086, %v1106
        %v1128 = vadd.f32 %v1126, %v1127
        %v1129 = vtanh.pop %v1128
        %v1130 = vmul.f32 %v1125, %v1129
        %v1131 = vpack.c.bf16 %v1130, %v1130
        %1132 = vst [vmem:[#allocation4] sm:$0xf] %v1131
        %s1133 = scalar_lea.vmem [#allocation5], 32
        %v1134 = vld [vmem:[%s1133] sm:$0xff]
        %v1135 = vld [vmem:[%s1133 + $0x8] sm:$0xff]
        %v1136 = vld [vmem:[%s1133 + $0x10] sm:$0xff]
        %v1137 = vld [vmem:[%s1133 + $0x18] sm:$0xff]
        %1138 = vmatpush.bf16.msra.mxu0 %v976
        %1139 = vmatpush.bf16.msra.mxu0 %v972
        %1140 = vmatpush.bf16.msra.mxu0 %v968
        %1141 = vmatpush.bf16.msra.mxu0 %v964
        %1142 = vmatpush.bf16.msra.mxu0 %v960
        %1143 = vmatpush.bf16.msra.mxu0 %v956
        %1144 = vmatpush.bf16.msra.mxu0 %v952
        %1145 = vmatpush.bf16.msra.mxu0 %v948
        %1146 = vmatmul.bf16.gmra.mxu0 %v1131
        %v1147 = vpop.f32.mrf.mxu0
        %v1148 = vadd.f32 0.0, %v1147
        %v1149 = vpop.f32.mrf.mxu0
        %1150 = vdwg.mxu0
        %1151 = vmatpush.bf16.msra.mxu0 %v977
        %1152 = vmatpush.bf16.msra.mxu0 %v973
        %1153 = vmatpush.bf16.msra.mxu0 %v969
        %1154 = vmatpush.bf16.msra.mxu0 %v965
        %1155 = vmatpush.bf16.msra.mxu0 %v961
        %1156 = vmatpush.bf16.msra.mxu0 %v957
        %1157 = vmatpush.bf16.msra.mxu0 %v953
        %1158 = vmatpush.bf16.msra.mxu0 %v949
        %1159 = vmatmul.bf16.gmra.mxu0 %v1131
        %v1160 = vpop.f32.mrf.mxu0
        %v1161 = vadd.f32 0.0, %v1160
        %v1162 = vpop.f32.mrf.mxu0
        %1163 = vdwg.mxu0
        %1164 = vmatpush.bf16.msra.mxu0 %v978
        %1165 = vmatpush.bf16.msra.mxu0 %v974
        %1166 = vmatpush.bf16.msra.mxu0 %v970
        %1167 = vmatpush.bf16.msra.mxu0 %v966
        %1168 = vmatpush.bf16.msra.mxu0 %v962
        %1169 = vmatpush.bf16.msra.mxu0 %v958
        %1170 = vmatpush.bf16.msra.mxu0 %v954
        %1171 = vmatpush.bf16.msra.mxu0 %v950
        %1172 = vmatmul.bf16.gmra.mxu0 %v1131
        %v1173 = vpop.f32.mrf.mxu0
        %v1174 = vadd.f32 0.0, %v1173
        %v1175 = vpop.f32.mrf.mxu0
        %1176 = vdwg.mxu0
        %1177 = vmatpush.bf16.msra.mxu0 %v979
        %1178 = vmatpush.bf16.msra.mxu0 %v975
        %1179 = vmatpush.bf16.msra.mxu0 %v971
        %1180 = vmatpush.bf16.msra.mxu0 %v967
        %1181 = vmatpush.bf16.msra.mxu0 %v963
        %1182 = vmatpush.bf16.msra.mxu0 %v959
        %1183 = vmatpush.bf16.msra.mxu0 %v955
        %1184 = vmatpush.bf16.msra.mxu0 %v951
        %1185 = vmatmul.bf16.gmra.mxu0 %v1131
        %v1186 = vpop.f32.mrf.mxu0
        %v1187 = vadd.f32 0.0, %v1186
        %v1188 = vpop.f32.mrf.mxu0
        %1189 = vdwg.mxu0
        %v1190 = vadd.f32 %v1134, %v1148
        %v1191 = vadd.f32 %v1135, %v1161
        %v1192 = vadd.f32 %v1136, %v1174
        %v1193 = vadd.f32 %v1137, %v1187
        %v1194 = vxor.u32 %v1190, 2147483648
        %v1195 = vmul.f32 %v1194, 1.442695
        %v1196 = vpow.pop %v1195
        %v1197 = vadd.f32 %v1196, 1.0
        %v1198 = vrcp.pop %v1197
        %v1199 = vmul.f32 %v1197, %v1198
        %v1200 = vsub.f32 1.0, %v1199
        %v1201 = vmul.f32 %v1198, %v1200
        %v1202 = vadd.f32 %v1198, %v1201
        %vm1203 = vweird.f32 %v1197
        %vm1204 = vweird.f32 %v1198
        %vm1205 = vmor %vm1203, %vm1204
        %v1206 = vsel %vm1205, %v1198, %v1202
        %v1207 = vand.u32 2147483647, %v1197
        %vm1208 = vcmp.eq.f32.partialorder %v1207, 8.507059e+37
        %v1209 = vand.u32 %v1197, 2147483648
        %v1210 = vor.u32 1.1754944e-38, %v1209
        %v1211 = vsel %vm1208, %v1210, %v1206
        %v1212 = vmul.f32 1.0, %v1211
        %v1213 = vxor.u32 %v1191, 2147483648
        %v1214 = vmul.f32 %v1213, 1.442695
        %v1215 = vpow.pop %v1214
        %v1216 = vadd.f32 %v1215, 1.0
        %v1217 = vrcp.pop %v1216
        %v1218 = vmul.f32 %v1216, %v1217
        %v1219 = vsub.f32 1.0, %v1218
        %v1220 = vmul.f32 %v1217, %v1219
        %v1221 = vadd.f32 %v1217, %v1220
        %vm1222 = vweird.f32 %v1216
        %vm1223 = vweird.f32 %v1217
        %vm1224 = vmor %vm1222, %vm1223
        %v1225 = vsel %vm1224, %v1217, %v1221
        %v1226 = vand.u32 2147483647, %v1216
        %vm1227 = vcmp.eq.f32.partialorder %v1226, 8.507059e+37
        %v1228 = vand.u32 %v1216, 2147483648
        %v1229 = vor.u32 1.1754944e-38, %v1228
        %v1230 = vsel %vm1227, %v1229, %v1225
        %v1231 = vmul.f32 1.0, %v1230
        %v1232 = vtanh.pop %v1192
        %v1233 = vxor.u32 %v1193, 2147483648
        %v1234 = vmul.f32 %v1233, 1.442695
        %v1235 = vpow.pop %v1234
        %v1236 = vadd.f32 %v1235, 1.0
        %v1237 = vrcp.pop %v1236
        %v1238 = vmul.f32 %v1236, %v1237
        %v1239 = vsub.f32 1.0, %v1238
        %v1240 = vmul.f32 %v1237, %v1239
        %v1241 = vadd.f32 %v1237, %v1240
        %vm1242 = vweird.f32 %v1236
        %vm1243 = vweird.f32 %v1237
        %vm1244 = vmor %vm1242, %vm1243
        %v1245 = vsel %vm1244, %v1237, %v1241
        %v1246 = vand.u32 2147483647, %v1236
        %vm1247 = vcmp.eq.f32.partialorder %v1246, 8.507059e+37
        %v1248 = vand.u32 %v1236, 2147483648
        %v1249 = vor.u32 1.1754944e-38, %v1248
        %v1250 = vsel %vm1247, %v1249, %v1245
        %v1251 = vmul.f32 1.0, %v1250
        %v1252 = vmul.f32 %v1231, %v1128
        %v1253 = vmul.f32 %v1212, %v1232
        %v1254 = vadd.f32 %v1252, %v1253
        %v1255 = vtanh.pop %v1254
        %v1256 = vmul.f32 %v1251, %v1255
        %v1257 = vpack.c.bf16 %v1256, %v1256
        %s1258 = scalar_lea.vmem [#allocation4], 4
        %1259 = vst [vmem:[%s1258] sm:$0xf] %v1257
        %s1260 = scalar_lea.vmem [#allocation5], 64
        %v1261 = vld [vmem:[%s1260] sm:$0xff]
        %v1262 = vld [vmem:[%s1260 + $0x8] sm:$0xff]
        %v1263 = vld [vmem:[%s1260 + $0x10] sm:$0xff]
        %v1264 = vld [vmem:[%s1260 + $0x18] sm:$0xff]
        %1265 = vmatpush.bf16.msra.mxu0 %v976
        %1266 = vmatpush.bf16.msra.mxu0 %v972
        %1267 = vmatpush.bf16.msra.mxu0 %v968
        %1268 = vmatpush.bf16.msra.mxu0 %v964
        %1269 = vmatpush.bf16.msra.mxu0 %v960
        %1270 = vmatpush.bf16.msra.mxu0 %v956
        %1271 = vmatpush.bf16.msra.mxu0 %v952
        %1272 = vmatpush.bf16.msra.mxu0 %v948
        %1273 = vmatmul.bf16.gmra.mxu0 %v1257
        %v1274 = vpop.f32.mrf.mxu0
        %v1275 = vadd.f32 0.0, %v1274
        %v1276 = vpop.f32.mrf.mxu0
        %1277 = vdwg.mxu0
        %1278 = vmatpush.bf16.msra.mxu0 %v977
        %1279 = vmatpush.bf16.msra.mxu0 %v973
        %1280 = vmatpush.bf16.msra.mxu0 %v969
        %1281 = vmatpush.bf16.msra.mxu0 %v965
        %1282 = vmatpush.bf16.msra.mxu0 %v961
        %1283 = vmatpush.bf16.msra.mxu0 %v957
        %1284 = vmatpush.bf16.msra.mxu0 %v953
        %1285 = vmatpush.bf16.msra.mxu0 %v949
        %1286 = vmatmul.bf16.gmra.mxu0 %v1257
        %v1287 = vpop.f32.mrf.mxu0
        %v1288 = vadd.f32 0.0, %v1287
        %v1289 = vpop.f32.mrf.mxu0
        %1290 = vdwg.mxu0
        %1291 = vmatpush.bf16.msra.mxu0 %v978
        %1292 = vmatpush.bf16.msra.mxu0 %v974
        %1293 = vmatpush.bf16.msra.mxu0 %v970
        %1294 = vmatpush.bf16.msra.mxu0 %v966
        %1295 = vmatpush.bf16.msra.mxu0 %v962
        %1296 = vmatpush.bf16.msra.mxu0 %v958
        %1297 = vmatpush.bf16.msra.mxu0 %v954
        %1298 = vmatpush.bf16.msra.mxu0 %v950
        %1299 = vmatmul.bf16.gmra.mxu0 %v1257
        %v1300 = vpop.f32.mrf.mxu0
        %v1301 = vadd.f32 0.0, %v1300
        %v1302 = vpop.f32.mrf.mxu0
        %1303 = vdwg.mxu0
        %1304 = vmatpush.bf16.msra.mxu0 %v979
        %1305 = vmatpush.bf16.msra.mxu0 %v975
        %1306 = vmatpush.bf16.msra.mxu0 %v971
        %1307 = vmatpush.bf16.msra.mxu0 %v967
        %1308 = vmatpush.bf16.msra.mxu0 %v963
        %1309 = vmatpush.bf16.msra.mxu0 %v959
        %1310 = vmatpush.bf16.msra.mxu0 %v955
        %1311 = vmatpush.bf16.msra.mxu0 %v951
        %1312 = vmatmul.bf16.gmra.mxu0 %v1257
        %v1313 = vpop.f32.mrf.mxu0
        %v1314 = vadd.f32 0.0, %v1313
        %v1315 = vpop.f32.mrf.mxu0
        %1316 = vdwg.mxu0
        %v1317 = vadd.f32 %v1261, %v1275
        %v1318 = vadd.f32 %v1262, %v1288
        %v1319 = vadd.f32 %v1263, %v1301
        %v1320 = vadd.f32 %v1264, %v1314
        %v1321 = vxor.u32 %v1317, 2147483648
        %v1322 = vmul.f32 %v1321, 1.442695
        %v1323 = vpow.pop %v1322
        %v1324 = vadd.f32 %v1323, 1.0
        %v1325 = vrcp.pop %v1324
        %v1326 = vmul.f32 %v1324, %v1325
        %v1327 = vsub.f32 1.0, %v1326
        %v1328 = vmul.f32 %v1325, %v1327
        %v1329 = vadd.f32 %v1325, %v1328
        %vm1330 = vweird.f32 %v1324
        %vm1331 = vweird.f32 %v1325
        %vm1332 = vmor %vm1330, %vm1331
        %v1333 = vsel %vm1332, %v1325, %v1329
        %v1334 = vand.u32 2147483647, %v1324
        %vm1335 = vcmp.eq.f32.partialorder %v1334, 8.507059e+37
        %v1336 = vand.u32 %v1324, 2147483648
        %v1337 = vor.u32 1.1754944e-38, %v1336
        %v1338 = vsel %vm1335, %v1337, %v1333
        %v1339 = vmul.f32 1.0, %v1338
        %v1340 = vxor.u32 %v1318, 2147483648
        %v1341 = vmul.f32 %v1340, 1.442695
        %v1342 = vpow.pop %v1341
        %v1343 = vadd.f32 %v1342, 1.0
        %v1344 = vrcp.pop %v1343
        %v1345 = vmul.f32 %v1343, %v1344
        %v1346 = vsub.f32 1.0, %v1345
        %v1347 = vmul.f32 %v1344, %v1346
        %v1348 = vadd.f32 %v1344, %v1347
        %vm1349 = vweird.f32 %v1343
        %vm1350 = vweird.f32 %v1344
        %vm1351 = vmor %vm1349, %vm1350
        %v1352 = vsel %vm1351, %v1344, %v1348
        %v1353 = vand.u32 2147483647, %v1343
        %vm1354 = vcmp.eq.f32.partialorder %v1353, 8.507059e+37
        %v1355 = vand.u32 %v1343, 2147483648
        %v1356 = vor.u32 1.1754944e-38, %v1355
        %v1357 = vsel %vm1354, %v1356, %v1352
        %v1358 = vmul.f32 1.0, %v1357
        %v1359 = vtanh.pop %v1319
        %v1360 = vxor.u32 %v1320, 2147483648
        %v1361 = vmul.f32 %v1360, 1.442695
        %v1362 = vpow.pop %v1361
        %v1363 = vadd.f32 %v1362, 1.0
        %v1364 = vrcp.pop %v1363
        %v1365 = vmul.f32 %v1363, %v1364
        %v1366 = vsub.f32 1.0, %v1365
        %v1367 = vmul.f32 %v1364, %v1366
        %v1368 = vadd.f32 %v1364, %v1367
        %vm1369 = vweird.f32 %v1363
        %vm1370 = vweird.f32 %v1364
        %vm1371 = vmor %vm1369, %vm1370
        %v1372 = vsel %vm1371, %v1364, %v1368
        %v1373 = vand.u32 2147483647, %v1363
        %vm1374 = vcmp.eq.f32.partialorder %v1373, 8.507059e+37
        %v1375 = vand.u32 %v1363, 2147483648
        %v1376 = vor.u32 1.1754944e-38, %v1375
        %v1377 = vsel %vm1374, %v1376, %v1372
        %v1378 = vmul.f32 1.0, %v1377
        %v1379 = vmul.f32 %v1358, %v1254
        %v1380 = vmul.f32 %v1339, %v1359
        %v1381 = vadd.f32 %v1379, %v1380
        %v1382 = vtanh.pop %v1381
        %v1383 = vmul.f32 %v1378, %v1382
        %v1384 = vpack.c.bf16 %v1383, %v1383
        %s1385 = scalar_lea.vmem [#allocation4], 8
        %1386 = vst [vmem:[%s1385] sm:$0xf] %v1384
        %s1387 = scalar_lea.vmem [#allocation5], 96
        %v1388 = vld [vmem:[%s1387] sm:$0xff]
        %v1389 = vld [vmem:[%s1387 + $0x8] sm:$0xff]
        %v1390 = vld [vmem:[%s1387 + $0x10] sm:$0xff]
        %v1391 = vld [vmem:[%s1387 + $0x18] sm:$0xff]
        %1392 = vmatpush.bf16.msra.mxu0 %v976
        %1393 = vmatpush.bf16.msra.mxu0 %v972
        %1394 = vmatpush.bf16.msra.mxu0 %v968
        %1395 = vmatpush.bf16.msra.mxu0 %v964
        %1396 = vmatpush.bf16.msra.mxu0 %v960
        %1397 = vmatpush.bf16.msra.mxu0 %v956
        %1398 = vmatpush.bf16.msra.mxu0 %v952
        %1399 = vmatpush.bf16.msra.mxu0 %v948
        %1400 = vmatmul.bf16.gmra.mxu0 %v1384
        %v1401 = vpop.f32.mrf.mxu0
        %v1402 = vadd.f32 0.0, %v1401
        %v1403 = vpop.f32.mrf.mxu0
        %1404 = vdwg.mxu0
        %1405 = vmatpush.bf16.msra.mxu0 %v977
        %1406 = vmatpush.bf16.msra.mxu0 %v973
        %1407 = vmatpush.bf16.msra.mxu0 %v969
        %1408 = vmatpush.bf16.msra.mxu0 %v965
        %1409 = vmatpush.bf16.msra.mxu0 %v961
        %1410 = vmatpush.bf16.msra.mxu0 %v957
        %1411 = vmatpush.bf16.msra.mxu0 %v953
        %1412 = vmatpush.bf16.msra.mxu0 %v949
        %1413 = vmatmul.bf16.gmra.mxu0 %v1384
        %v1414 = vpop.f32.mrf.mxu0
        %v1415 = vadd.f32 0.0, %v1414
        %v1416 = vpop.f32.mrf.mxu0
        %1417 = vdwg.mxu0
        %1418 = vmatpush.bf16.msra.mxu0 %v978
        %1419 = vmatpush.bf16.msra.mxu0 %v974
        %1420 = vmatpush.bf16.msra.mxu0 %v970
        %1421 = vmatpush.bf16.msra.mxu0 %v966
        %1422 = vmatpush.bf16.msra.mxu0 %v962
        %1423 = vmatpush.bf16.msra.mxu0 %v958
        %1424 = vmatpush.bf16.msra.mxu0 %v954
        %1425 = vmatpush.bf16.msra.mxu0 %v950
        %1426 = vmatmul.bf16.gmra.mxu0 %v1384
        %v1427 = vpop.f32.mrf.mxu0
        %v1428 = vadd.f32 0.0, %v1427
        %v1429 = vpop.f32.mrf.mxu0
        %1430 = vdwg.mxu0
        %1431 = vmatpush.bf16.msra.mxu0 %v979
        %1432 = vmatpush.bf16.msra.mxu0 %v975
        %1433 = vmatpush.bf16.msra.mxu0 %v971
        %1434 = vmatpush.bf16.msra.mxu0 %v967
        %1435 = vmatpush.bf16.msra.mxu0 %v963
        %1436 = vmatpush.bf16.msra.mxu0 %v959
        %1437 = vmatpush.bf16.msra.mxu0 %v955
        %1438 = vmatpush.bf16.msra.mxu0 %v951
        %1439 = vmatmul.bf16.gmra.mxu0 %v1384
        %v1440 = vpop.f32.mrf.mxu0
        %v1441 = vadd.f32 0.0, %v1440
        %v1442 = vpop.f32.mrf.mxu0
        %1443 = vdwg.mxu0
        %v1444 = vadd.f32 %v1388, %v1402
        %v1445 = vadd.f32 %v1389, %v1415
        %v1446 = vadd.f32 %v1390, %v1428
        %v1447 = vadd.f32 %v1391, %v1441
        %v1448 = vxor.u32 %v1444, 2147483648
        %v1449 = vmul.f32 %v1448, 1.442695
        %v1450 = vpow.pop %v1449
        %v1451 = vadd.f32 %v1450, 1.0
        %v1452 = vrcp.pop %v1451
        %v1453 = vmul.f32 %v1451, %v1452
        %v1454 = vsub.f32 1.0, %v1453
        %v1455 = vmul.f32 %v1452, %v1454
        %v1456 = vadd.f32 %v1452, %v1455
        %vm1457 = vweird.f32 %v1451
        %vm1458 = vweird.f32 %v1452
        %vm1459 = vmor %vm1457, %vm1458
        %v1460 = vsel %vm1459, %v1452, %v1456
        %v1461 = vand.u32 2147483647, %v1451
        %vm1462 = vcmp.eq.f32.partialorder %v1461, 8.507059e+37
        %v1463 = vand.u32 %v1451, 2147483648
        %v1464 = vor.u32 1.1754944e-38, %v1463
        %v1465 = vsel %vm1462, %v1464, %v1460
        %v1466 = vmul.f32 1.0, %v1465
        %v1467 = vxor.u32 %v1445, 2147483648
        %v1468 = vmul.f32 %v1467, 1.442695
        %v1469 = vpow.pop %v1468
        %v1470 = vadd.f32 %v1469, 1.0
        %v1471 = vrcp.pop %v1470
        %v1472 = vmul.f32 %v1470, %v1471
        %v1473 = vsub.f32 1.0, %v1472
        %v1474 = vmul.f32 %v1471, %v1473
        %v1475 = vadd.f32 %v1471, %v1474
        %vm1476 = vweird.f32 %v1470
        %vm1477 = vweird.f32 %v1471
        %vm1478 = vmor %vm1476, %vm1477
        %v1479 = vsel %vm1478, %v1471, %v1475
        %v1480 = vand.u32 2147483647, %v1470
        %vm1481 = vcmp.eq.f32.partialorder %v1480, 8.507059e+37
        %v1482 = vand.u32 %v1470, 2147483648
        %v1483 = vor.u32 1.1754944e-38, %v1482
        %v1484 = vsel %vm1481, %v1483, %v1479
        %v1485 = vmul.f32 1.0, %v1484
        %v1486 = vtanh.pop %v1446
        %v1487 = vxor.u32 %v1447, 2147483648
        %v1488 = vmul.f32 %v1487, 1.442695
        %v1489 = vpow.pop %v1488
        %v1490 = vadd.f32 %v1489, 1.0
        %v1491 = vrcp.pop %v1490
        %v1492 = vmul.f32 %v1490, %v1491
        %v1493 = vsub.f32 1.0, %v1492
        %v1494 = vmul.f32 %v1491, %v1493
        %v1495 = vadd.f32 %v1491, %v1494
        %vm1496 = vweird.f32 %v1490
        %vm1497 = vweird.f32 %v1491
        %vm1498 = vmor %vm1496, %vm1497
        %v1499 = vsel %vm1498, %v1491, %v1495
        %v1500 = vand.u32 2147483647, %v1490
        %vm1501 = vcmp.eq.f32.partialorder %v1500, 8.507059e+37
        %v1502 = vand.u32 %v1490, 2147483648
        %v1503 = vor.u32 1.1754944e-38, %v1502
        %v1504 = vsel %vm1501, %v1503, %v1499
        %v1505 = vmul.f32 1.0, %v1504
        %v1506 = vmul.f32 %v1485, %v1381
        %v1507 = vmul.f32 %v1466, %v1486
        %v1508 = vadd.f32 %v1506, %v1507
        %v1509 = vtanh.pop %v1508
        %v1510 = vmul.f32 %v1505, %v1509
        %v1511 = vpack.c.bf16 %v1510, %v1510
        %s1512 = scalar_lea.vmem [#allocation4], 12
        %1513 = vst [vmem:[%s1512] sm:$0xf] %v1511
        %1514 = vst [vmem:[#allocation2] sm:$0xff] %v1510
        %1515 = vst [vmem:[#allocation3] sm:$0xff] %v1508
        %s1516 = scalar_lea.vmem [#allocation8], 256
        %v1517 = vld [vmem:[%s1516] sm:$0xff]
        %v1518 = vld [vmem:[%s1516 + $0x8] sm:$0xff]
        %v1519 = vld [vmem:[%s1516 + $0x10] sm:$0xff]
        %v1520 = vld [vmem:[%s1516 + $0x18] sm:$0xff]
        %v1521 = vld [vmem:[%s1516 + $0x20] sm:$0xff]
        %v1522 = vld [vmem:[%s1516 + $0x28] sm:$0xff]
        %v1523 = vld [vmem:[%s1516 + $0x30] sm:$0xff]
        %v1524 = vld [vmem:[%s1516 + $0x38] sm:$0xff]
        %v1525 = vld [vmem:[%s1516 + $0x40] sm:$0xff]
        %v1526 = vld [vmem:[%s1516 + $0x48] sm:$0xff]
        %v1527 = vld [vmem:[%s1516 + $0x50] sm:$0xff]
        %v1528 = vld [vmem:[%s1516 + $0x58] sm:$0xff]
        %v1529 = vld [vmem:[%s1516 + $0x60] sm:$0xff]
        %v1530 = vld [vmem:[%s1516 + $0x68] sm:$0xff]
        %v1531 = vld [vmem:[%s1516 + $0x70] sm:$0xff]
        %v1532 = vld [vmem:[%s1516 + $0x78] sm:$0xff]
        %v1533 = vld [vmem:[%s1516 + $0x80] sm:$0xff]
        %v1534 = vld [vmem:[%s1516 + $0x88] sm:$0xff]
        %v1535 = vld [vmem:[%s1516 + $0x90] sm:$0xff]
        %v1536 = vld [vmem:[%s1516 + $0x98] sm:$0xff]
        %v1537 = vld [vmem:[%s1516 + $0xa0] sm:$0xff]
        %v1538 = vld [vmem:[%s1516 + $0xa8] sm:$0xff]
        %v1539 = vld [vmem:[%s1516 + $0xb0] sm:$0xff]
        %v1540 = vld [vmem:[%s1516 + $0xb8] sm:$0xff]
        %v1541 = vld [vmem:[%s1516 + $0xc0] sm:$0xff]
        %v1542 = vld [vmem:[%s1516 + $0xc8] sm:$0xff]
        %v1543 = vld [vmem:[%s1516 + $0xd0] sm:$0xff]
        %v1544 = vld [vmem:[%s1516 + $0xd8] sm:$0xff]
        %v1545 = vld [vmem:[%s1516 + $0xe0] sm:$0xff]
        %v1546 = vld [vmem:[%s1516 + $0xe8] sm:$0xff]
        %v1547 = vld [vmem:[%s1516 + $0xf0] sm:$0xff]
        %v1548 = vld [vmem:[%s1516 + $0xf8] sm:$0xff]
        %s1549 = scalar_lea.vmem %s3, 4
        %v1550 = vld [vmem:[%s1549] sm:$0xf]
        %v1551 = vld [vmem:[#allocation4] sm:$0xf]
        %v1552 = vld [vmem:[#allocation4 + $0x4] sm:$0xf]
        %v1553 = vld [vmem:[#allocation4 + $0x8] sm:$0xf]
        %v1554 = vld [vmem:[#allocation4 + $0xc] sm:$0xf]
        %s1555 = scalar_lea.vmem [#allocation6], 256
        %v1556 = vld [vmem:[%s1555] sm:$0xff]
        %v1557 = vld [vmem:[%s1555 + $0x8] sm:$0xff]
        %v1558 = vld [vmem:[%s1555 + $0x10] sm:$0xff]
        %v1559 = vld [vmem:[%s1555 + $0x18] sm:$0xff]
        %v1560 = vld [vmem:[%s1555 + $0x20] sm:$0xff]
        %v1561 = vld [vmem:[%s1555 + $0x28] sm:$0xff]
        %v1562 = vld [vmem:[%s1555 + $0x30] sm:$0xff]
        %v1563 = vld [vmem:[%s1555 + $0x38] sm:$0xff]
        %v1564 = vld [vmem:[%s1555 + $0x40] sm:$0xff]
        %v1565 = vld [vmem:[%s1555 + $0x48] sm:$0xff]
        %v1566 = vld [vmem:[%s1555 + $0x50] sm:$0xff]
        %v1567 = vld [vmem:[%s1555 + $0x58] sm:$0xff]
        %v1568 = vld [vmem:[%s1555 + $0x60] sm:$0xff]
        %v1569 = vld [vmem:[%s1555 + $0x68] sm:$0xff]
        %v1570 = vld [vmem:[%s1555 + $0x70] sm:$0xff]
        %v1571 = vld [vmem:[%s1555 + $0x78] sm:$0xff]
        %v1572 = vld [vmem:[%s1555 + $0x80] sm:$0xff]
        %v1573 = vld [vmem:[%s1555 + $0x88] sm:$0xff]
        %v1574 = vld [vmem:[%s1555 + $0x90] sm:$0xff]
        %v1575 = vld [vmem:[%s1555 + $0x98] sm:$0xff]
        %v1576 = vld [vmem:[%s1555 + $0xa0] sm:$0xff]
        %v1577 = vld [vmem:[%s1555 + $0xa8] sm:$0xff]
        %v1578 = vld [vmem:[%s1555 + $0xb0] sm:$0xff]
        %v1579 = vld [vmem:[%s1555 + $0xb8] sm:$0xff]
        %v1580 = vld [vmem:[%s1555 + $0xc0] sm:$0xff]
        %v1581 = vld [vmem:[%s1555 + $0xc8] sm:$0xff]
        %v1582 = vld [vmem:[%s1555 + $0xd0] sm:$0xff]
        %v1583 = vld [vmem:[%s1555 + $0xd8] sm:$0xff]
        %v1584 = vld [vmem:[%s1555 + $0xe0] sm:$0xff]
        %v1585 = vld [vmem:[%s1555 + $0xe8] sm:$0xff]
        %v1586 = vld [vmem:[%s1555 + $0xf0] sm:$0xff]
        %v1587 = vld [vmem:[%s1555 + $0xf8] sm:$0xff]
        %v1589 = vperm.slane %v1550, 0
        %v1590 = vperm.slane %v1550, 1
        %v1591 = vperm.slane %v1550, 2
        %v1592 = vperm.slane %v1550, 3
        %v1601 = vunpack.c.l.b16 %v1551
        %v1602 = vunpack.c.l.b16 %v1552
        %v1603 = vunpack.c.l.b16 %v1553
        %v1604 = vunpack.c.l.b16 %v1554
        %v1605 = vpack.c.b16 %v1602, %v1601
        %v1606 = vpack.c.b16 %v1604, %v1603
        %v1641 = vunpack.c.l.b16 %v1556
        %v1642 = vunpack.c.h.b16 %v1556
        %v1643 = vunpack.c.l.b16 %v1557
        %v1644 = vunpack.c.h.b16 %v1557
        %v1645 = vunpack.c.l.b16 %v1558
        %v1646 = vunpack.c.h.b16 %v1558
        %v1647 = vunpack.c.l.b16 %v1559
        %v1648 = vunpack.c.h.b16 %v1559
        %v1649 = vunpack.c.l.b16 %v1560
        %v1650 = vunpack.c.h.b16 %v1560
        %v1651 = vunpack.c.l.b16 %v1561
        %v1652 = vunpack.c.h.b16 %v1561
        %v1653 = vunpack.c.l.b16 %v1562
        %v1654 = vunpack.c.h.b16 %v1562
        %v1655 = vunpack.c.l.b16 %v1563
        %v1656 = vunpack.c.h.b16 %v1563
        %v1657 = vunpack.c.l.b16 %v1564
        %v1658 = vunpack.c.h.b16 %v1564
        %v1659 = vunpack.c.l.b16 %v1565
        %v1660 = vunpack.c.h.b16 %v1565
        %v1661 = vunpack.c.l.b16 %v1566
        %v1662 = vunpack.c.h.b16 %v1566
        %v1663 = vunpack.c.l.b16 %v1567
        %v1664 = vunpack.c.h.b16 %v1567
        %v1665 = vunpack.c.l.b16 %v1568
        %v1666 = vunpack.c.h.b16 %v1568
        %v1667 = vunpack.c.l.b16 %v1569
        %v1668 = vunpack.c.h.b16 %v1569
        %v1669 = vunpack.c.l.b16 %v1570
        %v1670 = vunpack.c.h.b16 %v1570
        %v1671 = vunpack.c.l.b16 %v1571
        %v1672 = vunpack.c.h.b16 %v1571
        %v1673 = vunpack.c.l.b16 %v1572
        %v1674 = vunpack.c.h.b16 %v1572
        %v1675 = vunpack.c.l.b16 %v1573
        %v1676 = vunpack.c.h.b16 %v1573
        %v1677 = vunpack.c.l.b16 %v1574
        %v1678 = vunpack.c.h.b16 %v1574
        %v1679 = vunpack.c.l.b16 %v1575
        %v1680 = vunpack.c.h.b16 %v1575
        %v1681 = vunpack.c.l.b16 %v1576
        %v1682 = vunpack.c.h.b16 %v1576
        %v1683 = vunpack.c.l.b16 %v1577
        %v1684 = vunpack.c.h.b16 %v1577
        %v1685 = vunpack.c.l.b16 %v1578
        %v1686 = vunpack.c.h.b16 %v1578
        %v1687 = vunpack.c.l.b16 %v1579
        %v1688 = vunpack.c.h.b16 %v1579
        %v1689 = vunpack.c.l.b16 %v1580
        %v1690 = vunpack.c.h.b16 %v1580
        %v1691 = vunpack.c.l.b16 %v1581
        %v1692 = vunpack.c.h.b16 %v1581
        %v1693 = vunpack.c.l.b16 %v1582
        %v1694 = vunpack.c.h.b16 %v1582
        %v1695 = vunpack.c.l.b16 %v1583
        %v1696 = vunpack.c.h.b16 %v1583
        %v1697 = vunpack.c.l.b16 %v1584
        %v1698 = vunpack.c.h.b16 %v1584
        %v1699 = vunpack.c.l.b16 %v1585
        %v1700 = vunpack.c.h.b16 %v1585
        %v1701 = vunpack.c.l.b16 %v1586
        %v1702 = vunpack.c.h.b16 %v1586
        %v1703 = vunpack.c.l.b16 %v1587
        %v1704 = vunpack.c.h.b16 %v1587
        %v1705 = vpack.c.b16 %v1645, %v1641
        %v1706 = vpack.c.b16 %v1646, %v1642
        %v1707 = vpack.c.b16 %v1647, %v1643
        %v1708 = vpack.c.b16 %v1648, %v1644
        %v1709 = vpack.c.b16 %v1653, %v1649
        %v1710 = vpack.c.b16 %v1654, %v1650
        %v1711 = vpack.c.b16 %v1655, %v1651
        %v1712 = vpack.c.b16 %v1656, %v1652
        %v1713 = vpack.c.b16 %v1661, %v1657
        %v1714 = vpack.c.b16 %v1662, %v1658
        %v1715 = vpack.c.b16 %v1663, %v1659
        %v1716 = vpack.c.b16 %v1664, %v1660
        %v1717 = vpack.c.b16 %v1669, %v1665
        %v1718 = vpack.c.b16 %v1670, %v1666
        %v1719 = vpack.c.b16 %v1671, %v1667
        %v1720 = vpack.c.b16 %v1672, %v1668
        %v1721 = vpack.c.b16 %v1677, %v1673
        %v1722 = vpack.c.b16 %v1678, %v1674
        %v1723 = vpack.c.b16 %v1679, %v1675
        %v1724 = vpack.c.b16 %v1680, %v1676
        %v1725 = vpack.c.b16 %v1685, %v1681
        %v1726 = vpack.c.b16 %v1686, %v1682
        %v1727 = vpack.c.b16 %v1687, %v1683
        %v1728 = vpack.c.b16 %v1688, %v1684
        %v1729 = vpack.c.b16 %v1693, %v1689
        %v1730 = vpack.c.b16 %v1694, %v1690
        %v1731 = vpack.c.b16 %v1695, %v1691
        %v1732 = vpack.c.b16 %v1696, %v1692
        %v1733 = vpack.c.b16 %v1701, %v1697
        %v1734 = vpack.c.b16 %v1702, %v1698
        %v1735 = vpack.c.b16 %v1703, %v1699
        %v1736 = vpack.c.b16 %v1704, %v1700
        %1769 = vmatpush.bf16.msra.mxu0 %v1733
        %1770 = vmatpush.bf16.msra.mxu0 %v1729
        %1771 = vmatpush.bf16.msra.mxu0 %v1725
        %1772 = vmatpush.bf16.msra.mxu0 %v1721
        %1773 = vmatpush.bf16.msra.mxu0 %v1717
        %1774 = vmatpush.bf16.msra.mxu0 %v1713
        %1775 = vmatpush.bf16.msra.mxu0 %v1709
        %1776 = vmatpush.bf16.msra.mxu0 %v1705
        %1777 = vmatmul.bf16.gmra.mxu0 %v1605
        %v1778 = vpop.f32.mrf.mxu0
        %v1779 = vadd.f32 %v1589, %v1778
        %v1780 = vpop.f32.mrf.mxu0
        %v1781 = vadd.f32 %v1589, %v1780
        %1782 = vmatmul.bf16.gmra.mxu0 %v1606
        %v1783 = vpop.f32.mrf.mxu0
        %v1784 = vadd.f32 %v1589, %v1783
        %v1785 = vpop.f32.mrf.mxu0
        %v1786 = vadd.f32 %v1589, %v1785
        %1787 = vdwg.mxu0
        %1788 = vmatpush.bf16.msra.mxu0 %v1734
        %1789 = vmatpush.bf16.msra.mxu0 %v1730
        %1790 = vmatpush.bf16.msra.mxu0 %v1726
        %1791 = vmatpush.bf16.msra.mxu0 %v1722
        %1792 = vmatpush.bf16.msra.mxu0 %v1718
        %1793 = vmatpush.bf16.msra.mxu0 %v1714
        %1794 = vmatpush.bf16.msra.mxu0 %v1710
        %1795 = vmatpush.bf16.msra.mxu0 %v1706
        %1796 = vmatmul.bf16.gmra.mxu0 %v1605
        %v1797 = vpop.f32.mrf.mxu0
        %v1798 = vadd.f32 %v1590, %v1797
        %v1799 = vpop.f32.mrf.mxu0
        %v1800 = vadd.f32 %v1590, %v1799
        %1801 = vmatmul.bf16.gmra.mxu0 %v1606
        %v1802 = vpop.f32.mrf.mxu0
        %v1803 = vadd.f32 %v1590, %v1802
        %v1804 = vpop.f32.mrf.mxu0
        %v1805 = vadd.f32 %v1590, %v1804
        %1806 = vdwg.mxu0
        %1807 = vmatpush.bf16.msra.mxu0 %v1735
        %1808 = vmatpush.bf16.msra.mxu0 %v1731
        %1809 = vmatpush.bf16.msra.mxu0 %v1727
        %1810 = vmatpush.bf16.msra.mxu0 %v1723
        %1811 = vmatpush.bf16.msra.mxu0 %v1719
        %1812 = vmatpush.bf16.msra.mxu0 %v1715
        %1813 = vmatpush.bf16.msra.mxu0 %v1711
        %1814 = vmatpush.bf16.msra.mxu0 %v1707
        %1815 = vmatmul.bf16.gmra.mxu0 %v1605
        %v1816 = vpop.f32.mrf.mxu0
        %v1817 = vadd.f32 %v1591, %v1816
        %v1818 = vpop.f32.mrf.mxu0
        %v1819 = vadd.f32 %v1591, %v1818
        %1820 = vmatmul.bf16.gmra.mxu0 %v1606
        %v1821 = vpop.f32.mrf.mxu0
        %v1822 = vadd.f32 %v1591, %v1821
        %v1823 = vpop.f32.mrf.mxu0
        %v1824 = vadd.f32 %v1591, %v1823
        %1825 = vdwg.mxu0
        %1826 = vmatpush.bf16.msra.mxu0 %v1736
        %1827 = vmatpush.bf16.msra.mxu0 %v1732
        %1828 = vmatpush.bf16.msra.mxu0 %v1728
        %1829 = vmatpush.bf16.msra.mxu0 %v1724
        %1830 = vmatpush.bf16.msra.mxu0 %v1720
        %1831 = vmatpush.bf16.msra.mxu0 %v1716
        %1832 = vmatpush.bf16.msra.mxu0 %v1712
        %1833 = vmatpush.bf16.msra.mxu0 %v1708
        %1834 = vmatmul.bf16.gmra.mxu0 %v1605
        %v1835 = vpop.f32.mrf.mxu0
        %v1836 = vadd.f32 %v1592, %v1835
        %v1837 = vpop.f32.mrf.mxu0
        %v1838 = vadd.f32 %v1592, %v1837
        %1839 = vmatmul.bf16.gmra.mxu0 %v1606
        %v1840 = vpop.f32.mrf.mxu0
        %v1841 = vadd.f32 %v1592, %v1840
        %v1842 = vpop.f32.mrf.mxu0
        %v1843 = vadd.f32 %v1592, %v1842
        %1844 = vdwg.mxu0
        %1845 = vst [vmem:[#allocation5] sm:$0xff] %v1779
        %1846 = vst [vmem:[#allocation5 + $0x8] sm:$0xff] %v1798
        %1847 = vst [vmem:[#allocation5 + $0x10] sm:$0xff] %v1817
        %1848 = vst [vmem:[#allocation5 + $0x18] sm:$0xff] %v1836
        %1849 = vst [vmem:[#allocation5 + $0x20] sm:$0xff] %v1781
        %1850 = vst [vmem:[#allocation5 + $0x28] sm:$0xff] %v1800
        %1851 = vst [vmem:[#allocation5 + $0x30] sm:$0xff] %v1819
        %1852 = vst [vmem:[#allocation5 + $0x38] sm:$0xff] %v1838
        %1853 = vst [vmem:[#allocation5 + $0x40] sm:$0xff] %v1784
        %1854 = vst [vmem:[#allocation5 + $0x48] sm:$0xff] %v1803
        %1855 = vst [vmem:[#allocation5 + $0x50] sm:$0xff] %v1822
        %1856 = vst [vmem:[#allocation5 + $0x58] sm:$0xff] %v1841
        %1857 = vst [vmem:[#allocation5 + $0x60] sm:$0xff] %v1786
        %1858 = vst [vmem:[#allocation5 + $0x68] sm:$0xff] %v1805
        %1859 = vst [vmem:[#allocation5 + $0x70] sm:$0xff] %v1824
        %1860 = vst [vmem:[#allocation5 + $0x78] sm:$0xff] %v1843
        %s1861 = scalar_lea.vmem [#allocation2], 8
        %v1862 = vld [vmem:[%s1861] sm:$0xff]
        %s1863 = scalar_lea.vmem [#allocation3], 8
        %v1864 = vld [vmem:[%s1863] sm:$0xff]
        %v1865 = vld [vmem:[#allocation5] sm:$0xff]
        %v1866 = vld [vmem:[#allocation5 + $0x8] sm:$0xff]
        %v1867 = vld [vmem:[#allocation5 + $0x10] sm:$0xff]
        %v1868 = vld [vmem:[#allocation5 + $0x18] sm:$0xff]
        %v1869 = vpack.c.bf16 %v1862, %v1862
        %v1902 = vunpack.c.l.b16 %v1517
        %v1903 = vunpack.c.h.b16 %v1517
        %v1904 = vunpack.c.l.b16 %v1518
        %v1905 = vunpack.c.h.b16 %v1518
        %v1906 = vunpack.c.l.b16 %v1519
        %v1907 = vunpack.c.h.b16 %v1519
        %v1908 = vunpack.c.l.b16 %v1520
        %v1909 = vunpack.c.h.b16 %v1520
        %v1910 = vunpack.c.l.b16 %v1521
        %v1911 = vunpack.c.h.b16 %v1521
        %v1912 = vunpack.c.l.b16 %v1522
        %v1913 = vunpack.c.h.b16 %v1522
        %v1914 = vunpack.c.l.b16 %v1523
        %v1915 = vunpack.c.h.b16 %v1523
        %v1916 = vunpack.c.l.b16 %v1524
        %v1917 = vunpack.c.h.b16 %v1524
        %v1918 = vunpack.c.l.b16 %v1525
        %v1919 = vunpack.c.h.b16 %v1525
        %v1920 = vunpack.c.l.b16 %v1526
        %v1921 = vunpack.c.h.b16 %v1526
        %v1922 = vunpack.c.l.b16 %v1527
        %v1923 = vunpack.c.h.b16 %v1527
        %v1924 = vunpack.c.l.b16 %v1528
        %v1925 = vunpack.c.h.b16 %v1528
        %v1926 = vunpack.c.l.b16 %v1529
        %v1927 = vunpack.c.h.b16 %v1529
        %v1928 = vunpack.c.l.b16 %v1530
        %v1929 = vunpack.c.h.b16 %v1530
        %v1930 = vunpack.c.l.b16 %v1531
        %v1931 = vunpack.c.h.b16 %v1531
        %v1932 = vunpack.c.l.b16 %v1532
        %v1933 = vunpack.c.h.b16 %v1532
        %v1934 = vunpack.c.l.b16 %v1533
        %v1935 = vunpack.c.h.b16 %v1533
        %v1936 = vunpack.c.l.b16 %v1534
        %v1937 = vunpack.c.h.b16 %v1534
        %v1938 = vunpack.c.l.b16 %v1535
        %v1939 = vunpack.c.h.b16 %v1535
        %v1940 = vunpack.c.l.b16 %v1536
        %v1941 = vunpack.c.h.b16 %v1536
        %v1942 = vunpack.c.l.b16 %v1537
        %v1943 = vunpack.c.h.b16 %v1537
        %v1944 = vunpack.c.l.b16 %v1538
        %v1945 = vunpack.c.h.b16 %v1538
        %v1946 = vunpack.c.l.b16 %v1539
        %v1947 = vunpack.c.h.b16 %v1539
        %v1948 = vunpack.c.l.b16 %v1540
        %v1949 = vunpack.c.h.b16 %v1540
        %v1950 = vunpack.c.l.b16 %v1541
        %v1951 = vunpack.c.h.b16 %v1541
        %v1952 = vunpack.c.l.b16 %v1542
        %v1953 = vunpack.c.h.b16 %v1542
        %v1954 = vunpack.c.l.b16 %v1543
        %v1955 = vunpack.c.h.b16 %v1543
        %v1956 = vunpack.c.l.b16 %v1544
        %v1957 = vunpack.c.h.b16 %v1544
        %v1958 = vunpack.c.l.b16 %v1545
        %v1959 = vunpack.c.h.b16 %v1545
        %v1960 = vunpack.c.l.b16 %v1546
        %v1961 = vunpack.c.h.b16 %v1546
        %v1962 = vunpack.c.l.b16 %v1547
        %v1963 = vunpack.c.h.b16 %v1547
        %v1964 = vunpack.c.l.b16 %v1548
        %v1965 = vunpack.c.h.b16 %v1548
        %v1966 = vpack.c.b16 %v1906, %v1902
        %v1967 = vpack.c.b16 %v1907, %v1903
        %v1968 = vpack.c.b16 %v1908, %v1904
        %v1969 = vpack.c.b16 %v1909, %v1905
        %v1970 = vpack.c.b16 %v1914, %v1910
        %v1971 = vpack.c.b16 %v1915, %v1911
        %v1972 = vpack.c.b16 %v1916, %v1912
        %v1973 = vpack.c.b16 %v1917, %v1913
        %v1974 = vpack.c.b16 %v1922, %v1918
        %v1975 = vpack.c.b16 %v1923, %v1919
        %v1976 = vpack.c.b16 %v1924, %v1920
        %v1977 = vpack.c.b16 %v1925, %v1921
        %v1978 = vpack.c.b16 %v1930, %v1926
        %v1979 = vpack.c.b16 %v1931, %v1927
        %v1980 = vpack.c.b16 %v1932, %v1928
        %v1981 = vpack.c.b16 %v1933, %v1929
        %v1982 = vpack.c.b16 %v1938, %v1934
        %v1983 = vpack.c.b16 %v1939, %v1935
        %v1984 = vpack.c.b16 %v1940, %v1936
        %v1985 = vpack.c.b16 %v1941, %v1937
        %v1986 = vpack.c.b16 %v1946, %v1942
        %v1987 = vpack.c.b16 %v1947, %v1943
        %v1988 = vpack.c.b16 %v1948, %v1944
        %v1989 = vpack.c.b16 %v1949, %v1945
        %v1990 = vpack.c.b16 %v1954, %v1950
        %v1991 = vpack.c.b16 %v1955, %v1951
        %v1992 = vpack.c.b16 %v1956, %v1952
        %v1993 = vpack.c.b16 %v1957, %v1953
        %v1994 = vpack.c.b16 %v1962, %v1958
        %v1995 = vpack.c.b16 %v1963, %v1959
        %v1996 = vpack.c.b16 %v1964, %v1960
        %v1997 = vpack.c.b16 %v1965, %v1961
        %2030 = vmatpush.bf16.msra.mxu0 %v1994
        %2031 = vmatpush.bf16.msra.mxu0 %v1990
        %2032 = vmatpush.bf16.msra.mxu0 %v1986
        %2033 = vmatpush.bf16.msra.mxu0 %v1982
        %2034 = vmatpush.bf16.msra.mxu0 %v1978
        %2035 = vmatpush.bf16.msra.mxu0 %v1974
        %2036 = vmatpush.bf16.msra.mxu0 %v1970
        %2037 = vmatpush.bf16.msra.mxu0 %v1966
        %2038 = vmatmul.bf16.gmra.mxu0 %v1869
        %v2039 = vpop.f32.mrf.mxu0
        %v2040 = vadd.f32 0.0, %v2039
        %v2041 = vpop.f32.mrf.mxu0
        %2042 = vdwg.mxu0
        %2043 = vmatpush.bf16.msra.mxu0 %v1995
        %2044 = vmatpush.bf16.msra.mxu0 %v1991
        %2045 = vmatpush.bf16.msra.mxu0 %v1987
        %2046 = vmatpush.bf16.msra.mxu0 %v1983
        %2047 = vmatpush.bf16.msra.mxu0 %v1979
        %2048 = vmatpush.bf16.msra.mxu0 %v1975
        %2049 = vmatpush.bf16.msra.mxu0 %v1971
        %2050 = vmatpush.bf16.msra.mxu0 %v1967
        %2051 = vmatmul.bf16.gmra.mxu0 %v1869
        %v2052 = vpop.f32.mrf.mxu0
        %v2053 = vadd.f32 0.0, %v2052
        %v2054 = vpop.f32.mrf.mxu0
        %2055 = vdwg.mxu0
        %2056 = vmatpush.bf16.msra.mxu0 %v1996
        %2057 = vmatpush.bf16.msra.mxu0 %v1992
        %2058 = vmatpush.bf16.msra.mxu0 %v1988
        %2059 = vmatpush.bf16.msra.mxu0 %v1984
        %2060 = vmatpush.bf16.msra.mxu0 %v1980
        %2061 = vmatpush.bf16.msra.mxu0 %v1976
        %2062 = vmatpush.bf16.msra.mxu0 %v1972
        %2063 = vmatpush.bf16.msra.mxu0 %v1968
        %2064 = vmatmul.bf16.gmra.mxu0 %v1869
        %v2065 = vpop.f32.mrf.mxu0
        %v2066 = vadd.f32 0.0, %v2065
        %v2067 = vpop.f32.mrf.mxu0
        %2068 = vdwg.mxu0
        %2069 = vmatpush.bf16.msra.mxu0 %v1997
        %2070 = vmatpush.bf16.msra.mxu0 %v1993
        %2071 = vmatpush.bf16.msra.mxu0 %v1989
        %2072 = vmatpush.bf16.msra.mxu0 %v1985
        %2073 = vmatpush.bf16.msra.mxu0 %v1981
        %2074 = vmatpush.bf16.msra.mxu0 %v1977
        %2075 = vmatpush.bf16.msra.mxu0 %v1973
        %2076 = vmatpush.bf16.msra.mxu0 %v1969
        %2077 = vmatmul.bf16.gmra.mxu0 %v1869
        %v2078 = vpop.f32.mrf.mxu0
        %v2079 = vadd.f32 0.0, %v2078
        %v2080 = vpop.f32.mrf.mxu0
        %2081 = vdwg.mxu0
        %v2082 = vadd.f32 %v1865, %v2040
        %v2083 = vadd.f32 %v1866, %v2053
        %v2084 = vadd.f32 %v1867, %v2066
        %v2085 = vadd.f32 %v1868, %v2079
        %v2086 = vxor.u32 %v2082, 2147483648
        %v2087 = vmul.f32 %v2086, 1.442695
        %v2088 = vpow.pop %v2087
        %v2089 = vadd.f32 %v2088, 1.0
        %v2090 = vrcp.pop %v2089
        %v2091 = vmul.f32 %v2089, %v2090
        %v2092 = vsub.f32 1.0, %v2091
        %v2093 = vmul.f32 %v2090, %v2092
        %v2094 = vadd.f32 %v2090, %v2093
        %vm2095 = vweird.f32 %v2089
        %vm2096 = vweird.f32 %v2090
        %vm2097 = vmor %vm2095, %vm2096
        %v2098 = vsel %vm2097, %v2090, %v2094
        %v2099 = vand.u32 2147483647, %v2089
        %vm2100 = vcmp.eq.f32.partialorder %v2099, 8.507059e+37
        %v2101 = vand.u32 %v2089, 2147483648
        %v2102 = vor.u32 1.1754944e-38, %v2101
        %v2103 = vsel %vm2100, %v2102, %v2098
        %v2104 = vmul.f32 1.0, %v2103
        %v2105 = vxor.u32 %v2083, 2147483648
        %v2106 = vmul.f32 %v2105, 1.442695
        %v2107 = vpow.pop %v2106
        %v2108 = vadd.f32 %v2107, 1.0
        %v2109 = vrcp.pop %v2108
        %v2110 = vmul.f32 %v2108, %v2109
        %v2111 = vsub.f32 1.0, %v2110
        %v2112 = vmul.f32 %v2109, %v2111
        %v2113 = vadd.f32 %v2109, %v2112
        %vm2114 = vweird.f32 %v2108
        %vm2115 = vweird.f32 %v2109
        %vm2116 = vmor %vm2114, %vm2115
        %v2117 = vsel %vm2116, %v2109, %v2113
        %v2118 = vand.u32 2147483647, %v2108
        %vm2119 = vcmp.eq.f32.partialorder %v2118, 8.507059e+37
        %v2120 = vand.u32 %v2108, 2147483648
        %v2121 = vor.u32 1.1754944e-38, %v2120
        %v2122 = vsel %vm2119, %v2121, %v2117
        %v2123 = vmul.f32 1.0, %v2122
        %v2124 = vtanh.pop %v2084
        %v2125 = vxor.u32 %v2085, 2147483648
        %v2126 = vmul.f32 %v2125, 1.442695
        %v2127 = vpow.pop %v2126
        %v2128 = vadd.f32 %v2127, 1.0
        %v2129 = vrcp.pop %v2128
        %v2130 = vmul.f32 %v2128, %v2129
        %v2131 = vsub.f32 1.0, %v2130
        %v2132 = vmul.f32 %v2129, %v2131
        %v2133 = vadd.f32 %v2129, %v2132
        %vm2134 = vweird.f32 %v2128
        %vm2135 = vweird.f32 %v2129
        %vm2136 = vmor %vm2134, %vm2135
        %v2137 = vsel %vm2136, %v2129, %v2133
        %v2138 = vand.u32 2147483647, %v2128
        %vm2139 = vcmp.eq.f32.partialorder %v2138, 8.507059e+37
        %v2140 = vand.u32 %v2128, 2147483648
        %v2141 = vor.u32 1.1754944e-38, %v2140
        %v2142 = vsel %vm2139, %v2141, %v2137
        %v2143 = vmul.f32 1.0, %v2142
        %v2144 = vmul.f32 %v2123, %v1864
        %v2145 = vmul.f32 %v2104, %v2124
        %v2146 = vadd.f32 %v2144, %v2145
        %v2147 = vtanh.pop %v2146
        %v2148 = vmul.f32 %v2143, %v2147
        %v2149 = vpack.c.bf16 %v2148, %v2148
        %2150 = vst [vmem:[#allocation4] sm:$0xf] %v2149
        %v2151 = vld [vmem:[%s1133] sm:$0xff]
        %v2152 = vld [vmem:[%s1133 + $0x8] sm:$0xff]
        %v2153 = vld [vmem:[%s1133 + $0x10] sm:$0xff]
        %v2154 = vld [vmem:[%s1133 + $0x18] sm:$0xff]
        %2155 = vmatpush.bf16.msra.mxu0 %v1994
        %2156 = vmatpush.bf16.msra.mxu0 %v1990
        %2157 = vmatpush.bf16.msra.mxu0 %v1986
        %2158 = vmatpush.bf16.msra.mxu0 %v1982
        %2159 = vmatpush.bf16.msra.mxu0 %v1978
        %2160 = vmatpush.bf16.msra.mxu0 %v1974
        %2161 = vmatpush.bf16.msra.mxu0 %v1970
        %2162 = vmatpush.bf16.msra.mxu0 %v1966
        %2163 = vmatmul.bf16.gmra.mxu0 %v2149
        %v2164 = vpop.f32.mrf.mxu0
        %v2165 = vadd.f32 0.0, %v2164
        %v2166 = vpop.f32.mrf.mxu0
        %2167 = vdwg.mxu0
        %2168 = vmatpush.bf16.msra.mxu0 %v1995
        %2169 = vmatpush.bf16.msra.mxu0 %v1991
        %2170 = vmatpush.bf16.msra.mxu0 %v1987
        %2171 = vmatpush.bf16.msra.mxu0 %v1983
        %2172 = vmatpush.bf16.msra.mxu0 %v1979
        %2173 = vmatpush.bf16.msra.mxu0 %v1975
        %2174 = vmatpush.bf16.msra.mxu0 %v1971
        %2175 = vmatpush.bf16.msra.mxu0 %v1967
        %2176 = vmatmul.bf16.gmra.mxu0 %v2149
        %v2177 = vpop.f32.mrf.mxu0
        %v2178 = vadd.f32 0.0, %v2177
        %v2179 = vpop.f32.mrf.mxu0
        %2180 = vdwg.mxu0
        %2181 = vmatpush.bf16.msra.mxu0 %v1996
        %2182 = vmatpush.bf16.msra.mxu0 %v1992
        %2183 = vmatpush.bf16.msra.mxu0 %v1988
        %2184 = vmatpush.bf16.msra.mxu0 %v1984
        %2185 = vmatpush.bf16.msra.mxu0 %v1980
        %2186 = vmatpush.bf16.msra.mxu0 %v1976
        %2187 = vmatpush.bf16.msra.mxu0 %v1972
        %2188 = vmatpush.bf16.msra.mxu0 %v1968
        %2189 = vmatmul.bf16.gmra.mxu0 %v2149
        %v2190 = vpop.f32.mrf.mxu0
        %v2191 = vadd.f32 0.0, %v2190
        %v2192 = vpop.f32.mrf.mxu0
        %2193 = vdwg.mxu0
        %2194 = vmatpush.bf16.msra.mxu0 %v1997
        %2195 = vmatpush.bf16.msra.mxu0 %v1993
        %2196 = vmatpush.bf16.msra.mxu0 %v1989
        %2197 = vmatpush.bf16.msra.mxu0 %v1985
        %2198 = vmatpush.bf16.msra.mxu0 %v1981
        %2199 = vmatpush.bf16.msra.mxu0 %v1977
        %2200 = vmatpush.bf16.msra.mxu0 %v1973
        %2201 = vmatpush.bf16.msra.mxu0 %v1969
        %2202 = vmatmul.bf16.gmra.mxu0 %v2149
        %v2203 = vpop.f32.mrf.mxu0
        %v2204 = vadd.f32 0.0, %v2203
        %v2205 = vpop.f32.mrf.mxu0
        %2206 = vdwg.mxu0
        %v2207 = vadd.f32 %v2151, %v2165
        %v2208 = vadd.f32 %v2152, %v2178
        %v2209 = vadd.f32 %v2153, %v2191
        %v2210 = vadd.f32 %v2154, %v2204
        %v2211 = vxor.u32 %v2207, 2147483648
        %v2212 = vmul.f32 %v2211, 1.442695
        %v2213 = vpow.pop %v2212
        %v2214 = vadd.f32 %v2213, 1.0
        %v2215 = vrcp.pop %v2214
        %v2216 = vmul.f32 %v2214, %v2215
        %v2217 = vsub.f32 1.0, %v2216
        %v2218 = vmul.f32 %v2215, %v2217
        %v2219 = vadd.f32 %v2215, %v2218
        %vm2220 = vweird.f32 %v2214
        %vm2221 = vweird.f32 %v2215
        %vm2222 = vmor %vm2220, %vm2221
        %v2223 = vsel %vm2222, %v2215, %v2219
        %v2224 = vand.u32 2147483647, %v2214
        %vm2225 = vcmp.eq.f32.partialorder %v2224, 8.507059e+37
        %v2226 = vand.u32 %v2214, 2147483648
        %v2227 = vor.u32 1.1754944e-38, %v2226
        %v2228 = vsel %vm2225, %v2227, %v2223
        %v2229 = vmul.f32 1.0, %v2228
        %v2230 = vxor.u32 %v2208, 2147483648
        %v2231 = vmul.f32 %v2230, 1.442695
        %v2232 = vpow.pop %v2231
        %v2233 = vadd.f32 %v2232, 1.0
        %v2234 = vrcp.pop %v2233
        %v2235 = vmul.f32 %v2233, %v2234
        %v2236 = vsub.f32 1.0, %v2235
        %v2237 = vmul.f32 %v2234, %v2236
        %v2238 = vadd.f32 %v2234, %v2237
        %vm2239 = vweird.f32 %v2233
        %vm2240 = vweird.f32 %v2234
        %vm2241 = vmor %vm2239, %vm2240
        %v2242 = vsel %vm2241, %v2234, %v2238
        %v2243 = vand.u32 2147483647, %v2233
        %vm2244 = vcmp.eq.f32.partialorder %v2243, 8.507059e+37
        %v2245 = vand.u32 %v2233, 2147483648
        %v2246 = vor.u32 1.1754944e-38, %v2245
        %v2247 = vsel %vm2244, %v2246, %v2242
        %v2248 = vmul.f32 1.0, %v2247
        %v2249 = vtanh.pop %v2209
        %v2250 = vxor.u32 %v2210, 2147483648
        %v2251 = vmul.f32 %v2250, 1.442695
        %v2252 = vpow.pop %v2251
        %v2253 = vadd.f32 %v2252, 1.0
        %v2254 = vrcp.pop %v2253
        %v2255 = vmul.f32 %v2253, %v2254
        %v2256 = vsub.f32 1.0, %v2255
        %v2257 = vmul.f32 %v2254, %v2256
        %v2258 = vadd.f32 %v2254, %v2257
        %vm2259 = vweird.f32 %v2253
        %vm2260 = vweird.f32 %v2254
        %vm2261 = vmor %vm2259, %vm2260
        %v2262 = vsel %vm2261, %v2254, %v2258
        %v2263 = vand.u32 2147483647, %v2253
        %vm2264 = vcmp.eq.f32.partialorder %v2263, 8.507059e+37
        %v2265 = vand.u32 %v2253, 2147483648
        %v2266 = vor.u32 1.1754944e-38, %v2265
        %v2267 = vsel %vm2264, %v2266, %v2262
        %v2268 = vmul.f32 1.0, %v2267
        %v2269 = vmul.f32 %v2248, %v2146
        %v2270 = vmul.f32 %v2229, %v2249
        %v2271 = vadd.f32 %v2269, %v2270
        %v2272 = vtanh.pop %v2271
        %v2273 = vmul.f32 %v2268, %v2272
        %v2274 = vpack.c.bf16 %v2273, %v2273
        %2275 = vst [vmem:[%s1258] sm:$0xf] %v2274
        %v2276 = vld [vmem:[%s1260] sm:$0xff]
        %v2277 = vld [vmem:[%s1260 + $0x8] sm:$0xff]
        %v2278 = vld [vmem:[%s1260 + $0x10] sm:$0xff]
        %v2279 = vld [vmem:[%s1260 + $0x18] sm:$0xff]
        %2280 = vmatpush.bf16.msra.mxu0 %v1994
        %2281 = vmatpush.bf16.msra.mxu0 %v1990
        %2282 = vmatpush.bf16.msra.mxu0 %v1986
        %2283 = vmatpush.bf16.msra.mxu0 %v1982
        %2284 = vmatpush.bf16.msra.mxu0 %v1978
        %2285 = vmatpush.bf16.msra.mxu0 %v1974
        %2286 = vmatpush.bf16.msra.mxu0 %v1970
        %2287 = vmatpush.bf16.msra.mxu0 %v1966
        %2288 = vmatmul.bf16.gmra.mxu0 %v2274
        %v2289 = vpop.f32.mrf.mxu0
        %v2290 = vadd.f32 0.0, %v2289
        %v2291 = vpop.f32.mrf.mxu0
        %2292 = vdwg.mxu0
        %2293 = vmatpush.bf16.msra.mxu0 %v1995
        %2294 = vmatpush.bf16.msra.mxu0 %v1991
        %2295 = vmatpush.bf16.msra.mxu0 %v1987
        %2296 = vmatpush.bf16.msra.mxu0 %v1983
        %2297 = vmatpush.bf16.msra.mxu0 %v1979
        %2298 = vmatpush.bf16.msra.mxu0 %v1975
        %2299 = vmatpush.bf16.msra.mxu0 %v1971
        %2300 = vmatpush.bf16.msra.mxu0 %v1967
        %2301 = vmatmul.bf16.gmra.mxu0 %v2274
        %v2302 = vpop.f32.mrf.mxu0
        %v2303 = vadd.f32 0.0, %v2302
        %v2304 = vpop.f32.mrf.mxu0
        %2305 = vdwg.mxu0
        %2306 = vmatpush.bf16.msra.mxu0 %v1996
        %2307 = vmatpush.bf16.msra.mxu0 %v1992
        %2308 = vmatpush.bf16.msra.mxu0 %v1988
        %2309 = vmatpush.bf16.msra.mxu0 %v1984
        %2310 = vmatpush.bf16.msra.mxu0 %v1980
        %2311 = vmatpush.bf16.msra.mxu0 %v1976
        %2312 = vmatpush.bf16.msra.mxu0 %v1972
        %2313 = vmatpush.bf16.msra.mxu0 %v1968
        %2314 = vmatmul.bf16.gmra.mxu0 %v2274
        %v2315 = vpop.f32.mrf.mxu0
        %v2316 = vadd.f32 0.0, %v2315
        %v2317 = vpop.f32.mrf.mxu0
        %2318 = vdwg.mxu0
        %2319 = vmatpush.bf16.msra.mxu0 %v1997
        %2320 = vmatpush.bf16.msra.mxu0 %v1993
        %2321 = vmatpush.bf16.msra.mxu0 %v1989
        %2322 = vmatpush.bf16.msra.mxu0 %v1985
        %2323 = vmatpush.bf16.msra.mxu0 %v1981
        %2324 = vmatpush.bf16.msra.mxu0 %v1977
        %2325 = vmatpush.bf16.msra.mxu0 %v1973
        %2326 = vmatpush.bf16.msra.mxu0 %v1969
        %2327 = vmatmul.bf16.gmra.mxu0 %v2274
        %v2328 = vpop.f32.mrf.mxu0
        %v2329 = vadd.f32 0.0, %v2328
        %v2330 = vpop.f32.mrf.mxu0
        %2331 = vdwg.mxu0
        %v2332 = vadd.f32 %v2276, %v2290
        %v2333 = vadd.f32 %v2277, %v2303
        %v2334 = vadd.f32 %v2278, %v2316
        %v2335 = vadd.f32 %v2279, %v2329
        %v2336 = vxor.u32 %v2332, 2147483648
        %v2337 = vmul.f32 %v2336, 1.442695
        %v2338 = vpow.pop %v2337
        %v2339 = vadd.f32 %v2338, 1.0
        %v2340 = vrcp.pop %v2339
        %v2341 = vmul.f32 %v2339, %v2340
        %v2342 = vsub.f32 1.0, %v2341
        %v2343 = vmul.f32 %v2340, %v2342
        %v2344 = vadd.f32 %v2340, %v2343
        %vm2345 = vweird.f32 %v2339
        %vm2346 = vweird.f32 %v2340
        %vm2347 = vmor %vm2345, %vm2346
        %v2348 = vsel %vm2347, %v2340, %v2344
        %v2349 = vand.u32 2147483647, %v2339
        %vm2350 = vcmp.eq.f32.partialorder %v2349, 8.507059e+37
        %v2351 = vand.u32 %v2339, 2147483648
        %v2352 = vor.u32 1.1754944e-38, %v2351
        %v2353 = vsel %vm2350, %v2352, %v2348
        %v2354 = vmul.f32 1.0, %v2353
        %v2355 = vxor.u32 %v2333, 2147483648
        %v2356 = vmul.f32 %v2355, 1.442695
        %v2357 = vpow.pop %v2356
        %v2358 = vadd.f32 %v2357, 1.0
        %v2359 = vrcp.pop %v2358
        %v2360 = vmul.f32 %v2358, %v2359
        %v2361 = vsub.f32 1.0, %v2360
        %v2362 = vmul.f32 %v2359, %v2361
        %v2363 = vadd.f32 %v2359, %v2362
        %vm2364 = vweird.f32 %v2358
        %vm2365 = vweird.f32 %v2359
        %vm2366 = vmor %vm2364, %vm2365
        %v2367 = vsel %vm2366, %v2359, %v2363
        %v2368 = vand.u32 2147483647, %v2358
        %vm2369 = vcmp.eq.f32.partialorder %v2368, 8.507059e+37
        %v2370 = vand.u32 %v2358, 2147483648
        %v2371 = vor.u32 1.1754944e-38, %v2370
        %v2372 = vsel %vm2369, %v2371, %v2367
        %v2373 = vmul.f32 1.0, %v2372
        %v2374 = vtanh.pop %v2334
        %v2375 = vxor.u32 %v2335, 2147483648
        %v2376 = vmul.f32 %v2375, 1.442695
        %v2377 = vpow.pop %v2376
        %v2378 = vadd.f32 %v2377, 1.0
        %v2379 = vrcp.pop %v2378
        %v2380 = vmul.f32 %v2378, %v2379
        %v2381 = vsub.f32 1.0, %v2380
        %v2382 = vmul.f32 %v2379, %v2381
        %v2383 = vadd.f32 %v2379, %v2382
        %vm2384 = vweird.f32 %v2378
        %vm2385 = vweird.f32 %v2379
        %vm2386 = vmor %vm2384, %vm2385
        %v2387 = vsel %vm2386, %v2379, %v2383
        %v2388 = vand.u32 2147483647, %v2378
        %vm2389 = vcmp.eq.f32.partialorder %v2388, 8.507059e+37
        %v2390 = vand.u32 %v2378, 2147483648
        %v2391 = vor.u32 1.1754944e-38, %v2390
        %v2392 = vsel %vm2389, %v2391, %v2387
        %v2393 = vmul.f32 1.0, %v2392
        %v2394 = vmul.f32 %v2373, %v2271
        %v2395 = vmul.f32 %v2354, %v2374
        %v2396 = vadd.f32 %v2394, %v2395
        %v2397 = vtanh.pop %v2396
        %v2398 = vmul.f32 %v2393, %v2397
        %v2399 = vpack.c.bf16 %v2398, %v2398
        %2400 = vst [vmem:[%s1385] sm:$0xf] %v2399
        %v2401 = vld [vmem:[%s1387] sm:$0xff]
        %v2402 = vld [vmem:[%s1387 + $0x8] sm:$0xff]
        %v2403 = vld [vmem:[%s1387 + $0x10] sm:$0xff]
        %v2404 = vld [vmem:[%s1387 + $0x18] sm:$0xff]
        %2405 = vmatpush.bf16.msra.mxu0 %v1994
        %2406 = vmatpush.bf16.msra.mxu0 %v1990
        %2407 = vmatpush.bf16.msra.mxu0 %v1986
        %2408 = vmatpush.bf16.msra.mxu0 %v1982
        %2409 = vmatpush.bf16.msra.mxu0 %v1978
        %2410 = vmatpush.bf16.msra.mxu0 %v1974
        %2411 = vmatpush.bf16.msra.mxu0 %v1970
        %2412 = vmatpush.bf16.msra.mxu0 %v1966
        %2413 = vmatmul.bf16.gmra.mxu0 %v2399
        %v2414 = vpop.f32.mrf.mxu0
        %v2415 = vadd.f32 0.0, %v2414
        %v2416 = vpop.f32.mrf.mxu0
        %2417 = vdwg.mxu0
        %2418 = vmatpush.bf16.msra.mxu0 %v1995
        %2419 = vmatpush.bf16.msra.mxu0 %v1991
        %2420 = vmatpush.bf16.msra.mxu0 %v1987
        %2421 = vmatpush.bf16.msra.mxu0 %v1983
        %2422 = vmatpush.bf16.msra.mxu0 %v1979
        %2423 = vmatpush.bf16.msra.mxu0 %v1975
        %2424 = vmatpush.bf16.msra.mxu0 %v1971
        %2425 = vmatpush.bf16.msra.mxu0 %v1967
        %2426 = vmatmul.bf16.gmra.mxu0 %v2399
        %v2427 = vpop.f32.mrf.mxu0
        %v2428 = vadd.f32 0.0, %v2427
        %v2429 = vpop.f32.mrf.mxu0
        %2430 = vdwg.mxu0
        %2431 = vmatpush.bf16.msra.mxu0 %v1996
        %2432 = vmatpush.bf16.msra.mxu0 %v1992
        %2433 = vmatpush.bf16.msra.mxu0 %v1988
        %2434 = vmatpush.bf16.msra.mxu0 %v1984
        %2435 = vmatpush.bf16.msra.mxu0 %v1980
        %2436 = vmatpush.bf16.msra.mxu0 %v1976
        %2437 = vmatpush.bf16.msra.mxu0 %v1972
        %2438 = vmatpush.bf16.msra.mxu0 %v1968
        %2439 = vmatmul.bf16.gmra.mxu0 %v2399
        %v2440 = vpop.f32.mrf.mxu0
        %v2441 = vadd.f32 0.0, %v2440
        %v2442 = vpop.f32.mrf.mxu0
        %2443 = vdwg.mxu0
        %2444 = vmatpush.bf16.msra.mxu0 %v1997
        %2445 = vmatpush.bf16.msra.mxu0 %v1993
        %2446 = vmatpush.bf16.msra.mxu0 %v1989
        %2447 = vmatpush.bf16.msra.mxu0 %v1985
        %2448 = vmatpush.bf16.msra.mxu0 %v1981
        %2449 = vmatpush.bf16.msra.mxu0 %v1977
        %2450 = vmatpush.bf16.msra.mxu0 %v1973
        %2451 = vmatpush.bf16.msra.mxu0 %v1969
        %2452 = vmatmul.bf16.gmra.mxu0 %v2399
        %v2453 = vpop.f32.mrf.mxu0
        %v2454 = vadd.f32 0.0, %v2453
        %v2455 = vpop.f32.mrf.mxu0
        %2456 = vdwg.mxu0
        %v2457 = vadd.f32 %v2401, %v2415
        %v2458 = vadd.f32 %v2402, %v2428
        %v2459 = vadd.f32 %v2403, %v2441
        %v2460 = vadd.f32 %v2404, %v2454
        %v2461 = vxor.u32 %v2457, 2147483648
        %v2462 = vmul.f32 %v2461, 1.442695
        %v2463 = vpow.pop %v2462
        %v2464 = vadd.f32 %v2463, 1.0
        %v2465 = vrcp.pop %v2464
        %v2466 = vmul.f32 %v2464, %v2465
        %v2467 = vsub.f32 1.0, %v2466
        %v2468 = vmul.f32 %v2465, %v2467
        %v2469 = vadd.f32 %v2465, %v2468
        %vm2470 = vweird.f32 %v2464
        %vm2471 = vweird.f32 %v2465
        %vm2472 = vmor %vm2470, %vm2471
        %v2473 = vsel %vm2472, %v2465, %v2469
        %v2474 = vand.u32 2147483647, %v2464
        %vm2475 = vcmp.eq.f32.partialorder %v2474, 8.507059e+37
        %v2476 = vand.u32 %v2464, 2147483648
        %v2477 = vor.u32 1.1754944e-38, %v2476
        %v2478 = vsel %vm2475, %v2477, %v2473
        %v2479 = vmul.f32 1.0, %v2478
        %v2480 = vxor.u32 %v2458, 2147483648
        %v2481 = vmul.f32 %v2480, 1.442695
        %v2482 = vpow.pop %v2481
        %v2483 = vadd.f32 %v2482, 1.0
        %v2484 = vrcp.pop %v2483
        %v2485 = vmul.f32 %v2483, %v2484
        %v2486 = vsub.f32 1.0, %v2485
        %v2487 = vmul.f32 %v2484, %v2486
        %v2488 = vadd.f32 %v2484, %v2487
        %vm2489 = vweird.f32 %v2483
        %vm2490 = vweird.f32 %v2484
        %vm2491 = vmor %vm2489, %vm2490
        %v2492 = vsel %vm2491, %v2484, %v2488
        %v2493 = vand.u32 2147483647, %v2483
        %vm2494 = vcmp.eq.f32.partialorder %v2493, 8.507059e+37
        %v2495 = vand.u32 %v2483, 2147483648
        %v2496 = vor.u32 1.1754944e-38, %v2495
        %v2497 = vsel %vm2494, %v2496, %v2492
        %v2498 = vmul.f32 1.0, %v2497
        %v2499 = vtanh.pop %v2459
        %v2500 = vxor.u32 %v2460, 2147483648
        %v2501 = vmul.f32 %v2500, 1.442695
        %v2502 = vpow.pop %v2501
        %v2503 = vadd.f32 %v2502, 1.0
        %v2504 = vrcp.pop %v2503
        %v2505 = vmul.f32 %v2503, %v2504
        %v2506 = vsub.f32 1.0, %v2505
        %v2507 = vmul.f32 %v2504, %v2506
        %v2508 = vadd.f32 %v2504, %v2507
        %vm2509 = vweird.f32 %v2503
        %vm2510 = vweird.f32 %v2504
        %vm2511 = vmor %vm2509, %vm2510
        %v2512 = vsel %vm2511, %v2504, %v2508
        %v2513 = vand.u32 2147483647, %v2503
        %vm2514 = vcmp.eq.f32.partialorder %v2513, 8.507059e+37
        %v2515 = vand.u32 %v2503, 2147483648
        %v2516 = vor.u32 1.1754944e-38, %v2515
        %v2517 = vsel %vm2514, %v2516, %v2512
        %v2518 = vmul.f32 1.0, %v2517
        %v2519 = vmul.f32 %v2498, %v2396
        %v2520 = vmul.f32 %v2479, %v2499
        %v2521 = vadd.f32 %v2519, %v2520
        %v2522 = vtanh.pop %v2521
        %v2523 = vmul.f32 %v2518, %v2522
        %v2524 = vpack.c.bf16 %v2523, %v2523
        %2525 = vst [vmem:[%s1512] sm:$0xf] %v2524
        %2526 = vst [vmem:[%s1861] sm:$0xff] %v2523
        %2527 = vst [vmem:[%s1863] sm:$0xff] %v2521
        %v2528 = vld [vmem:[#allocation4] sm:$0xf]
        %v2529 = vld [vmem:[#allocation4 + $0x4] sm:$0xf]
        %v2530 = vld [vmem:[#allocation4 + $0x8] sm:$0xf]
        %v2531 = vld [vmem:[#allocation4 + $0xc] sm:$0xf]
        %v2532 = vld [vmem:[%s4] sm:$0xf]
        %v2533 = vld [vmem:[%s4 + $0x4] sm:$0xf]
        %v2534 = vld [vmem:[%s4 + $0x8] sm:$0xf]
        %v2535 = vld [vmem:[%s4 + $0xc] sm:$0xf]
        %v2536 = vld [vmem:[%s4 + $0x10] sm:$0xf]
        %v2537 = vld [vmem:[%s4 + $0x14] sm:$0xf]
        %v2538 = vld [vmem:[%s4 + $0x18] sm:$0xf]
        %v2539 = vld [vmem:[%s4 + $0x1c] sm:$0xf]
        %v2540 = vld [vmem:[%s4 + $0x20] sm:$0xf]
        %v2541 = vld [vmem:[%s4 + $0x24] sm:$0xf]
        %v2542 = vld [vmem:[%s4 + $0x28] sm:$0xf]
        %v2543 = vld [vmem:[%s4 + $0x2c] sm:$0xf]
        %v2544 = vld [vmem:[%s4 + $0x30] sm:$0xf]
        %v2545 = vld [vmem:[%s4 + $0x34] sm:$0xf]
        %v2546 = vld [vmem:[%s4 + $0x38] sm:$0xf]
        %v2547 = vld [vmem:[%s4 + $0x3c] sm:$0xf]
        %v2548 = vld [vmem:[%s5] sm:$0x1]
        %v2550 = vperm.slane %v2548, 0
        %v2556 = vunpack.c.l.b16 %v2528
        %v2557 = vunpack.c.l.b16 %v2529
        %v2558 = vunpack.c.l.b16 %v2530
        %v2559 = vunpack.c.l.b16 %v2531
        %v2560 = vpack.c.b16 %v2557, %v2556
        %v2561 = vpack.c.b16 %v2559, %v2558
        %v2580 = vunpack.c.l.b16 %v2532
        %v2581 = vunpack.c.l.b16 %v2533
        %v2582 = vunpack.c.l.b16 %v2534
        %v2583 = vunpack.c.l.b16 %v2535
        %v2584 = vunpack.c.l.b16 %v2536
        %v2585 = vunpack.c.l.b16 %v2537
        %v2586 = vunpack.c.l.b16 %v2538
        %v2587 = vunpack.c.l.b16 %v2539
        %v2588 = vunpack.c.l.b16 %v2540
        %v2589 = vunpack.c.l.b16 %v2541
        %v2590 = vunpack.c.l.b16 %v2542
        %v2591 = vunpack.c.l.b16 %v2543
        %v2592 = vunpack.c.l.b16 %v2544
        %v2593 = vunpack.c.l.b16 %v2545
        %v2594 = vunpack.c.l.b16 %v2546
        %v2595 = vunpack.c.l.b16 %v2547
        %v2596 = vpack.c.b16 %v2581, %v2580
        %v2597 = vpack.c.b16 %v2583, %v2582
        %v2598 = vpack.c.b16 %v2585, %v2584
        %v2599 = vpack.c.b16 %v2587, %v2586
        %v2600 = vpack.c.b16 %v2589, %v2588
        %v2601 = vpack.c.b16 %v2591, %v2590
        %v2602 = vpack.c.b16 %v2593, %v2592
        %v2603 = vpack.c.b16 %v2595, %v2594
        %2612 = vmatpush.bf16.msra.mxu0 %v2603
        %2613 = vmatpush.bf16.msra.mxu0 %v2602
        %2614 = vmatpush.bf16.msra.mxu0 %v2601
        %2615 = vmatpush.bf16.msra.mxu0 %v2600
        %2616 = vmatpush.bf16.msra.mxu0 %v2599
        %2617 = vmatpush.bf16.msra.mxu0 %v2598
        %2618 = vmatpush.bf16.msra.mxu0 %v2597
        %2619 = vmatpush.bf16.msra.mxu0 %v2596
        %2620 = vmatmul.bf16.gmra.mxu0 %v2560
        %v2621 = vpop.f32.mrf.mxu0
        %v2622 = vadd.f32 %v2550, %v2621
        %v2623 = vpop.f32.mrf.mxu0
        %v2624 = vadd.f32 %v2550, %v2623
        %2625 = vmatmul.bf16.gmra.mxu0 %v2561
        %v2626 = vpop.f32.mrf.mxu0
        %v2627 = vadd.f32 %v2550, %v2626
        %v2628 = vpop.f32.mrf.mxu0
        %v2629 = vadd.f32 %v2550, %v2628
        %2630 = vdwg.mxu0
        %2631 = vst [vmem:[%s473] sm:$0xff] %v2622
        %2632 = vst [vmem:[%s473 + $0x8] sm:$0xff] %v2624
        %2633 = vst [vmem:[%s473 + $0x10] sm:$0xff] %v2627
        %2634 = vst [vmem:[%s473 + $0x18] sm:$0xff] %v2629
        %p2635 = scmp.eq.s32.totalorder %s29, 1
        // Predicated region
        $region65: #{char_lstm_forward.1} parent=51 // pred_check
          %p2636 = pneg %p2635
        $region66: #{char_lstm_forward.1} parent=51 // pred_check_branch
          %2638 = sbr.rel (%p2636) target = $region68
        $region67: #{char_lstm_forward.1} parent=51 // pred_region
          %v2639 = vld [vmem:[#allocation2] sm:$0xff]
          %v2640 = vld [vmem:[#allocation2 + $0x8] sm:$0xff]
          %2641 = vst [vmem:[%s478] sm:$0xff] %v2639
          %2642 = vst [vmem:[%s478 + $0x8] sm:$0xff] %v2640
          %v2643 = vld [vmem:[#allocation3] sm:$0xff]
          %v2644 = vld [vmem:[#allocation3 + $0x8] sm:$0xff]
          %2645 = vst [vmem:[%s482] sm:$0xff] %v2643
          %2646 = vst [vmem:[%s482 + $0x8] sm:$0xff] %v2644
        $region68: #{char_lstm_forward.1} parent=51 // pred_fallthru
          _
        %s2647 = smul.u32 4, %s29
        %p2648 = scmp.lt.s32.totalorder %s2647, 7
        %s2649 = scalar_select %p2648, %s2647, 7
        %p2650 = scmp.lt.s32.totalorder %s28, 0
        %s2651 = scalar_select %p2650, %s28, 0
        %s2652 = sadd.s32 %s2651, %s2649
        %s2653 = smul.addr %s2652, 8
        %s2654 = scalar_lea.vmem %s8, %s2653
        %p2655 = scmp.lt.s32.totalorder %s28, 0
        %s2656 = scalar_select %p2655, %s28, 0
        %s2657 = smul.addr %s2656, 8
        %s2658 = scalar_lea.vmem %s9, %s2657
        %p2659 = scmp.lt.s32.totalorder %s28, 0
        %s2660 = scalar_select %p2659, %s28, 0
        %s2661 = smul.addr %s2660, 8
        %s2662 = scalar_lea.vmem %s10, %s2661
        // Predicated region
        $region69: #{char_lstm_forward.1} parent=51 // pred_check
          %p2663 = pneg %p241
        $region70: #{char_lstm_forward.1} parent=51 // pred_check_branch
          %2665 = sbr.rel (%p2663) target = $region72
        $region71: #{char_lstm_forward.1} parent=51 // pred_region
          %s2666 = smul.u32 4, %s29
        $region72: #{char_lstm_forward.1} parent=51 // pred_fallthru
          _
        // Predicated region
        $region73: #{char_lstm_forward.1} parent=51 // pred_check
          %p2667 = pneg %p267
        $region74: #{char_lstm_forward.1} parent=51 // pred_check_branch
          %2669 = sbr.rel (%p2667) target = $region76
        $region75: #{char_lstm_forward.1} parent=51 // pred_region
          _
        $region76: #{char_lstm_forward.1} parent=51 // pred_fallthru
          _
        // Predicated region
        $region77: #{char_lstm_forward.1} parent=51 // pred_check
          %p2670 = pneg %p293
        $region78: #{char_lstm_forward.1} parent=51 // pred_check_branch
          %2672 = sbr.rel (%p2670) target = $region80
        $region79: #{char_lstm_forward.1} parent=51 // pred_region
          _
        $region80: #{char_lstm_forward.1} parent=51 // pred_fallthru
          _
        // Predicated region
        $region81: #{char_lstm_forward.1} parent=51 // pred_check
          %p2673 = pneg %p267
        $region82: #{char_lstm_forward.1} parent=51 // pred_check_branch
          %2675 = sbr.rel (%p2673) target = $region84
        $region83: #{char_lstm_forward.1} parent=51 // pred_region
          %p2676 = scmp.lt.s32.totalorder %s28, 0
          %s2677 = scalar_select %p2676, %s28, 0
          %s2678 = smul.addr %s2677, 8
          %s2679 = scalar_lea.vmem %s9, %s2678
        $region84: #{char_lstm_forward.1} parent=51 // pred_fallthru
          _
        // Predicated region
        $region85: #{char_lstm_forward.1} parent=51 // pred_check
          %p2680 = pneg %p293
        $region86: #{char_lstm_forward.1} parent=51 // pred_check_branch
          %2682 = sbr.rel (%p2680) target = $region88
        $region87: #{char_lstm_forward.1} parent=51 // pred_region
          %p2683 = scmp.lt.s32.totalorder %s28, 0
          %s2684 = scalar_select %p2683, %s28, 0
          %s2685 = smul.addr %s2684, 8
          %s2686 = scalar_lea.vmem %s10, %s2685
        $region88: #{char_lstm_forward.1} parent=51 // pred_fallthru
          _
      $region52: #{char_lstm_forward.1} parent=5 // pred_fallthru
        _
      %p2687 = scmp.le.s32.totalorder 2, %s19
      // Predicated region
      $region89: #{char_lstm_forward.1} parent=5 // pred_check
        %p2688 = pneg %p2687
      $region90: #{char_lstm_forward.1} parent=5 // pred_check_branch
        %2690 = sbr.rel (%p2688) target = $region92
      $region91: #{char_lstm_forward.1} parent=5 // pred_region
        %s2691 = ssub.s32 %s19, 2
        // Predicated region
        $region93: #{char_lstm_forward.1} parent=91 // pred_check
          %p2692 = pneg %p247
        $region94: #{char_lstm_forward.1} parent=91 // pred_check_branch
          %2694 = sbr.rel (%p2692) target = $region96
        $region95: #{char_lstm_forward.1} parent=91 // pred_region
          %s2695 = smul.u32 4, %s31
          %p2696 = scmp.lt.s32.totalorder %s2695, 7
          %s2697 = scalar_select %p2696, %s2695, 7
          %p2698 = scmp.lt.s32.totalorder %s30, 0
          %s2699 = scalar_select %p2698, %s30, 0
          %s2700 = sadd.s32 %s2699, %s2697
          %s2701 = smul.addr %s2700, 8
          %s2702 = scalar_lea.vmem %s8, %s2701
        $region96: #{char_lstm_forward.1} parent=91 // pred_fallthru
          _
      $region92: #{char_lstm_forward.1} parent=5 // pred_fallthru
        _
    $region6: #{char_lstm_forward.1} parent=1 // loop_footer
      %s23 = sadd.s32 1, %s19
    $region7: #{char_lstm_forward.1} parent=1 // loop_footer_branch
      %18 = sbr.rel target = $region3
    $region8: #{char_lstm_forward.1} parent=1 // loop_exit
      _
    %2703 = vsyncpa [#allocation7], 1
    %s2704 = scalar_lea.sflag [#allocation7], 1
    %2705 = vsyncpa %s2704, 1
    %2706 = vsyncpa [#allocation9], 1

</llo_original>
